<compile_context>
chip_gen: v7x
topology: tpu7x:2x2x1
jax: 0.10.0
libtpu: 0.0.40
codegen_flags: <defaults>
</compile_context>

<pallas_src>
import functools

import jax
import jax.numpy as jnp
from jax.experimental import pallas as pl
from jax.experimental.pallas import tpu as pltpu

EPS = 1e-5     # torch.nn.LayerNorm default
LANE = 128


def _round_up(x, m):
    return (x + m - 1) // m * m


# ----------------------------------------------------------------------------
# Fused kernel: depth x [attn + residual, ff + residual] + final LayerNorm
# ----------------------------------------------------------------------------
def make_block_kernel(depth, heads, dim_head, d_real, batch, n_tokens, d_pad,
                      compute_dtype):
    inner = heads * dim_head
    bn = batch * n_tokens
    inv_d = 1.0 / float(d_real)

    def layernorm(x, g, b):
        # x has zero pad lanes, so full-lane sums equal real-lane sums.
        mu = jnp.sum(x, axis=-1, keepdims=True) * inv_d
        ex2 = jnp.sum(x * x, axis=-1, keepdims=True) * inv_d
        var = ex2 - mu * mu
        # gamma/beta are zero in pad lanes -> output pad lanes stay zero.
        return (x - mu) * jax.lax.rsqrt(var + EPS) * g + b

    def gelu_exact(x):
        # nn.GELU default (exact erf); erf via Abramowitz & Stegun 7.1.26
        # (max abs error ~1.5e-7) so only exp/mul/add are required to lower.
        z = x * 0.7071067811865476
        az = jnp.abs(z)
        t = 1.0 / (1.0 + 0.3275911 * az)
        poly = ((((1.061405429 * t - 1.453152027) * t + 1.421413741) * t
                 - 0.284496736) * t + 0.254829592) * t
        erf_abs = 1.0 - poly * jnp.exp(-az * az)
        erf = jnp.where(z >= 0, erf_abs, -erf_abs)
        return 0.5 * x * (1.0 + erf)

    def kernel(x_ref, vec_ref, b1_ref, wqkv_ref, wo_ref, w1_ref, w2_ref, o_ref):
        vec = vec_ref[...]            # (6*depth+2, d_pad) f32: ln_g/ln_b/biases
        b1s = b1_ref[...]             # (depth, h_pad)      f32

        x = x_ref[...].reshape(bn, d_pad)          # (B*N, Dp) f32, zero pad lanes

        for l in range(depth):                      # static unroll over depth
            r = 6 * l
            # ---------------- Spa_Attention + residual ----------------
            xn = layernorm(x, vec[r + 0:r + 1], vec[r + 1:r + 2])
            # fused, lane-dense QKV projection (scale folded into Q columns)
            qkv = jnp.dot(xn.astype(compute_dtype), wqkv_ref[l],
                          preferred_element_type=jnp.float32)   # (B*N, qkv_pad)

            head_outs = []
            for h in range(heads):                  # tiny per-head score/AV matmuls
                qo = h * dim_head
                ko = inner + h * dim_head
                vo = 2 * inner + h * dim_head
                qh = qkv[:, qo:qo + dim_head].reshape(batch, n_tokens, dim_head)
                kh = qkv[:, ko:ko + dim_head].reshape(batch, n_tokens, dim_head)
                vh = qkv[:, vo:vo + dim_head].reshape(batch, n_tokens, dim_head)
                s = jnp.einsum('bqd,bkd->bqk', qh, kh,
                               preferred_element_type=jnp.float32)
                s = s - jnp.max(s, axis=-1, keepdims=True)       # stable softmax
                e = jnp.exp(s)
                p = e * pl.reciprocal(jnp.sum(e, axis=-1, keepdims=True),
                                      approx=False)
                head_outs.append(jnp.einsum('bqk,bkd->bqd', p, vh,
                                            preferred_element_type=jnp.float32))
            # concat heads in the lane dim -> one dense output-projection matmul
            attn_out = jnp.concatenate(head_outs, axis=-1).reshape(bn, inner)
            proj = jnp.dot(attn_out.astype(compute_dtype), wo_ref[l],
                           preferred_element_type=jnp.float32) + vec[r + 2:r + 3]
            x = x + proj

            # ---------------- FeedForward + residual ----------------
            xn = layernorm(x, vec[r + 3:r + 4], vec[r + 4:r + 5])
            hdn = jnp.dot(xn.astype(compute_dtype), w1_ref[l],
                          preferred_element_type=jnp.float32) + b1s[l:l + 1]
            hdn = gelu_exact(hdn)
            y = jnp.dot(hdn.astype(compute_dtype), w2_ref[l],
                        preferred_element_type=jnp.float32) + vec[r + 5:r + 6]
            x = x + y

        # final LayerNorm, store in caller dtype (lane-dense 128-wide store)
        rf = 6 * depth
        out = layernorm(x, vec[rf:rf + 1], vec[rf + 1:rf + 2])
        o_ref[...] = out.reshape(batch, n_tokens, d_pad).astype(o_ref.dtype)

    return kernel


# ----------------------------------------------------------------------------
# Weight preparation: pack QKV (scale folded into Q), pad lanes, stack over depth,
# consolidate all LN params / biases into one dense f32 array.
# NOTE: weights are assumed in (in, out) layout (as built by init_params); a real
# PyTorch nn.Linear state_dict stores (out, in) and would need a transpose.
# ----------------------------------------------------------------------------
def _prep_weights(params, heads, dim_head, dim, d_pad, mlp_dim, h_pad, compute_dtype):
    inner = heads * dim_head
    qkv_pad = _round_up(3 * inner, LANE)
    scale = dim_head ** (-0.5)

    def padv(a, new):            # (1, n) or (n,) -> (new,)
        a = a.reshape(-1)
        return jnp.pad(a, (0, new - a.shape[0]))

    vec_rows, b1_rows = [], []
    wqkv, wo, w1, w2 = [], [], [], []
    for layer in params["layers"]:
        at, ff = layer["attn"], layer["ff"]
        wq = at["w_qkv"][:, :inner] * scale                 # fold 1/sqrt(dh) into Q
        wk = at["w_qkv"][:, inner:2 * inner]
        wv = at["w_qkv"][:, 2 * inner:]
        wqkv_l = jnp.concatenate([wq, wk, wv], axis=1)      # (dim, 3*inner)
        wqkv.append(jnp.pad(wqkv_l, ((0, d_pad - dim), (0, qkv_pad - 3 * inner))))
        wo.append(jnp.pad(at["w_out"], ((0, 0), (0, d_pad - dim))))       # (inner, Dp)
        w1.append(jnp.pad(ff["w1"], ((0, d_pad - dim), (0, h_pad - mlp_dim))))
        w2.append(jnp.pad(ff["w2"], ((0, h_pad - mlp_dim), (0, d_pad - dim))))
        vec_rows += [padv(at["ln_g"], d_pad), padv(at["ln_b"], d_pad),
                     padv(at["b_out"], d_pad),
                     padv(ff["ln_g"], d_pad), padv(ff["ln_b"], d_pad),
                     padv(ff["b2"], d_pad)]
        b1_rows.append(padv(ff["b1"], h_pad))
    vec_rows += [padv(params["final"]["ln_g"], d_pad),
                 padv(params["final"]["ln_b"], d_pad)]

    vecs = jnp.stack(vec_rows, axis=0).astype(jnp.float32)   # (6*depth+2, d_pad)
    b1s = jnp.stack(b1_rows, axis=0).astype(jnp.float32)     # (depth, h_pad)
    return (vecs, b1s,
            jnp.stack(wqkv).astype(compute_dtype),           # (depth, d_pad, qkv_pad)
            jnp.stack(wo).astype(compute_dtype),             # (depth, inner, d_pad)
            jnp.stack(w1).astype(compute_dtype),             # (depth, d_pad, h_pad)
            jnp.stack(w2).astype(compute_dtype))             # (depth, h_pad, d_pad)


# ----------------------------------------------------------------------------
# Public wrapper
# ----------------------------------------------------------------------------
def spa_transformer_block(x, params, heads, dim_head, compute_dtype=jnp.bfloat16):
    """compute_dtype: matmul operand dtype (bf16 = v6e/v7x MXU-native; f32 = strict parity)."""
    B, N, D = x.shape
    assert N % 8 == 0, "token count must be a multiple of 8 sublanes"
    depth = len(params["layers"])
    mlp_dim = params["layers"][0]["ff"]["w1"].shape[1]
    d_pad = _round_up(D, LANE)
    h_pad = _round_up(mlp_dim, LANE)

    weights = _prep_weights(params, heads, dim_head, D, d_pad, mlp_dim, h_pad,
                            compute_dtype)
    x_p = jnp.pad(x.astype(jnp.float32), ((0, 0), (0, 0), (0, d_pad - D)))

    kernel = make_block_kernel(depth=depth, heads=heads, dim_head=dim_head,
                               d_real=D, batch=B, n_tokens=N, d_pad=d_pad,
                               compute_dtype=compute_dtype)

    # Single invocation (no grid): whole-array VMEM-resident inputs/outputs.
    vmem_spec = pl.BlockSpec(memory_space=pltpu.MemorySpace.VMEM)

    out = pl.pallas_call(
        kernel,
        out_shape=jax.ShapeDtypeStruct((B, N, d_pad), x.dtype),
        in_specs=[vmem_spec] * (1 + len(weights)),
        out_specs=vmem_spec,
        compiler_params=pltpu.CompilerParams(vmem_limit_bytes=64 * 1024 * 1024),
    )(x_p, *weights)
    return out[:, :, :D]


# ----------------------------------------------------------------------------
# Deterministic parameter construction (logical / unpadded, (in, out) layout)
# ----------------------------------------------------------------------------
def init_params(key, dim, depth, heads, dim_head, mlp_dim):
    inner_dim = heads * dim_head
    layers = []
    for _ in range(depth):
        key, *ks = jax.random.split(key, 7)
        attn = {
            "ln_g": jnp.ones((1, dim), jnp.float32),
            "ln_b": jnp.zeros((1, dim), jnp.float32),
            "w_qkv": 0.05 * jax.random.normal(ks[0], (dim, 3 * inner_dim), jnp.float32),
            "w_out": 0.05 * jax.random.normal(ks[1], (inner_dim, dim), jnp.float32),
            "b_out": 0.01 * jax.random.normal(ks[2], (1, dim), jnp.float32),
        }
        ff = {
            "ln_g": jnp.ones((1, dim), jnp.float32),
            "ln_b": jnp.zeros((1, dim), jnp.float32),
            "w1": 0.05 * jax.random.normal(ks[3], (dim, mlp_dim), jnp.float32),
            "b1": 0.01 * jax.random.normal(ks[4], (1, mlp_dim), jnp.float32),
            "w2": 0.05 * jax.random.normal(ks[5], (mlp_dim, dim), jnp.float32),
            "b2": jnp.zeros((1, dim), jnp.float32),
        }
        layers.append({"attn": attn, "ff": ff})
    final = {
        "ln_g": jnp.ones((1, dim), jnp.float32),
        "ln_b": jnp.zeros((1, dim), jnp.float32),
    }
    return {"layers": layers, "final": final}


# ----------------------------------------------------------------------------
if __name__ == "__main__":
    # Small shapes consistent with the module's forward.
    B, N, DIM = 2, 16, 32
    DEPTH, HEADS, DIM_HEAD, MLP_DIM = 2, 4, 8, 64

    key = jax.random.PRNGKey(0)
    kx, kp = jax.random.split(key)
    x = jax.random.normal(kx, (B, N, DIM), jnp.float32)
    params = init_params(kp, DIM, DEPTH, HEADS, DIM_HEAD, MLP_DIM)

    fwd = jax.jit(functools.partial(spa_transformer_block,
                                    heads=HEADS, dim_head=DIM_HEAD))
    out = fwd(x, params)
    jax.block_until_ready(out)
    assert out.shape == (B, N, DIM) and out.dtype == x.dtype
    print("KERNEL_OK")
</pallas_src>

<mosaic_0001>
module attributes {stable_mosaic.version = 11 : i64} {
  func.func @kernel(%arg0: memref<2x16x128xf32, #tpu.memory_space<vmem>>, %arg1: memref<14x128xf32, #tpu.memory_space<vmem>>, %arg2: memref<2x128xf32, #tpu.memory_space<vmem>>, %arg3: memref<2x128x128xbf16, #tpu.memory_space<vmem>>, %arg4: memref<2x32x128xbf16, #tpu.memory_space<vmem>>, %arg5: memref<2x128x128xbf16, #tpu.memory_space<vmem>>, %arg6: memref<2x128x128xbf16, #tpu.memory_space<vmem>>, %arg7: memref<2x16x128xf32, #tpu.memory_space<vmem>>) attributes {dimension_semantics = [], scalar_prefetch = 0 : i64, scratch_operands = 0 : i64, tpu.core_type = #tpu.core_type<tc>} {
    %c0 = arith.constant 0 : index
    %c0_0 = arith.constant 0 : index
    %0 = vector.load %arg1[%c0, %c0_0] : memref<14x128xf32, #tpu.memory_space<vmem>>, vector<14x128xf32>
    %c0_1 = arith.constant 0 : index
    %c0_2 = arith.constant 0 : index
    %1 = vector.load %arg2[%c0_1, %c0_2] : memref<2x128xf32, #tpu.memory_space<vmem>>, vector<2x128xf32>
    %c0_3 = arith.constant 0 : index
    %c0_4 = arith.constant 0 : index
    %c0_5 = arith.constant 0 : index
    %2 = vector.load %arg0[%c0_3, %c0_4, %c0_5] : memref<2x16x128xf32, #tpu.memory_space<vmem>>, vector<2x16x128xf32>
    %3 = vector.shape_cast %2 : vector<2x16x128xf32> to vector<32x128xf32>
    %4 = vector.extract_strided_slice %0 {offsets = [0, 0], sizes = [1, 128], strides = [1, 1]} : vector<14x128xf32> to vector<1x128xf32>
    %5 = vector.extract_strided_slice %0 {offsets = [1, 0], sizes = [1, 128], strides = [1, 1]} : vector<14x128xf32> to vector<1x128xf32>
    %cst = arith.constant dense<0.000000e+00> : vector<32xf32>
    %6 = vector.multi_reduction <add>, %3, %cst [1] : vector<32x128xf32> to vector<32xf32>
    %7 = vector.shape_cast %6 : vector<32xf32> to vector<32x1xf32>
    %cst_6 = arith.constant 3.125000e-02 : f32
    %8 = vector.broadcast %cst_6 : f32 to vector<32x1xf32>
    %9 = arith.mulf %7, %8 : vector<32x1xf32>
    %10 = arith.mulf %3, %3 : vector<32x128xf32>
    %cst_7 = arith.constant dense<0.000000e+00> : vector<32xf32>
    %11 = vector.multi_reduction <add>, %10, %cst_7 [1] : vector<32x128xf32> to vector<32xf32>
    %12 = vector.shape_cast %11 : vector<32xf32> to vector<32x1xf32>
    %cst_8 = arith.constant 3.125000e-02 : f32
    %13 = vector.broadcast %cst_8 : f32 to vector<32x1xf32>
    %14 = arith.mulf %12, %13 : vector<32x1xf32>
    %15 = arith.mulf %9, %9 : vector<32x1xf32>
    %16 = arith.subf %14, %15 : vector<32x1xf32>
    %17 = vector.broadcast %9 : vector<32x1xf32> to vector<32x128xf32>
    %18 = arith.subf %3, %17 : vector<32x128xf32>
    %cst_9 = arith.constant 9.99999974E-6 : f32
    %19 = vector.broadcast %cst_9 : f32 to vector<32x1xf32>
    %20 = arith.addf %16, %19 : vector<32x1xf32>
    %21 = math.rsqrt %20 : vector<32x1xf32>
    %22 = vector.broadcast %21 : vector<32x1xf32> to vector<32x128xf32>
    %23 = arith.mulf %18, %22 : vector<32x128xf32>
    %24 = vector.broadcast %4 : vector<1x128xf32> to vector<32x128xf32>
    %25 = arith.mulf %23, %24 : vector<32x128xf32>
    %26 = vector.broadcast %5 : vector<1x128xf32> to vector<32x128xf32>
    %27 = arith.addf %25, %26 : vector<32x128xf32>
    %28 = arith.truncf %27 : vector<32x128xf32> to vector<32x128xbf16>
    %c0_10 = arith.constant 0 : index
    %c0_11 = arith.constant 0 : index
    %c0_12 = arith.constant 0 : index
    %29 = vector.load %arg3[%c0_10, %c0_11, %c0_12] : memref<2x128x128xbf16, #tpu.memory_space<vmem>>, vector<1x128x128xbf16>
    %30 = vector.shape_cast %29 : vector<1x128x128xbf16> to vector<128x128xbf16>
    %cst_13 = arith.constant dense<0.000000e+00> : vector<32x128xf32>
    %31 = tpu.matmul %28, %30, %cst_13 {dimension_numbers = #tpu.dot_dimension_numbers<[1], [0], [0], [1], [0, 0, 1, 1], [], []>} : vector<32x128xbf16>, vector<128x128xbf16>, vector<32x128xf32> -> vector<32x128xf32>
    %32 = vector.extract_strided_slice %31 {offsets = [0, 0], sizes = [32, 8], strides = [1, 1]} : vector<32x128xf32> to vector<32x8xf32>
    %33 = vector.shape_cast %32 : vector<32x8xf32> to vector<2x16x8xf32>
    %34 = vector.extract_strided_slice %31 {offsets = [0, 32], sizes = [32, 8], strides = [1, 1]} : vector<32x128xf32> to vector<32x8xf32>
    %35 = vector.shape_cast %34 : vector<32x8xf32> to vector<2x16x8xf32>
    %36 = vector.extract_strided_slice %31 {offsets = [0, 64], sizes = [32, 8], strides = [1, 1]} : vector<32x128xf32> to vector<32x8xf32>
    %37 = vector.shape_cast %36 : vector<32x8xf32> to vector<2x16x8xf32>
    "tpu.trace_start"() <{level = 10 : i32, message = "bqd,bkd->bqk"}> : () -> ()
    %cst_14 = arith.constant dense<0.000000e+00> : vector<2x16x16xf32>
    %38 = tpu.matmul %33, %35, %cst_14 {dimension_numbers = #tpu.dot_dimension_numbers<[2], [2], [1], [1], [0, 0, 0, 1, 1, 1], [0], [0]>} : vector<2x16x8xf32>, vector<2x16x8xf32>, vector<2x16x16xf32> -> vector<2x16x16xf32>
    "tpu.trace_stop"() : () -> ()
    %cst_15 = arith.constant dense<0xFF800000> : vector<2x16xf32>
    %39 = vector.multi_reduction <maximumf>, %38, %cst_15 [2] : vector<2x16x16xf32> to vector<2x16xf32>
    %40 = vector.shape_cast %39 : vector<2x16xf32> to vector<2x16x1xf32>
    %41 = vector.broadcast %40 : vector<2x16x1xf32> to vector<2x16x16xf32>
    %42 = arith.subf %38, %41 : vector<2x16x16xf32>
    %43 = math.exp %42 : vector<2x16x16xf32>
    %cst_16 = arith.constant dense<0.000000e+00> : vector<2x16xf32>
    %44 = vector.multi_reduction <add>, %43, %cst_16 [2] : vector<2x16x16xf32> to vector<2x16xf32>
    %45 = vector.shape_cast %44 : vector<2x16xf32> to vector<2x16x1xf32>
    %46 = tpu.reciprocal %45 : vector<2x16x1xf32> -> vector<2x16x1xf32>
    %47 = vector.broadcast %46 : vector<2x16x1xf32> to vector<2x16x16xf32>
    %48 = arith.mulf %43, %47 : vector<2x16x16xf32>
    "tpu.trace_start"() <{level = 10 : i32, message = "bqk,bkd->bqd"}> : () -> ()
    %cst_17 = arith.constant dense<0.000000e+00> : vector<2x16x8xf32>
    %49 = tpu.matmul %48, %37, %cst_17 {dimension_numbers = #tpu.dot_dimension_numbers<[2], [1], [1], [2], [0, 0, 0, 1, 1, 2], [0], [0]>} : vector<2x16x16xf32>, vector<2x16x8xf32>, vector<2x16x8xf32> -> vector<2x16x8xf32>
    "tpu.trace_stop"() : () -> ()
    %50 = vector.extract_strided_slice %31 {offsets = [0, 8], sizes = [32, 8], strides = [1, 1]} : vector<32x128xf32> to vector<32x8xf32>
    %51 = vector.shape_cast %50 : vector<32x8xf32> to vector<2x16x8xf32>
    %52 = vector.extract_strided_slice %31 {offsets = [0, 40], sizes = [32, 8], strides = [1, 1]} : vector<32x128xf32> to vector<32x8xf32>
    %53 = vector.shape_cast %52 : vector<32x8xf32> to vector<2x16x8xf32>
    %54 = vector.extract_strided_slice %31 {offsets = [0, 72], sizes = [32, 8], strides = [1, 1]} : vector<32x128xf32> to vector<32x8xf32>
    %55 = vector.shape_cast %54 : vector<32x8xf32> to vector<2x16x8xf32>
    "tpu.trace_start"() <{level = 10 : i32, message = "bqd,bkd->bqk"}> : () -> ()
    %cst_18 = arith.constant dense<0.000000e+00> : vector<2x16x16xf32>
    %56 = tpu.matmul %51, %53, %cst_18 {dimension_numbers = #tpu.dot_dimension_numbers<[2], [2], [1], [1], [0, 0, 0, 1, 1, 1], [0], [0]>} : vector<2x16x8xf32>, vector<2x16x8xf32>, vector<2x16x16xf32> -> vector<2x16x16xf32>
    "tpu.trace_stop"() : () -> ()
    %cst_19 = arith.constant dense<0xFF800000> : vector<2x16xf32>
    %57 = vector.multi_reduction <maximumf>, %56, %cst_19 [2] : vector<2x16x16xf32> to vector<2x16xf32>
    %58 = vector.shape_cast %57 : vector<2x16xf32> to vector<2x16x1xf32>
    %59 = vector.broadcast %58 : vector<2x16x1xf32> to vector<2x16x16xf32>
    %60 = arith.subf %56, %59 : vector<2x16x16xf32>
    %61 = math.exp %60 : vector<2x16x16xf32>
    %cst_20 = arith.constant dense<0.000000e+00> : vector<2x16xf32>
    %62 = vector.multi_reduction <add>, %61, %cst_20 [2] : vector<2x16x16xf32> to vector<2x16xf32>
    %63 = vector.shape_cast %62 : vector<2x16xf32> to vector<2x16x1xf32>
    %64 = tpu.reciprocal %63 : vector<2x16x1xf32> -> vector<2x16x1xf32>
    %65 = vector.broadcast %64 : vector<2x16x1xf32> to vector<2x16x16xf32>
    %66 = arith.mulf %61, %65 : vector<2x16x16xf32>
    "tpu.trace_start"() <{level = 10 : i32, message = "bqk,bkd->bqd"}> : () -> ()
    %cst_21 = arith.constant dense<0.000000e+00> : vector<2x16x8xf32>
    %67 = tpu.matmul %66, %55, %cst_21 {dimension_numbers = #tpu.dot_dimension_numbers<[2], [1], [1], [2], [0, 0, 0, 1, 1, 2], [0], [0]>} : vector<2x16x16xf32>, vector<2x16x8xf32>, vector<2x16x8xf32> -> vector<2x16x8xf32>
    "tpu.trace_stop"() : () -> ()
    %68 = vector.extract_strided_slice %31 {offsets = [0, 16], sizes = [32, 8], strides = [1, 1]} : vector<32x128xf32> to vector<32x8xf32>
    %69 = vector.shape_cast %68 : vector<32x8xf32> to vector<2x16x8xf32>
    %70 = vector.extract_strided_slice %31 {offsets = [0, 48], sizes = [32, 8], strides = [1, 1]} : vector<32x128xf32> to vector<32x8xf32>
    %71 = vector.shape_cast %70 : vector<32x8xf32> to vector<2x16x8xf32>
    %72 = vector.extract_strided_slice %31 {offsets = [0, 80], sizes = [32, 8], strides = [1, 1]} : vector<32x128xf32> to vector<32x8xf32>
    %73 = vector.shape_cast %72 : vector<32x8xf32> to vector<2x16x8xf32>
    "tpu.trace_start"() <{level = 10 : i32, message = "bqd,bkd->bqk"}> : () -> ()
    %cst_22 = arith.constant dense<0.000000e+00> : vector<2x16x16xf32>
    %74 = tpu.matmul %69, %71, %cst_22 {dimension_numbers = #tpu.dot_dimension_numbers<[2], [2], [1], [1], [0, 0, 0, 1, 1, 1], [0], [0]>} : vector<2x16x8xf32>, vector<2x16x8xf32>, vector<2x16x16xf32> -> vector<2x16x16xf32>
    "tpu.trace_stop"() : () -> ()
    %cst_23 = arith.constant dense<0xFF800000> : vector<2x16xf32>
    %75 = vector.multi_reduction <maximumf>, %74, %cst_23 [2] : vector<2x16x16xf32> to vector<2x16xf32>
    %76 = vector.shape_cast %75 : vector<2x16xf32> to vector<2x16x1xf32>
    %77 = vector.broadcast %76 : vector<2x16x1xf32> to vector<2x16x16xf32>
    %78 = arith.subf %74, %77 : vector<2x16x16xf32>
    %79 = math.exp %78 : vector<2x16x16xf32>
    %cst_24 = arith.constant dense<0.000000e+00> : vector<2x16xf32>
    %80 = vector.multi_reduction <add>, %79, %cst_24 [2] : vector<2x16x16xf32> to vector<2x16xf32>
    %81 = vector.shape_cast %80 : vector<2x16xf32> to vector<2x16x1xf32>
    %82 = tpu.reciprocal %81 : vector<2x16x1xf32> -> vector<2x16x1xf32>
    %83 = vector.broadcast %82 : vector<2x16x1xf32> to vector<2x16x16xf32>
    %84 = arith.mulf %79, %83 : vector<2x16x16xf32>
    "tpu.trace_start"() <{level = 10 : i32, message = "bqk,bkd->bqd"}> : () -> ()
    %cst_25 = arith.constant dense<0.000000e+00> : vector<2x16x8xf32>
    %85 = tpu.matmul %84, %73, %cst_25 {dimension_numbers = #tpu.dot_dimension_numbers<[2], [1], [1], [2], [0, 0, 0, 1, 1, 2], [0], [0]>} : vector<2x16x16xf32>, vector<2x16x8xf32>, vector<2x16x8xf32> -> vector<2x16x8xf32>
    "tpu.trace_stop"() : () -> ()
    %86 = vector.extract_strided_slice %31 {offsets = [0, 24], sizes = [32, 8], strides = [1, 1]} : vector<32x128xf32> to vector<32x8xf32>
    %87 = vector.shape_cast %86 : vector<32x8xf32> to vector<2x16x8xf32>
    %88 = vector.extract_strided_slice %31 {offsets = [0, 56], sizes = [32, 8], strides = [1, 1]} : vector<32x128xf32> to vector<32x8xf32>
    %89 = vector.shape_cast %88 : vector<32x8xf32> to vector<2x16x8xf32>
    %90 = vector.extract_strided_slice %31 {offsets = [0, 88], sizes = [32, 8], strides = [1, 1]} : vector<32x128xf32> to vector<32x8xf32>
    %91 = vector.shape_cast %90 : vector<32x8xf32> to vector<2x16x8xf32>
    "tpu.trace_start"() <{level = 10 : i32, message = "bqd,bkd->bqk"}> : () -> ()
    %cst_26 = arith.constant dense<0.000000e+00> : vector<2x16x16xf32>
    %92 = tpu.matmul %87, %89, %cst_26 {dimension_numbers = #tpu.dot_dimension_numbers<[2], [2], [1], [1], [0, 0, 0, 1, 1, 1], [0], [0]>} : vector<2x16x8xf32>, vector<2x16x8xf32>, vector<2x16x16xf32> -> vector<2x16x16xf32>
    "tpu.trace_stop"() : () -> ()
    %cst_27 = arith.constant dense<0xFF800000> : vector<2x16xf32>
    %93 = vector.multi_reduction <maximumf>, %92, %cst_27 [2] : vector<2x16x16xf32> to vector<2x16xf32>
    %94 = vector.shape_cast %93 : vector<2x16xf32> to vector<2x16x1xf32>
    %95 = vector.broadcast %94 : vector<2x16x1xf32> to vector<2x16x16xf32>
    %96 = arith.subf %92, %95 : vector<2x16x16xf32>
    %97 = math.exp %96 : vector<2x16x16xf32>
    %cst_28 = arith.constant dense<0.000000e+00> : vector<2x16xf32>
    %98 = vector.multi_reduction <add>, %97, %cst_28 [2] : vector<2x16x16xf32> to vector<2x16xf32>
    %99 = vector.shape_cast %98 : vector<2x16xf32> to vector<2x16x1xf32>
    %100 = tpu.reciprocal %99 : vector<2x16x1xf32> -> vector<2x16x1xf32>
    %101 = vector.broadcast %100 : vector<2x16x1xf32> to vector<2x16x16xf32>
    %102 = arith.mulf %97, %101 : vector<2x16x16xf32>
    "tpu.trace_start"() <{level = 10 : i32, message = "bqk,bkd->bqd"}> : () -> ()
    %cst_29 = arith.constant dense<0.000000e+00> : vector<2x16x8xf32>
    %103 = tpu.matmul %102, %91, %cst_29 {dimension_numbers = #tpu.dot_dimension_numbers<[2], [1], [1], [2], [0, 0, 0, 1, 1, 2], [0], [0]>} : vector<2x16x16xf32>, vector<2x16x8xf32>, vector<2x16x8xf32> -> vector<2x16x8xf32>
    "tpu.trace_stop"() : () -> ()
    %104 = tpu.concatenate %49, %67, %85, %103 in 2 : vector<2x16x8xf32>, vector<2x16x8xf32>, vector<2x16x8xf32>, vector<2x16x8xf32> -> vector<2x16x32xf32>
    %105 = vector.shape_cast %104 : vector<2x16x32xf32> to vector<32x32xf32>
    %106 = arith.truncf %105 : vector<32x32xf32> to vector<32x32xbf16>
    %c0_30 = arith.constant 0 : index
    %c0_31 = arith.constant 0 : index
    %c0_32 = arith.constant 0 : index
    %107 = vector.load %arg4[%c0_30, %c0_31, %c0_32] : memref<2x32x128xbf16, #tpu.memory_space<vmem>>, vector<1x32x128xbf16>
    %108 = vector.shape_cast %107 : vector<1x32x128xbf16> to vector<32x128xbf16>
    %cst_33 = arith.constant dense<0.000000e+00> : vector<32x128xf32>
    %109 = tpu.matmul %106, %108, %cst_33 {dimension_numbers = #tpu.dot_dimension_numbers<[1], [0], [0], [1], [0, 0, 1, 1], [], []>} : vector<32x32xbf16>, vector<32x128xbf16>, vector<32x128xf32> -> vector<32x128xf32>
    %110 = vector.extract_strided_slice %0 {offsets = [2, 0], sizes = [1, 128], strides = [1, 1]} : vector<14x128xf32> to vector<1x128xf32>
    %111 = vector.broadcast %110 : vector<1x128xf32> to vector<32x128xf32>
    %112 = arith.addf %109, %111 : vector<32x128xf32>
    %113 = arith.addf %3, %112 : vector<32x128xf32>
    %114 = vector.extract_strided_slice %0 {offsets = [3, 0], sizes = [1, 128], strides = [1, 1]} : vector<14x128xf32> to vector<1x128xf32>
    %115 = vector.extract_strided_slice %0 {offsets = [4, 0], sizes = [1, 128], strides = [1, 1]} : vector<14x128xf32> to vector<1x128xf32>
    %cst_34 = arith.constant dense<0.000000e+00> : vector<32xf32>
    %116 = vector.multi_reduction <add>, %113, %cst_34 [1] : vector<32x128xf32> to vector<32xf32>
    %117 = vector.shape_cast %116 : vector<32xf32> to vector<32x1xf32>
    %cst_35 = arith.constant 3.125000e-02 : f32
    %118 = vector.broadcast %cst_35 : f32 to vector<32x1xf32>
    %119 = arith.mulf %117, %118 : vector<32x1xf32>
    %120 = arith.mulf %113, %113 : vector<32x128xf32>
    %cst_36 = arith.constant dense<0.000000e+00> : vector<32xf32>
    %121 = vector.multi_reduction <add>, %120, %cst_36 [1] : vector<32x128xf32> to vector<32xf32>
    %122 = vector.shape_cast %121 : vector<32xf32> to vector<32x1xf32>
    %cst_37 = arith.constant 3.125000e-02 : f32
    %123 = vector.broadcast %cst_37 : f32 to vector<32x1xf32>
    %124 = arith.mulf %122, %123 : vector<32x1xf32>
    %125 = arith.mulf %119, %119 : vector<32x1xf32>
    %126 = arith.subf %124, %125 : vector<32x1xf32>
    %127 = vector.broadcast %119 : vector<32x1xf32> to vector<32x128xf32>
    %128 = arith.subf %113, %127 : vector<32x128xf32>
    %cst_38 = arith.constant 9.99999974E-6 : f32
    %129 = vector.broadcast %cst_38 : f32 to vector<32x1xf32>
    %130 = arith.addf %126, %129 : vector<32x1xf32>
    %131 = math.rsqrt %130 : vector<32x1xf32>
    %132 = vector.broadcast %131 : vector<32x1xf32> to vector<32x128xf32>
    %133 = arith.mulf %128, %132 : vector<32x128xf32>
    %134 = vector.broadcast %114 : vector<1x128xf32> to vector<32x128xf32>
    %135 = arith.mulf %133, %134 : vector<32x128xf32>
    %136 = vector.broadcast %115 : vector<1x128xf32> to vector<32x128xf32>
    %137 = arith.addf %135, %136 : vector<32x128xf32>
    %138 = arith.truncf %137 : vector<32x128xf32> to vector<32x128xbf16>
    %c0_39 = arith.constant 0 : index
    %c0_40 = arith.constant 0 : index
    %c0_41 = arith.constant 0 : index
    %139 = vector.load %arg5[%c0_39, %c0_40, %c0_41] : memref<2x128x128xbf16, #tpu.memory_space<vmem>>, vector<1x128x128xbf16>
    %140 = vector.shape_cast %139 : vector<1x128x128xbf16> to vector<128x128xbf16>
    %cst_42 = arith.constant dense<0.000000e+00> : vector<32x128xf32>
    %141 = tpu.matmul %138, %140, %cst_42 {dimension_numbers = #tpu.dot_dimension_numbers<[1], [0], [0], [1], [0, 0, 1, 1], [], []>} : vector<32x128xbf16>, vector<128x128xbf16>, vector<32x128xf32> -> vector<32x128xf32>
    %142 = vector.extract_strided_slice %1 {offsets = [0, 0], sizes = [1, 128], strides = [1, 1]} : vector<2x128xf32> to vector<1x128xf32>
    %143 = vector.broadcast %142 : vector<1x128xf32> to vector<32x128xf32>
    %144 = arith.addf %141, %143 : vector<32x128xf32>
    %cst_43 = arith.constant 0.707106769 : f32
    %145 = vector.broadcast %cst_43 : f32 to vector<32x128xf32>
    %146 = arith.mulf %144, %145 : vector<32x128xf32>
    %147 = math.absf %146 : vector<32x128xf32>
    %cst_44 = arith.constant 0.327591091 : f32
    %148 = vector.broadcast %cst_44 : f32 to vector<32x128xf32>
    %149 = arith.mulf %148, %147 : vector<32x128xf32>
    %cst_45 = arith.constant 1.000000e+00 : f32
    %150 = vector.broadcast %cst_45 : f32 to vector<32x128xf32>
    %151 = arith.addf %150, %149 : vector<32x128xf32>
    %cst_46 = arith.constant 1.000000e+00 : f32
    %152 = vector.broadcast %cst_46 : f32 to vector<32x128xf32>
    %153 = arith.divf %152, %151 : vector<32x128xf32>
    %cst_47 = arith.constant 1.06140542 : f32
    %154 = vector.broadcast %cst_47 : f32 to vector<32x128xf32>
    %155 = arith.mulf %154, %153 : vector<32x128xf32>
    %cst_48 = arith.constant 1.45315206 : f32
    %156 = vector.broadcast %cst_48 : f32 to vector<32x128xf32>
    %157 = arith.subf %155, %156 : vector<32x128xf32>
    %158 = arith.mulf %157, %153 : vector<32x128xf32>
    %cst_49 = arith.constant 1.42141378 : f32
    %159 = vector.broadcast %cst_49 : f32 to vector<32x128xf32>
    %160 = arith.addf %158, %159 : vector<32x128xf32>
    %161 = arith.mulf %160, %153 : vector<32x128xf32>
    %cst_50 = arith.constant 0.284496725 : f32
    %162 = vector.broadcast %cst_50 : f32 to vector<32x128xf32>
    %163 = arith.subf %161, %162 : vector<32x128xf32>
    %164 = arith.mulf %163, %153 : vector<32x128xf32>
    %cst_51 = arith.constant 0.254829586 : f32
    %165 = vector.broadcast %cst_51 : f32 to vector<32x128xf32>
    %166 = arith.addf %164, %165 : vector<32x128xf32>
    %167 = arith.mulf %166, %153 : vector<32x128xf32>
    %cst_52 = arith.constant 0.000000e+00 : f32
    %168 = vector.broadcast %cst_52 : f32 to vector<32x128xf32>
    %169 = arith.subf %168, %147 : vector<32x128xf32>
    %170 = arith.mulf %169, %147 : vector<32x128xf32>
    %171 = math.exp %170 : vector<32x128xf32>
    %172 = arith.mulf %167, %171 : vector<32x128xf32>
    %cst_53 = arith.constant 1.000000e+00 : f32
    %173 = vector.broadcast %cst_53 : f32 to vector<32x128xf32>
    %174 = arith.subf %173, %172 : vector<32x128xf32>
    %cst_54 = arith.constant 0.000000e+00 : f32
    %175 = vector.broadcast %cst_54 : f32 to vector<32x128xf32>
    %176 = arith.cmpf oge, %146, %175 : vector<32x128xf32>
    %cst_55 = arith.constant 0.000000e+00 : f32
    %177 = vector.broadcast %cst_55 : f32 to vector<32x128xf32>
    %178 = arith.subf %177, %174 : vector<32x128xf32>
    %179 = arith.select %176, %174, %178 : vector<32x128xi1>, vector<32x128xf32>
    %cst_56 = arith.constant 5.000000e-01 : f32
    %180 = vector.broadcast %cst_56 : f32 to vector<32x128xf32>
    %181 = arith.mulf %180, %144 : vector<32x128xf32>
    %cst_57 = arith.constant 1.000000e+00 : f32
    %182 = vector.broadcast %cst_57 : f32 to vector<32x128xf32>
    %183 = arith.addf %182, %179 : vector<32x128xf32>
    %184 = arith.mulf %181, %183 : vector<32x128xf32>
    %185 = arith.truncf %184 : vector<32x128xf32> to vector<32x128xbf16>
    %c0_58 = arith.constant 0 : index
    %c0_59 = arith.constant 0 : index
    %c0_60 = arith.constant 0 : index
    %186 = vector.load %arg6[%c0_58, %c0_59, %c0_60] : memref<2x128x128xbf16, #tpu.memory_space<vmem>>, vector<1x128x128xbf16>
    %187 = vector.shape_cast %186 : vector<1x128x128xbf16> to vector<128x128xbf16>
    %cst_61 = arith.constant dense<0.000000e+00> : vector<32x128xf32>
    %188 = tpu.matmul %185, %187, %cst_61 {dimension_numbers = #tpu.dot_dimension_numbers<[1], [0], [0], [1], [0, 0, 1, 1], [], []>} : vector<32x128xbf16>, vector<128x128xbf16>, vector<32x128xf32> -> vector<32x128xf32>
    %189 = vector.extract_strided_slice %0 {offsets = [5, 0], sizes = [1, 128], strides = [1, 1]} : vector<14x128xf32> to vector<1x128xf32>
    %190 = vector.broadcast %189 : vector<1x128xf32> to vector<32x128xf32>
    %191 = arith.addf %188, %190 : vector<32x128xf32>
    %192 = arith.addf %113, %191 : vector<32x128xf32>
    %193 = vector.extract_strided_slice %0 {offsets = [6, 0], sizes = [1, 128], strides = [1, 1]} : vector<14x128xf32> to vector<1x128xf32>
    %194 = vector.extract_strided_slice %0 {offsets = [7, 0], sizes = [1, 128], strides = [1, 1]} : vector<14x128xf32> to vector<1x128xf32>
    %cst_62 = arith.constant dense<0.000000e+00> : vector<32xf32>
    %195 = vector.multi_reduction <add>, %192, %cst_62 [1] : vector<32x128xf32> to vector<32xf32>
    %196 = vector.shape_cast %195 : vector<32xf32> to vector<32x1xf32>
    %cst_63 = arith.constant 3.125000e-02 : f32
    %197 = vector.broadcast %cst_63 : f32 to vector<32x1xf32>
    %198 = arith.mulf %196, %197 : vector<32x1xf32>
    %199 = arith.mulf %192, %192 : vector<32x128xf32>
    %cst_64 = arith.constant dense<0.000000e+00> : vector<32xf32>
    %200 = vector.multi_reduction <add>, %199, %cst_64 [1] : vector<32x128xf32> to vector<32xf32>
    %201 = vector.shape_cast %200 : vector<32xf32> to vector<32x1xf32>
    %cst_65 = arith.constant 3.125000e-02 : f32
    %202 = vector.broadcast %cst_65 : f32 to vector<32x1xf32>
    %203 = arith.mulf %201, %202 : vector<32x1xf32>
    %204 = arith.mulf %198, %198 : vector<32x1xf32>
    %205 = arith.subf %203, %204 : vector<32x1xf32>
    %206 = vector.broadcast %198 : vector<32x1xf32> to vector<32x128xf32>
    %207 = arith.subf %192, %206 : vector<32x128xf32>
    %cst_66 = arith.constant 9.99999974E-6 : f32
    %208 = vector.broadcast %cst_66 : f32 to vector<32x1xf32>
    %209 = arith.addf %205, %208 : vector<32x1xf32>
    %210 = math.rsqrt %209 : vector<32x1xf32>
    %211 = vector.broadcast %210 : vector<32x1xf32> to vector<32x128xf32>
    %212 = arith.mulf %207, %211 : vector<32x128xf32>
    %213 = vector.broadcast %193 : vector<1x128xf32> to vector<32x128xf32>
    %214 = arith.mulf %212, %213 : vector<32x128xf32>
    %215 = vector.broadcast %194 : vector<1x128xf32> to vector<32x128xf32>
    %216 = arith.addf %214, %215 : vector<32x128xf32>
    %217 = arith.truncf %216 : vector<32x128xf32> to vector<32x128xbf16>
    %c1 = arith.constant 1 : index
    %c0_67 = arith.constant 0 : index
    %c0_68 = arith.constant 0 : index
    %218 = vector.load %arg3[%c1, %c0_67, %c0_68] : memref<2x128x128xbf16, #tpu.memory_space<vmem>>, vector<1x128x128xbf16>
    %219 = vector.shape_cast %218 : vector<1x128x128xbf16> to vector<128x128xbf16>
    %cst_69 = arith.constant dense<0.000000e+00> : vector<32x128xf32>
    %220 = tpu.matmul %217, %219, %cst_69 {dimension_numbers = #tpu.dot_dimension_numbers<[1], [0], [0], [1], [0, 0, 1, 1], [], []>} : vector<32x128xbf16>, vector<128x128xbf16>, vector<32x128xf32> -> vector<32x128xf32>
    %221 = vector.extract_strided_slice %220 {offsets = [0, 0], sizes = [32, 8], strides = [1, 1]} : vector<32x128xf32> to vector<32x8xf32>
    %222 = vector.shape_cast %221 : vector<32x8xf32> to vector<2x16x8xf32>
    %223 = vector.extract_strided_slice %220 {offsets = [0, 32], sizes = [32, 8], strides = [1, 1]} : vector<32x128xf32> to vector<32x8xf32>
    %224 = vector.shape_cast %223 : vector<32x8xf32> to vector<2x16x8xf32>
    %225 = vector.extract_strided_slice %220 {offsets = [0, 64], sizes = [32, 8], strides = [1, 1]} : vector<32x128xf32> to vector<32x8xf32>
    %226 = vector.shape_cast %225 : vector<32x8xf32> to vector<2x16x8xf32>
    "tpu.trace_start"() <{level = 10 : i32, message = "bqd,bkd->bqk"}> : () -> ()
    %cst_70 = arith.constant dense<0.000000e+00> : vector<2x16x16xf32>
    %227 = tpu.matmul %222, %224, %cst_70 {dimension_numbers = #tpu.dot_dimension_numbers<[2], [2], [1], [1], [0, 0, 0, 1, 1, 1], [0], [0]>} : vector<2x16x8xf32>, vector<2x16x8xf32>, vector<2x16x16xf32> -> vector<2x16x16xf32>
    "tpu.trace_stop"() : () -> ()
    %cst_71 = arith.constant dense<0xFF800000> : vector<2x16xf32>
    %228 = vector.multi_reduction <maximumf>, %227, %cst_71 [2] : vector<2x16x16xf32> to vector<2x16xf32>
    %229 = vector.shape_cast %228 : vector<2x16xf32> to vector<2x16x1xf32>
    %230 = vector.broadcast %229 : vector<2x16x1xf32> to vector<2x16x16xf32>
    %231 = arith.subf %227, %230 : vector<2x16x16xf32>
    %232 = math.exp %231 : vector<2x16x16xf32>
    %cst_72 = arith.constant dense<0.000000e+00> : vector<2x16xf32>
    %233 = vector.multi_reduction <add>, %232, %cst_72 [2] : vector<2x16x16xf32> to vector<2x16xf32>
    %234 = vector.shape_cast %233 : vector<2x16xf32> to vector<2x16x1xf32>
    %235 = tpu.reciprocal %234 : vector<2x16x1xf32> -> vector<2x16x1xf32>
    %236 = vector.broadcast %235 : vector<2x16x1xf32> to vector<2x16x16xf32>
    %237 = arith.mulf %232, %236 : vector<2x16x16xf32>
    "tpu.trace_start"() <{level = 10 : i32, message = "bqk,bkd->bqd"}> : () -> ()
    %cst_73 = arith.constant dense<0.000000e+00> : vector<2x16x8xf32>
    %238 = tpu.matmul %237, %226, %cst_73 {dimension_numbers = #tpu.dot_dimension_numbers<[2], [1], [1], [2], [0, 0, 0, 1, 1, 2], [0], [0]>} : vector<2x16x16xf32>, vector<2x16x8xf32>, vector<2x16x8xf32> -> vector<2x16x8xf32>
    "tpu.trace_stop"() : () -> ()
    %239 = vector.extract_strided_slice %220 {offsets = [0, 8], sizes = [32, 8], strides = [1, 1]} : vector<32x128xf32> to vector<32x8xf32>
    %240 = vector.shape_cast %239 : vector<32x8xf32> to vector<2x16x8xf32>
    %241 = vector.extract_strided_slice %220 {offsets = [0, 40], sizes = [32, 8], strides = [1, 1]} : vector<32x128xf32> to vector<32x8xf32>
    %242 = vector.shape_cast %241 : vector<32x8xf32> to vector<2x16x8xf32>
    %243 = vector.extract_strided_slice %220 {offsets = [0, 72], sizes = [32, 8], strides = [1, 1]} : vector<32x128xf32> to vector<32x8xf32>
    %244 = vector.shape_cast %243 : vector<32x8xf32> to vector<2x16x8xf32>
    "tpu.trace_start"() <{level = 10 : i32, message = "bqd,bkd->bqk"}> : () -> ()
    %cst_74 = arith.constant dense<0.000000e+00> : vector<2x16x16xf32>
    %245 = tpu.matmul %240, %242, %cst_74 {dimension_numbers = #tpu.dot_dimension_numbers<[2], [2], [1], [1], [0, 0, 0, 1, 1, 1], [0], [0]>} : vector<2x16x8xf32>, vector<2x16x8xf32>, vector<2x16x16xf32> -> vector<2x16x16xf32>
    "tpu.trace_stop"() : () -> ()
    %cst_75 = arith.constant dense<0xFF800000> : vector<2x16xf32>
    %246 = vector.multi_reduction <maximumf>, %245, %cst_75 [2] : vector<2x16x16xf32> to vector<2x16xf32>
    %247 = vector.shape_cast %246 : vector<2x16xf32> to vector<2x16x1xf32>
    %248 = vector.broadcast %247 : vector<2x16x1xf32> to vector<2x16x16xf32>
    %249 = arith.subf %245, %248 : vector<2x16x16xf32>
    %250 = math.exp %249 : vector<2x16x16xf32>
    %cst_76 = arith.constant dense<0.000000e+00> : vector<2x16xf32>
    %251 = vector.multi_reduction <add>, %250, %cst_76 [2] : vector<2x16x16xf32> to vector<2x16xf32>
    %252 = vector.shape_cast %251 : vector<2x16xf32> to vector<2x16x1xf32>
    %253 = tpu.reciprocal %252 : vector<2x16x1xf32> -> vector<2x16x1xf32>
    %254 = vector.broadcast %253 : vector<2x16x1xf32> to vector<2x16x16xf32>
    %255 = arith.mulf %250, %254 : vector<2x16x16xf32>
    "tpu.trace_start"() <{level = 10 : i32, message = "bqk,bkd->bqd"}> : () -> ()
    %cst_77 = arith.constant dense<0.000000e+00> : vector<2x16x8xf32>
    %256 = tpu.matmul %255, %244, %cst_77 {dimension_numbers = #tpu.dot_dimension_numbers<[2], [1], [1], [2], [0, 0, 0, 1, 1, 2], [0], [0]>} : vector<2x16x16xf32>, vector<2x16x8xf32>, vector<2x16x8xf32> -> vector<2x16x8xf32>
    "tpu.trace_stop"() : () -> ()
    %257 = vector.extract_strided_slice %220 {offsets = [0, 16], sizes = [32, 8], strides = [1, 1]} : vector<32x128xf32> to vector<32x8xf32>
    %258 = vector.shape_cast %257 : vector<32x8xf32> to vector<2x16x8xf32>
    %259 = vector.extract_strided_slice %220 {offsets = [0, 48], sizes = [32, 8], strides = [1, 1]} : vector<32x128xf32> to vector<32x8xf32>
    %260 = vector.shape_cast %259 : vector<32x8xf32> to vector<2x16x8xf32>
    %261 = vector.extract_strided_slice %220 {offsets = [0, 80], sizes = [32, 8], strides = [1, 1]} : vector<32x128xf32> to vector<32x8xf32>
    %262 = vector.shape_cast %261 : vector<32x8xf32> to vector<2x16x8xf32>
    "tpu.trace_start"() <{level = 10 : i32, message = "bqd,bkd->bqk"}> : () -> ()
    %cst_78 = arith.constant dense<0.000000e+00> : vector<2x16x16xf32>
    %263 = tpu.matmul %258, %260, %cst_78 {dimension_numbers = #tpu.dot_dimension_numbers<[2], [2], [1], [1], [0, 0, 0, 1, 1, 1], [0], [0]>} : vector<2x16x8xf32>, vector<2x16x8xf32>, vector<2x16x16xf32> -> vector<2x16x16xf32>
    "tpu.trace_stop"() : () -> ()
    %cst_79 = arith.constant dense<0xFF800000> : vector<2x16xf32>
    %264 = vector.multi_reduction <maximumf>, %263, %cst_79 [2] : vector<2x16x16xf32> to vector<2x16xf32>
    %265 = vector.shape_cast %264 : vector<2x16xf32> to vector<2x16x1xf32>
    %266 = vector.broadcast %265 : vector<2x16x1xf32> to vector<2x16x16xf32>
    %267 = arith.subf %263, %266 : vector<2x16x16xf32>
    %268 = math.exp %267 : vector<2x16x16xf32>
    %cst_80 = arith.constant dense<0.000000e+00> : vector<2x16xf32>
    %269 = vector.multi_reduction <add>, %268, %cst_80 [2] : vector<2x16x16xf32> to vector<2x16xf32>
    %270 = vector.shape_cast %269 : vector<2x16xf32> to vector<2x16x1xf32>
    %271 = tpu.reciprocal %270 : vector<2x16x1xf32> -> vector<2x16x1xf32>
    %272 = vector.broadcast %271 : vector<2x16x1xf32> to vector<2x16x16xf32>
    %273 = arith.mulf %268, %272 : vector<2x16x16xf32>
    "tpu.trace_start"() <{level = 10 : i32, message = "bqk,bkd->bqd"}> : () -> ()
    %cst_81 = arith.constant dense<0.000000e+00> : vector<2x16x8xf32>
    %274 = tpu.matmul %273, %262, %cst_81 {dimension_numbers = #tpu.dot_dimension_numbers<[2], [1], [1], [2], [0, 0, 0, 1, 1, 2], [0], [0]>} : vector<2x16x16xf32>, vector<2x16x8xf32>, vector<2x16x8xf32> -> vector<2x16x8xf32>
    "tpu.trace_stop"() : () -> ()
    %275 = vector.extract_strided_slice %220 {offsets = [0, 24], sizes = [32, 8], strides = [1, 1]} : vector<32x128xf32> to vector<32x8xf32>
    %276 = vector.shape_cast %275 : vector<32x8xf32> to vector<2x16x8xf32>
    %277 = vector.extract_strided_slice %220 {offsets = [0, 56], sizes = [32, 8], strides = [1, 1]} : vector<32x128xf32> to vector<32x8xf32>
    %278 = vector.shape_cast %277 : vector<32x8xf32> to vector<2x16x8xf32>
    %279 = vector.extract_strided_slice %220 {offsets = [0, 88], sizes = [32, 8], strides = [1, 1]} : vector<32x128xf32> to vector<32x8xf32>
    %280 = vector.shape_cast %279 : vector<32x8xf32> to vector<2x16x8xf32>
    "tpu.trace_start"() <{level = 10 : i32, message = "bqd,bkd->bqk"}> : () -> ()
    %cst_82 = arith.constant dense<0.000000e+00> : vector<2x16x16xf32>
    %281 = tpu.matmul %276, %278, %cst_82 {dimension_numbers = #tpu.dot_dimension_numbers<[2], [2], [1], [1], [0, 0, 0, 1, 1, 1], [0], [0]>} : vector<2x16x8xf32>, vector<2x16x8xf32>, vector<2x16x16xf32> -> vector<2x16x16xf32>
    "tpu.trace_stop"() : () -> ()
    %cst_83 = arith.constant dense<0xFF800000> : vector<2x16xf32>
    %282 = vector.multi_reduction <maximumf>, %281, %cst_83 [2] : vector<2x16x16xf32> to vector<2x16xf32>
    %283 = vector.shape_cast %282 : vector<2x16xf32> to vector<2x16x1xf32>
    %284 = vector.broadcast %283 : vector<2x16x1xf32> to vector<2x16x16xf32>
    %285 = arith.subf %281, %284 : vector<2x16x16xf32>
    %286 = math.exp %285 : vector<2x16x16xf32>
    %cst_84 = arith.constant dense<0.000000e+00> : vector<2x16xf32>
    %287 = vector.multi_reduction <add>, %286, %cst_84 [2] : vector<2x16x16xf32> to vector<2x16xf32>
    %288 = vector.shape_cast %287 : vector<2x16xf32> to vector<2x16x1xf32>
    %289 = tpu.reciprocal %288 : vector<2x16x1xf32> -> vector<2x16x1xf32>
    %290 = vector.broadcast %289 : vector<2x16x1xf32> to vector<2x16x16xf32>
    %291 = arith.mulf %286, %290 : vector<2x16x16xf32>
    "tpu.trace_start"() <{level = 10 : i32, message = "bqk,bkd->bqd"}> : () -> ()
    %cst_85 = arith.constant dense<0.000000e+00> : vector<2x16x8xf32>
    %292 = tpu.matmul %291, %280, %cst_85 {dimension_numbers = #tpu.dot_dimension_numbers<[2], [1], [1], [2], [0, 0, 0, 1, 1, 2], [0], [0]>} : vector<2x16x16xf32>, vector<2x16x8xf32>, vector<2x16x8xf32> -> vector<2x16x8xf32>
    "tpu.trace_stop"() : () -> ()
    %293 = tpu.concatenate %238, %256, %274, %292 in 2 : vector<2x16x8xf32>, vector<2x16x8xf32>, vector<2x16x8xf32>, vector<2x16x8xf32> -> vector<2x16x32xf32>
    %294 = vector.shape_cast %293 : vector<2x16x32xf32> to vector<32x32xf32>
    %295 = arith.truncf %294 : vector<32x32xf32> to vector<32x32xbf16>
    %c1_86 = arith.constant 1 : index
    %c0_87 = arith.constant 0 : index
    %c0_88 = arith.constant 0 : index
    %296 = vector.load %arg4[%c1_86, %c0_87, %c0_88] : memref<2x32x128xbf16, #tpu.memory_space<vmem>>, vector<1x32x128xbf16>
    %297 = vector.shape_cast %296 : vector<1x32x128xbf16> to vector<32x128xbf16>
    %cst_89 = arith.constant dense<0.000000e+00> : vector<32x128xf32>
    %298 = tpu.matmul %295, %297, %cst_89 {dimension_numbers = #tpu.dot_dimension_numbers<[1], [0], [0], [1], [0, 0, 1, 1], [], []>} : vector<32x32xbf16>, vector<32x128xbf16>, vector<32x128xf32> -> vector<32x128xf32>
    %299 = vector.extract_strided_slice %0 {offsets = [8, 0], sizes = [1, 128], strides = [1, 1]} : vector<14x128xf32> to vector<1x128xf32>
    %300 = vector.broadcast %299 : vector<1x128xf32> to vector<32x128xf32>
    %301 = arith.addf %298, %300 : vector<32x128xf32>
    %302 = arith.addf %192, %301 : vector<32x128xf32>
    %303 = vector.extract_strided_slice %0 {offsets = [9, 0], sizes = [1, 128], strides = [1, 1]} : vector<14x128xf32> to vector<1x128xf32>
    %304 = vector.extract_strided_slice %0 {offsets = [10, 0], sizes = [1, 128], strides = [1, 1]} : vector<14x128xf32> to vector<1x128xf32>
    %cst_90 = arith.constant dense<0.000000e+00> : vector<32xf32>
    %305 = vector.multi_reduction <add>, %302, %cst_90 [1] : vector<32x128xf32> to vector<32xf32>
    %306 = vector.shape_cast %305 : vector<32xf32> to vector<32x1xf32>
    %cst_91 = arith.constant 3.125000e-02 : f32
    %307 = vector.broadcast %cst_91 : f32 to vector<32x1xf32>
    %308 = arith.mulf %306, %307 : vector<32x1xf32>
    %309 = arith.mulf %302, %302 : vector<32x128xf32>
    %cst_92 = arith.constant dense<0.000000e+00> : vector<32xf32>
    %310 = vector.multi_reduction <add>, %309, %cst_92 [1] : vector<32x128xf32> to vector<32xf32>
    %311 = vector.shape_cast %310 : vector<32xf32> to vector<32x1xf32>
    %cst_93 = arith.constant 3.125000e-02 : f32
    %312 = vector.broadcast %cst_93 : f32 to vector<32x1xf32>
    %313 = arith.mulf %311, %312 : vector<32x1xf32>
    %314 = arith.mulf %308, %308 : vector<32x1xf32>
    %315 = arith.subf %313, %314 : vector<32x1xf32>
    %316 = vector.broadcast %308 : vector<32x1xf32> to vector<32x128xf32>
    %317 = arith.subf %302, %316 : vector<32x128xf32>
    %cst_94 = arith.constant 9.99999974E-6 : f32
    %318 = vector.broadcast %cst_94 : f32 to vector<32x1xf32>
    %319 = arith.addf %315, %318 : vector<32x1xf32>
    %320 = math.rsqrt %319 : vector<32x1xf32>
    %321 = vector.broadcast %320 : vector<32x1xf32> to vector<32x128xf32>
    %322 = arith.mulf %317, %321 : vector<32x128xf32>
    %323 = vector.broadcast %303 : vector<1x128xf32> to vector<32x128xf32>
    %324 = arith.mulf %322, %323 : vector<32x128xf32>
    %325 = vector.broadcast %304 : vector<1x128xf32> to vector<32x128xf32>
    %326 = arith.addf %324, %325 : vector<32x128xf32>
    %327 = arith.truncf %326 : vector<32x128xf32> to vector<32x128xbf16>
    %c1_95 = arith.constant 1 : index
    %c0_96 = arith.constant 0 : index
    %c0_97 = arith.constant 0 : index
    %328 = vector.load %arg5[%c1_95, %c0_96, %c0_97] : memref<2x128x128xbf16, #tpu.memory_space<vmem>>, vector<1x128x128xbf16>
    %329 = vector.shape_cast %328 : vector<1x128x128xbf16> to vector<128x128xbf16>
    %cst_98 = arith.constant dense<0.000000e+00> : vector<32x128xf32>
    %330 = tpu.matmul %327, %329, %cst_98 {dimension_numbers = #tpu.dot_dimension_numbers<[1], [0], [0], [1], [0, 0, 1, 1], [], []>} : vector<32x128xbf16>, vector<128x128xbf16>, vector<32x128xf32> -> vector<32x128xf32>
    %331 = vector.extract_strided_slice %1 {offsets = [1, 0], sizes = [1, 128], strides = [1, 1]} : vector<2x128xf32> to vector<1x128xf32>
    %332 = vector.broadcast %331 : vector<1x128xf32> to vector<32x128xf32>
    %333 = arith.addf %330, %332 : vector<32x128xf32>
    %cst_99 = arith.constant 0.707106769 : f32
    %334 = vector.broadcast %cst_99 : f32 to vector<32x128xf32>
    %335 = arith.mulf %333, %334 : vector<32x128xf32>
    %336 = math.absf %335 : vector<32x128xf32>
    %cst_100 = arith.constant 0.327591091 : f32
    %337 = vector.broadcast %cst_100 : f32 to vector<32x128xf32>
    %338 = arith.mulf %337, %336 : vector<32x128xf32>
    %cst_101 = arith.constant 1.000000e+00 : f32
    %339 = vector.broadcast %cst_101 : f32 to vector<32x128xf32>
    %340 = arith.addf %339, %338 : vector<32x128xf32>
    %cst_102 = arith.constant 1.000000e+00 : f32
    %341 = vector.broadcast %cst_102 : f32 to vector<32x128xf32>
    %342 = arith.divf %341, %340 : vector<32x128xf32>
    %cst_103 = arith.constant 1.06140542 : f32
    %343 = vector.broadcast %cst_103 : f32 to vector<32x128xf32>
    %344 = arith.mulf %343, %342 : vector<32x128xf32>
    %cst_104 = arith.constant 1.45315206 : f32
    %345 = vector.broadcast %cst_104 : f32 to vector<32x128xf32>
    %346 = arith.subf %344, %345 : vector<32x128xf32>
    %347 = arith.mulf %346, %342 : vector<32x128xf32>
    %cst_105 = arith.constant 1.42141378 : f32
    %348 = vector.broadcast %cst_105 : f32 to vector<32x128xf32>
    %349 = arith.addf %347, %348 : vector<32x128xf32>
    %350 = arith.mulf %349, %342 : vector<32x128xf32>
    %cst_106 = arith.constant 0.284496725 : f32
    %351 = vector.broadcast %cst_106 : f32 to vector<32x128xf32>
    %352 = arith.subf %350, %351 : vector<32x128xf32>
    %353 = arith.mulf %352, %342 : vector<32x128xf32>
    %cst_107 = arith.constant 0.254829586 : f32
    %354 = vector.broadcast %cst_107 : f32 to vector<32x128xf32>
    %355 = arith.addf %353, %354 : vector<32x128xf32>
    %356 = arith.mulf %355, %342 : vector<32x128xf32>
    %cst_108 = arith.constant 0.000000e+00 : f32
    %357 = vector.broadcast %cst_108 : f32 to vector<32x128xf32>
    %358 = arith.subf %357, %336 : vector<32x128xf32>
    %359 = arith.mulf %358, %336 : vector<32x128xf32>
    %360 = math.exp %359 : vector<32x128xf32>
    %361 = arith.mulf %356, %360 : vector<32x128xf32>
    %cst_109 = arith.constant 1.000000e+00 : f32
    %362 = vector.broadcast %cst_109 : f32 to vector<32x128xf32>
    %363 = arith.subf %362, %361 : vector<32x128xf32>
    %cst_110 = arith.constant 0.000000e+00 : f32
    %364 = vector.broadcast %cst_110 : f32 to vector<32x128xf32>
    %365 = arith.cmpf oge, %335, %364 : vector<32x128xf32>
    %cst_111 = arith.constant 0.000000e+00 : f32
    %366 = vector.broadcast %cst_111 : f32 to vector<32x128xf32>
    %367 = arith.subf %366, %363 : vector<32x128xf32>
    %368 = arith.select %365, %363, %367 : vector<32x128xi1>, vector<32x128xf32>
    %cst_112 = arith.constant 5.000000e-01 : f32
    %369 = vector.broadcast %cst_112 : f32 to vector<32x128xf32>
    %370 = arith.mulf %369, %333 : vector<32x128xf32>
    %cst_113 = arith.constant 1.000000e+00 : f32
    %371 = vector.broadcast %cst_113 : f32 to vector<32x128xf32>
    %372 = arith.addf %371, %368 : vector<32x128xf32>
    %373 = arith.mulf %370, %372 : vector<32x128xf32>
    %374 = arith.truncf %373 : vector<32x128xf32> to vector<32x128xbf16>
    %c1_114 = arith.constant 1 : index
    %c0_115 = arith.constant 0 : index
    %c0_116 = arith.constant 0 : index
    %375 = vector.load %arg6[%c1_114, %c0_115, %c0_116] : memref<2x128x128xbf16, #tpu.memory_space<vmem>>, vector<1x128x128xbf16>
    %376 = vector.shape_cast %375 : vector<1x128x128xbf16> to vector<128x128xbf16>
    %cst_117 = arith.constant dense<0.000000e+00> : vector<32x128xf32>
    %377 = tpu.matmul %374, %376, %cst_117 {dimension_numbers = #tpu.dot_dimension_numbers<[1], [0], [0], [1], [0, 0, 1, 1], [], []>} : vector<32x128xbf16>, vector<128x128xbf16>, vector<32x128xf32> -> vector<32x128xf32>
    %378 = vector.extract_strided_slice %0 {offsets = [11, 0], sizes = [1, 128], strides = [1, 1]} : vector<14x128xf32> to vector<1x128xf32>
    %379 = vector.broadcast %378 : vector<1x128xf32> to vector<32x128xf32>
    %380 = arith.addf %377, %379 : vector<32x128xf32>
    %381 = arith.addf %302, %380 : vector<32x128xf32>
    %382 = vector.extract_strided_slice %0 {offsets = [12, 0], sizes = [1, 128], strides = [1, 1]} : vector<14x128xf32> to vector<1x128xf32>
    %383 = vector.extract_strided_slice %0 {offsets = [13, 0], sizes = [1, 128], strides = [1, 1]} : vector<14x128xf32> to vector<1x128xf32>
    %cst_118 = arith.constant dense<0.000000e+00> : vector<32xf32>
    %384 = vector.multi_reduction <add>, %381, %cst_118 [1] : vector<32x128xf32> to vector<32xf32>
    %385 = vector.shape_cast %384 : vector<32xf32> to vector<32x1xf32>
    %cst_119 = arith.constant 3.125000e-02 : f32
    %386 = vector.broadcast %cst_119 : f32 to vector<32x1xf32>
    %387 = arith.mulf %385, %386 : vector<32x1xf32>
    %388 = arith.mulf %381, %381 : vector<32x128xf32>
    %cst_120 = arith.constant dense<0.000000e+00> : vector<32xf32>
    %389 = vector.multi_reduction <add>, %388, %cst_120 [1] : vector<32x128xf32> to vector<32xf32>
    %390 = vector.shape_cast %389 : vector<32xf32> to vector<32x1xf32>
    %cst_121 = arith.constant 3.125000e-02 : f32
    %391 = vector.broadcast %cst_121 : f32 to vector<32x1xf32>
    %392 = arith.mulf %390, %391 : vector<32x1xf32>
    %393 = arith.mulf %387, %387 : vector<32x1xf32>
    %394 = arith.subf %392, %393 : vector<32x1xf32>
    %395 = vector.broadcast %387 : vector<32x1xf32> to vector<32x128xf32>
    %396 = arith.subf %381, %395 : vector<32x128xf32>
    %cst_122 = arith.constant 9.99999974E-6 : f32
    %397 = vector.broadcast %cst_122 : f32 to vector<32x1xf32>
    %398 = arith.addf %394, %397 : vector<32x1xf32>
    %399 = math.rsqrt %398 : vector<32x1xf32>
    %400 = vector.broadcast %399 : vector<32x1xf32> to vector<32x128xf32>
    %401 = arith.mulf %396, %400 : vector<32x128xf32>
    %402 = vector.broadcast %382 : vector<1x128xf32> to vector<32x128xf32>
    %403 = arith.mulf %401, %402 : vector<32x128xf32>
    %404 = vector.broadcast %383 : vector<1x128xf32> to vector<32x128xf32>
    %405 = arith.addf %403, %404 : vector<32x128xf32>
    %406 = vector.shape_cast %405 : vector<32x128xf32> to vector<2x16x128xf32>
    %c0_123 = arith.constant 0 : index
    %c0_124 = arith.constant 0 : index
    %c0_125 = arith.constant 0 : index
    %407 = vector.load %arg7[%c0_123, %c0_124, %c0_125] : memref<2x16x128xf32, #tpu.memory_space<vmem>>, vector<2x16x128xf32>
    tpu.vector_store %arg7[%c0_123, %c0_124, %c0_125], %406 {strides = array<i32>} : memref<2x16x128xf32, #tpu.memory_space<vmem>>, vector<2x16x128xf32>,
    return
  }
}

</mosaic_0001>

<llo_original>
// kernel: spa_transformer_block.1
$region0: #{spa_transformer_block.1}
  #allocation0 [shape = 'u32[]', space=smem, size = 0x4, offset = 0x4, fixed_abs, tag = 'smem constant byte address 0x4 - core index']
  #allocation1 [shape = 'u32[144,128]{1,0:T(1,128)}', space=vmem, size = 0x12000, scoped, tag = 'internal scratch']
  %s0 = inlined_call_operand.hbm [shape: f32[2,16,128], index: 0, kind: input, shape index: {}]
  %s1 = inlined_call_operand.hbm [shape: f32[14,128], index: 1, kind: input, shape index: {}]
  %s2 = inlined_call_operand.hbm [shape: f32[2,128], index: 2, kind: input, shape index: {}]
  %s3 = inlined_call_operand.hbm [shape: bf16[2,128,128], index: 3, kind: input, shape index: {}]
  %s4 = inlined_call_operand.hbm [shape: bf16[2,32,128], index: 4, kind: input, shape index: {}]
  %s5 = inlined_call_operand.hbm [shape: bf16[2,128,128], index: 5, kind: input, shape index: {}]
  %s6 = inlined_call_operand.hbm [shape: bf16[2,128,128], index: 6, kind: input, shape index: {}]
  %s7 = inlined_call_operand.hbm [shape: f32[2,16,128], index: 7, kind: output, shape index: {}]
  %s8 = sld [smem:[#allocation0]]
  $region66: #{spa_transformer_block.1} parent=0
    _
  %s10 = ssub.s32 1, %s8
  %s11 = scalar_select 0, %s10, %s8
  $region1: #{spa_transformer_block.1} parent=0
    #allocation2 [shape = 'u8[16384]{0}', space=vmem, size = 0x4000, scoped, tag = 'input window, operand 0, single buffered']
    #allocation3 [shape = 's32[1]{0}', space=sflag, size = 0x4, scoped, tag = 'scoped memory for spa_transformer_block.1']
    #allocation4 [shape = 's32[1]{0}', space=sflag, size = 0x4, scoped, tag = 'scoped memory for spa_transformer_block.1']
    #allocation5 [shape = 'u8[8192]{0}', space=vmem, size = 0x2000, scoped, tag = 'input window, operand 1, single buffered']
    #allocation6 [shape = 's32[1]{0}', space=sflag, size = 0x4, scoped, tag = 'scoped memory for spa_transformer_block.1']
    #allocation7 [shape = 'u8[1024]{0}', space=vmem, size = 0x400, scoped, tag = 'input window, operand 2, single buffered']
    #allocation8 [shape = 'u8[65536]{0}', space=vmem, size = 0x10000, scoped, tag = 'input window, operand 3, single buffered']
    #allocation9 [shape = 's32[1]{0}', space=sflag, size = 0x4, scoped, tag = 'scoped memory for spa_transformer_block.1']
    #allocation10 [shape = 'u8[16384]{0}', space=vmem, size = 0x4000, scoped, tag = 'input window, operand 4, single buffered']
    #allocation11 [shape = 'u8[65536]{0}', space=vmem, size = 0x10000, scoped, tag = 'input window, operand 5, single buffered']
    #allocation12 [shape = 's32[1]{0}', space=sflag, size = 0x4, scoped, tag = 'scoped memory for spa_transformer_block.1']
    #allocation13 [shape = 'u8[65536]{0}', space=vmem, size = 0x10000, scoped, tag = 'input window, operand 6, single buffered']
    #allocation14 [shape = 'u8[16384]{0}', space=vmem, size = 0x4000, scoped, tag = 'output window, operand 0, single buffered']
    %12 = vsyncpa [#allocation3], 0
    %13 = vsyncpa [#allocation6], 0
    %14 = vsyncpa [#allocation9], 0
    %15 = vsyncpa [#allocation12], 0
    %16 = vsyncpa [#allocation4], 0
    // Predicated region
    $region2: #{spa_transformer_block.1} parent=1 // pred_check
      _
    $region3: #{spa_transformer_block.1} parent=1 // pred_check_branch
      %18 = sbr.rel (0) target = $region5
    $region4: #{spa_transformer_block.1} parent=1 // pred_region
      %s20 = ssub.s32 512, 512
      %21 = vsyncadd [#allocation3], %s20
      %s22 = sshll.u32 [#allocation2], 4
      %s23 = int_to_ptr.vmem [resolvable:$true] %s22
      %28 = dma.hbm_to_vmem [thread:$0]  %s0, 512, %s23, [#allocation3], 128, 128, 8
    $region5: #{spa_transformer_block.1} parent=1 // pred_fallthru
      _
    // Predicated region
    $region6: #{spa_transformer_block.1} parent=1 // pred_check
      _
    $region7: #{spa_transformer_block.1} parent=1 // pred_check_branch
      %30 = sbr.rel (0) target = $region9
    $region8: #{spa_transformer_block.1} parent=1 // pred_region
      %s32 = ssub.s32 256, 256
      %33 = vsyncadd [#allocation6], %s32
      %s34 = sshll.u32 [#allocation5], 4
      %s35 = int_to_ptr.vmem [resolvable:$true] %s34
      %40 = dma.hbm_to_vmem [thread:$0]  %s1, 256, %s35, [#allocation6], 128, 128, 8
    $region9: #{spa_transformer_block.1} parent=1 // pred_fallthru
      _
    // Predicated region
    $region10: #{spa_transformer_block.1} parent=1 // pred_check
      _
    $region11: #{spa_transformer_block.1} parent=1 // pred_check_branch
      %42 = sbr.rel (0) target = $region13
    $region12: #{spa_transformer_block.1} parent=1 // pred_region
      %s44 = ssub.s32 32, 32
      %45 = vsyncadd [#allocation6], %s44
      %s47 = sshll.u32 [#allocation7], 4
      %s48 = int_to_ptr.vmem [resolvable:$true] %s47
      %50 = dma.hbm_to_vmem [thread:$0]  %s2, 32, %s48, [#allocation6]
    $region13: #{spa_transformer_block.1} parent=1 // pred_fallthru
      _
    // Predicated region
    $region14: #{spa_transformer_block.1} parent=1 // pred_check
      _
    $region15: #{spa_transformer_block.1} parent=1 // pred_check_branch
      %52 = sbr.rel (0) target = $region17
    $region16: #{spa_transformer_block.1} parent=1 // pred_region
      %s54 = ssub.s32 2048, 2048
      %55 = vsyncadd [#allocation9], %s54
      %s56 = sshll.u32 [#allocation8], 4
      %s57 = int_to_ptr.vmem [resolvable:$true] %s56
      %62 = dma.hbm_to_vmem [thread:$0]  %s3, 2048, %s57, [#allocation9], 64, 64, 4
    $region17: #{spa_transformer_block.1} parent=1 // pred_fallthru
      _
    // Predicated region
    $region18: #{spa_transformer_block.1} parent=1 // pred_check
      _
    $region19: #{spa_transformer_block.1} parent=1 // pred_check_branch
      %64 = sbr.rel (0) target = $region21
    $region20: #{spa_transformer_block.1} parent=1 // pred_region
      %s66 = ssub.s32 512, 512
      %67 = vsyncadd [#allocation9], %s66
      %s68 = sshll.u32 [#allocation10], 4
      %s69 = int_to_ptr.vmem [resolvable:$true] %s68
      %74 = dma.hbm_to_vmem [thread:$0]  %s4, 512, %s69, [#allocation9], 64, 64, 4
    $region21: #{spa_transformer_block.1} parent=1 // pred_fallthru
      _
    // Predicated region
    $region22: #{spa_transformer_block.1} parent=1 // pred_check
      _
    $region23: #{spa_transformer_block.1} parent=1 // pred_check_branch
      %76 = sbr.rel (0) target = $region25
    $region24: #{spa_transformer_block.1} parent=1 // pred_region
      %s78 = ssub.s32 2048, 2048
      %79 = vsyncadd [#allocation12], %s78
      %s80 = sshll.u32 [#allocation11], 4
      %s81 = int_to_ptr.vmem [resolvable:$true] %s80
      %86 = dma.hbm_to_vmem [thread:$0]  %s5, 2048, %s81, [#allocation12], 64, 64, 4
    $region25: #{spa_transformer_block.1} parent=1 // pred_fallthru
      _
    // Predicated region
    $region26: #{spa_transformer_block.1} parent=1 // pred_check
      _
    $region27: #{spa_transformer_block.1} parent=1 // pred_check_branch
      %88 = sbr.rel (0) target = $region29
    $region28: #{spa_transformer_block.1} parent=1 // pred_region
      %s90 = ssub.s32 2048, 2048
      %91 = vsyncadd [#allocation12], %s90
      %s92 = sshll.u32 [#allocation13], 4
      %s93 = int_to_ptr.vmem [resolvable:$true] %s92
      %98 = dma.hbm_to_vmem [thread:$0]  %s6, 2048, %s93, [#allocation12], 64, 64, 4
    $region29: #{spa_transformer_block.1} parent=1 // pred_fallthru
      _
    // Predicated region
    $region30: #{spa_transformer_block.1} parent=1 // pred_check
      _
    $region31: #{spa_transformer_block.1} parent=1 // pred_check_branch
      %100 = sbr.rel (0) target = $region33
    $region32: #{spa_transformer_block.1} parent=1 // pred_region
      %101 = dma.done [#allocation3], 512
    $region33: #{spa_transformer_block.1} parent=1 // pred_fallthru
      _
    // Predicated region
    $region34: #{spa_transformer_block.1} parent=1 // pred_check
      _
    $region35: #{spa_transformer_block.1} parent=1 // pred_check_branch
      %103 = sbr.rel (0) target = $region37
    $region36: #{spa_transformer_block.1} parent=1 // pred_region
      %104 = dma.done [#allocation6], 256
    $region37: #{spa_transformer_block.1} parent=1 // pred_fallthru
      _
    // Predicated region
    $region38: #{spa_transformer_block.1} parent=1 // pred_check
      _
    $region39: #{spa_transformer_block.1} parent=1 // pred_check_branch
      %106 = sbr.rel (0) target = $region41
    $region40: #{spa_transformer_block.1} parent=1 // pred_region
      %107 = dma.done [#allocation6], 32
    $region41: #{spa_transformer_block.1} parent=1 // pred_fallthru
      _
    // Predicated region
    $region42: #{spa_transformer_block.1} parent=1 // pred_check
      _
    $region43: #{spa_transformer_block.1} parent=1 // pred_check_branch
      %109 = sbr.rel (0) target = $region45
    $region44: #{spa_transformer_block.1} parent=1 // pred_region
      %110 = dma.done [#allocation9], 2048
    $region45: #{spa_transformer_block.1} parent=1 // pred_fallthru
      _
    // Predicated region
    $region46: #{spa_transformer_block.1} parent=1 // pred_check
      _
    $region47: #{spa_transformer_block.1} parent=1 // pred_check_branch
      %112 = sbr.rel (0) target = $region49
    $region48: #{spa_transformer_block.1} parent=1 // pred_region
      %113 = dma.done [#allocation9], 512
    $region49: #{spa_transformer_block.1} parent=1 // pred_fallthru
      _
    // Predicated region
    $region50: #{spa_transformer_block.1} parent=1 // pred_check
      _
    $region51: #{spa_transformer_block.1} parent=1 // pred_check_branch
      %115 = sbr.rel (0) target = $region53
    $region52: #{spa_transformer_block.1} parent=1 // pred_region
      %116 = dma.done [#allocation12], 2048
    $region53: #{spa_transformer_block.1} parent=1 // pred_fallthru
      _
    // Predicated region
    $region54: #{spa_transformer_block.1} parent=1 // pred_check
      _
    $region55: #{spa_transformer_block.1} parent=1 // pred_check_branch
      %118 = sbr.rel (0) target = $region57
    $region56: #{spa_transformer_block.1} parent=1 // pred_region
      %119 = dma.done [#allocation12], 2048
    $region57: #{spa_transformer_block.1} parent=1 // pred_fallthru
      _
    %v121 = vld [vmem:[#allocation5] sm:$0xff]
    %v122 = vld [vmem:[#allocation5 + $0x8] sm:$0x3f]
    %v123 = vld [vmem:[#allocation7] sm:$0x3]
    %v124 = vld [vmem:[#allocation2] sm:$0xff]
    %v125 = vld [vmem:[#allocation2 + $0x8] sm:$0xff]
    %v126 = vld [vmem:[#allocation2 + $0x10] sm:$0xff]
    %v127 = vld [vmem:[#allocation2 + $0x18] sm:$0xff]
    %128 = vadd.xlane.f32.xlu0 %v124
    %v129 = vpop.xlane.xlu0 %128
    %130 = vadd.xlane.f32.xlu0 %v125
    %v131 = vpop.xlane.xlu0 %130
    %132 = vadd.xlane.f32.xlu0 %v126
    %v133 = vpop.xlane.xlu0 %132
    %134 = vadd.xlane.f32.xlu0 %v127
    %v135 = vpop.xlane.xlu0 %134
    %v136 = vmul.f32 %v129, 0.03125
    %v137 = vmul.f32 %v131, 0.03125
    %v138 = vmul.f32 %v133, 0.03125
    %v139 = vmul.f32 %v135, 0.03125
    %v140 = vmul.f32 %v124, %v124
    %v141 = vmul.f32 %v125, %v125
    %v142 = vmul.f32 %v126, %v126
    %v143 = vmul.f32 %v127, %v127
    %144 = vadd.xlane.f32.xlu0 %v140
    %v145 = vpop.xlane.xlu0 %144
    %146 = vadd.xlane.f32.xlu0 %v141
    %v147 = vpop.xlane.xlu0 %146
    %148 = vadd.xlane.f32.xlu0 %v142
    %v149 = vpop.xlane.xlu0 %148
    %150 = vadd.xlane.f32.xlu0 %v143
    %v151 = vpop.xlane.xlu0 %150
    %v152 = vmul.f32 %v145, 0.03125
    %v153 = vmul.f32 %v147, 0.03125
    %v154 = vmul.f32 %v149, 0.03125
    %v155 = vmul.f32 %v151, 0.03125
    %v156 = vmul.f32 %v136, %v136
    %v157 = vmul.f32 %v137, %v137
    %v158 = vmul.f32 %v138, %v138
    %v159 = vmul.f32 %v139, %v139
    %v160 = vsub.f32 %v152, %v156
    %v161 = vsub.f32 %v153, %v157
    %v162 = vsub.f32 %v154, %v158
    %v163 = vsub.f32 %v155, %v159
    %v164 = vsub.f32 %v124, %v136
    %v165 = vsub.f32 %v125, %v137
    %v166 = vsub.f32 %v126, %v138
    %v167 = vsub.f32 %v127, %v139
    %v168 = vadd.f32 %v160, 1e-05
    %v169 = vadd.f32 %v161, 1e-05
    %v170 = vadd.f32 %v162, 1e-05
    %v171 = vadd.f32 %v163, 1e-05
    %v172 = vrsqrt.pop %v168
    %v173 = vrsqrt.pop %v169
    %v174 = vrsqrt.pop %v170
    %v175 = vrsqrt.pop %v171
    %v176 = vmul.f32 %v164, %v172
    %v177 = vmul.f32 %v165, %v173
    %v178 = vmul.f32 %v166, %v174
    %v179 = vmul.f32 %v167, %v175
    %v180 = vlaneseq
    %v181 = vshrl.u32 %v180, 7
    %v182 = vsub.s32 0, %v181
    %v183 = vrot.slane %v121, %v182
    %v184 = vmul.f32 %v176, %v183
    %v185 = vmul.f32 %v177, %v183
    %v186 = vmul.f32 %v178, %v183
    %v187 = vmul.f32 %v179, %v183
    %v188 = vlaneseq
    %v189 = vshrl.u32 %v188, 7
    %v190 = vsub.s32 1, %v189
    %v191 = vrot.slane %v121, %v190
    %v192 = vadd.f32 %v184, %v191
    %v193 = vadd.f32 %v185, %v191
    %v194 = vadd.f32 %v186, %v191
    %v195 = vadd.f32 %v187, %v191
    %v196 = vpack.c.bf16 %v193, %v192
    %v197 = vpack.c.bf16 %v195, %v194
    %v198 = vld [vmem:[#allocation8] sm:$0xf]
    %v199 = vld [vmem:[#allocation8 + $0x4] sm:$0xf]
    %v200 = vld [vmem:[#allocation8 + $0x8] sm:$0xf]
    %v201 = vld [vmem:[#allocation8 + $0xc] sm:$0xf]
    %v202 = vld [vmem:[#allocation8 + $0x10] sm:$0xf]
    %v203 = vld [vmem:[#allocation8 + $0x14] sm:$0xf]
    %v204 = vld [vmem:[#allocation8 + $0x18] sm:$0xf]
    %v205 = vld [vmem:[#allocation8 + $0x1c] sm:$0xf]
    %v206 = vld [vmem:[#allocation8 + $0x20] sm:$0xf]
    %v207 = vld [vmem:[#allocation8 + $0x24] sm:$0xf]
    %v208 = vld [vmem:[#allocation8 + $0x28] sm:$0xf]
    %v209 = vld [vmem:[#allocation8 + $0x2c] sm:$0xf]
    %v210 = vld [vmem:[#allocation8 + $0x30] sm:$0xf]
    %v211 = vld [vmem:[#allocation8 + $0x34] sm:$0xf]
    %v212 = vld [vmem:[#allocation8 + $0x38] sm:$0xf]
    %v213 = vld [vmem:[#allocation8 + $0x3c] sm:$0xf]
    %v230 = vunpack.c.l.b16 %v198
    %v231 = vunpack.c.l.b16 %v199
    %v232 = vunpack.c.l.b16 %v200
    %v233 = vunpack.c.l.b16 %v201
    %v234 = vunpack.c.l.b16 %v202
    %v235 = vunpack.c.l.b16 %v203
    %v236 = vunpack.c.l.b16 %v204
    %v237 = vunpack.c.l.b16 %v205
    %v238 = vunpack.c.l.b16 %v206
    %v239 = vunpack.c.l.b16 %v207
    %v240 = vunpack.c.l.b16 %v208
    %v241 = vunpack.c.l.b16 %v209
    %v242 = vunpack.c.l.b16 %v210
    %v243 = vunpack.c.l.b16 %v211
    %v244 = vunpack.c.l.b16 %v212
    %v245 = vunpack.c.l.b16 %v213
    %v246 = vpack.c.b16 %v231, %v230
    %v247 = vpack.c.b16 %v233, %v232
    %v248 = vpack.c.b16 %v235, %v234
    %v249 = vpack.c.b16 %v237, %v236
    %v250 = vpack.c.b16 %v239, %v238
    %v251 = vpack.c.b16 %v241, %v240
    %v252 = vpack.c.b16 %v243, %v242
    %v253 = vpack.c.b16 %v245, %v244
    %262 = vmatprep.subr.bf16.mxu0 0
    %263 = vmatpush1.bf16.msra.mxu0 %v246
    %264 = vmatprep.subr.bf16.mxu0 0
    %265 = vmatpush1.bf16.msra.mxu0 %v247
    %266 = vmatprep.subr.bf16.mxu0 0
    %267 = vmatpush1.bf16.msra.mxu0 %v248
    %268 = vmatprep.subr.bf16.mxu0 0
    %269 = vmatpush1.bf16.msra.mxu0 %v249
    %270 = vmatprep.subr.bf16.mxu0 0
    %271 = vmatpush1.bf16.msra.mxu0 %v250
    %272 = vmatprep.subr.bf16.mxu0 0
    %273 = vmatpush1.bf16.msra.mxu0 %v251
    %274 = vmatprep.subr.bf16.mxu0 0
    %275 = vmatpush1.bf16.msra.mxu0 %v252
    %276 = vmatprep.subr.bf16.mxu0 0
    %277 = vmatpush1.bf16.msra.mxu0 %v253
    %278 = vmatprep.subr.bf16.mxu0 0
    %279 = vmatpush1.bf16.msra.mxu0 0
    %280 = vmatprep.subr.bf16.mxu0 0
    %281 = vmatpush1.bf16.msra.mxu0 0
    %282 = vmatprep.subr.bf16.mxu0 0
    %283 = vmatpush1.bf16.msra.mxu0 0
    %284 = vmatprep.subr.bf16.mxu0 0
    %285 = vmatpush1.bf16.msra.mxu0 0
    %286 = vmatprep.subr.bf16.mxu0 0
    %287 = vmatpush1.bf16.msra.mxu0 0
    %288 = vmatprep.subr.bf16.mxu0 0
    %289 = vmatpush1.bf16.msra.mxu0 0
    %290 = vmatprep.subr.bf16.mxu0 0
    %291 = vmatpush1.bf16.msra.mxu0 0
    %292 = vmatprep.subr.bf16.mxu0 0
    %293 = vmatpush1.bf16.msra.mxu0 0
    %294 = vmatprep.mubr.bf16.mxu0 0
    %295 = vmatmul.mubr.bf16.gmra.mrb[0].mxu0 %v196
    %v296 = vpop.f32.mrb[0].mxu0
    %v297 = vadd.f32 0.0, %v296
    %v298 = vpop.f32.mrb[0].mxu0
    %v299 = vpop.f32.mrb[0].mxu0
    %v300 = vadd.f32 0.0, %v299
    %v301 = vpop.f32.mrb[0].mxu0
    %302 = vmatprep.mubr.bf16.mxu0 0
    %303 = vmatmul.mubr.bf16.gmra.mrb[0].mxu0 %v197
    %v304 = vpop.f32.mrb[0].mxu0
    %v305 = vadd.f32 0.0, %v304
    %v306 = vpop.f32.mrb[0].mxu0
    %v307 = vpop.f32.mrb[0].mxu0
    %v308 = vadd.f32 0.0, %v307
    %v309 = vpop.f32.mrb[0].mxu0
    %310 = vdwg.mxu0
    %313 = vrot.lane.b32.xlu0 %v297, 96
    %v314 = vpop.permute.xlu0 %313
    %315 = vrot.lane.b32.xlu0 %v300, 96
    %v316 = vpop.permute.xlu0 %315
    %vm317 = vcmask 64512
    %v318 = vsel %vm317, %v297, 0
    %v320 = vsel %vm317, %v300, 0
    %v322 = vsel %vm317, %v314, 0
    %v324 = vsel %vm317, %v316, 0
    %326 = vmatprep.subr.mxu0 0.0
    %327 = vmatpush1.xpose.msra.mxu0 %v322
    %328 = vmatprep.subr.mxu0 0.0
    %329 = vmatpush1.xpose.msra.mxu0 %v324
    %330 = vmatprep.subr.mxu0 0.0
    %331 = vmatpush1.xpose.msra.mxu0 0.0
    %332 = vmatprep.subr.mxu0 0.0
    %333 = vmatpush1.xpose.msra.mxu0 0.0
    %334 = vmatprep.subr.mxu0 0.0
    %335 = vmatpush1.xpose.msra.mxu0 0.0
    %336 = vmatprep.subr.mxu0 0.0
    %337 = vmatpush1.xpose.msra.mxu0 0.0
    %338 = vmatprep.subr.mxu0 0.0
    %339 = vmatpush1.xpose.msra.mxu0 0.0
    %340 = vmatprep.subr.mxu0 0.0
    %341 = vmatpush1.xpose.msra.mxu0 0.0
    %342 = vmatprep.subr.mxu0 0.0
    %343 = vmatpush1.xpose.msra.mxu0 0.0
    %344 = vmatprep.subr.mxu0 0.0
    %345 = vmatpush1.xpose.msra.mxu0 0.0
    %346 = vmatprep.subr.mxu0 0.0
    %347 = vmatpush1.xpose.msra.mxu0 0.0
    %348 = vmatprep.subr.mxu0 0.0
    %349 = vmatpush1.xpose.msra.mxu0 0.0
    %350 = vmatprep.subr.mxu0 0.0
    %351 = vmatpush1.xpose.msra.mxu0 0.0
    %352 = vmatprep.subr.mxu0 0.0
    %353 = vmatpush1.xpose.msra.mxu0 0.0
    %354 = vmatprep.subr.mxu0 0.0
    %355 = vmatpush1.xpose.msra.mxu0 0.0
    %356 = vmatprep.subr.mxu0 0.0
    %357 = vmatpush1.xpose.msra.mxu0 0.0
    %358 = vmatprep.subr.mxu0 0.0
    %359 = vmatpush1.xpose.msra.mxu0 0.0
    %360 = vmatprep.subr.mxu0 0.0
    %361 = vmatpush1.xpose.msra.mxu0 0.0
    %362 = vmatprep.subr.mxu0 0.0
    %363 = vmatpush1.xpose.msra.mxu0 0.0
    %364 = vmatprep.subr.mxu0 0.0
    %365 = vmatpush1.xpose.msra.mxu0 0.0
    %366 = vmatprep.subr.mxu0 0.0
    %367 = vmatpush1.xpose.msra.mxu0 0.0
    %368 = vmatprep.subr.mxu0 0.0
    %369 = vmatpush1.xpose.msra.mxu0 0.0
    %370 = vmatprep.subr.mxu0 0.0
    %371 = vmatpush1.xpose.msra.mxu0 0.0
    %372 = vmatprep.subr.mxu0 0.0
    %373 = vmatpush1.xpose.msra.mxu0 0.0
    %374 = vmatprep.subr.mxu0 0.0
    %375 = vmatpush1.xpose.msra.mxu0 0.0
    %376 = vmatprep.subr.mxu0 0.0
    %377 = vmatpush1.xpose.msra.mxu0 0.0
    %378 = vmatprep.subr.mxu0 0.0
    %379 = vmatpush1.xpose.msra.mxu0 0.0
    %380 = vmatprep.subr.mxu0 0.0
    %381 = vmatpush1.xpose.msra.mxu0 0.0
    %382 = vmatprep.subr.mxu0 0.0
    %383 = vmatpush1.xpose.msra.mxu0 0.0
    %384 = vmatprep.subr.mxu0 0.0
    %385 = vmatpush1.xpose.msra.mxu0 0.0
    %386 = vmatprep.subr.mxu0 0.0
    %387 = vmatpush1.xpose.msra.mxu0 0.0
    %388 = vmatprep.subr.mxu0 0.0
    %389 = vmatpush1.xpose.msra.mxu0 0.0
    %390 = vmatprep.mubr.f32.mxu0 0.0
    %391 = vmatmul.mubr.f32.gmra.mrb[0].mxu0 %v318
    %v392 = vpop.f32.mrb[0].mxu0
    %v393 = vadd.f32 0.0, %v392
    %v394 = vpop.f32.mrb[0].mxu0
    %395 = vmatprep.mubr.f32.mxu0 0.0
    %396 = vmatmul.mubr.f32.gmra.mrb[0].mxu0 %v320
    %v397 = vpop.f32.mrb[0].mxu0
    %v398 = vadd.f32 0.0, %v397
    %v399 = vpop.f32.mrb[0].mxu0
    %400 = vdwg.mxu0
    %403 = vrot.lane.b32.xlu0 %v305, 96
    %v404 = vpop.permute.xlu0 %403
    %405 = vrot.lane.b32.xlu0 %v308, 96
    %v406 = vpop.permute.xlu0 %405
    %v407 = vsel %vm317, %v305, 0
    %v409 = vsel %vm317, %v308, 0
    %v411 = vsel %vm317, %v404, 0
    %v413 = vsel %vm317, %v406, 0
    %415 = vmatprep.subr.mxu0 0.0
    %416 = vmatpush1.xpose.msra.mxu0 %v411
    %417 = vmatprep.subr.mxu0 0.0
    %418 = vmatpush1.xpose.msra.mxu0 %v413
    %419 = vmatprep.subr.mxu0 0.0
    %420 = vmatpush1.xpose.msra.mxu0 0.0
    %421 = vmatprep.subr.mxu0 0.0
    %422 = vmatpush1.xpose.msra.mxu0 0.0
    %423 = vmatprep.subr.mxu0 0.0
    %424 = vmatpush1.xpose.msra.mxu0 0.0
    %425 = vmatprep.subr.mxu0 0.0
    %426 = vmatpush1.xpose.msra.mxu0 0.0
    %427 = vmatprep.subr.mxu0 0.0
    %428 = vmatpush1.xpose.msra.mxu0 0.0
    %429 = vmatprep.subr.mxu0 0.0
    %430 = vmatpush1.xpose.msra.mxu0 0.0
    %431 = vmatprep.subr.mxu0 0.0
    %432 = vmatpush1.xpose.msra.mxu0 0.0
    %433 = vmatprep.subr.mxu0 0.0
    %434 = vmatpush1.xpose.msra.mxu0 0.0
    %435 = vmatprep.subr.mxu0 0.0
    %436 = vmatpush1.xpose.msra.mxu0 0.0
    %437 = vmatprep.subr.mxu0 0.0
    %438 = vmatpush1.xpose.msra.mxu0 0.0
    %439 = vmatprep.subr.mxu0 0.0
    %440 = vmatpush1.xpose.msra.mxu0 0.0
    %441 = vmatprep.subr.mxu0 0.0
    %442 = vmatpush1.xpose.msra.mxu0 0.0
    %443 = vmatprep.subr.mxu0 0.0
    %444 = vmatpush1.xpose.msra.mxu0 0.0
    %445 = vmatprep.subr.mxu0 0.0
    %446 = vmatpush1.xpose.msra.mxu0 0.0
    %447 = vmatprep.subr.mxu0 0.0
    %448 = vmatpush1.xpose.msra.mxu0 0.0
    %449 = vmatprep.subr.mxu0 0.0
    %450 = vmatpush1.xpose.msra.mxu0 0.0
    %451 = vmatprep.subr.mxu0 0.0
    %452 = vmatpush1.xpose.msra.mxu0 0.0
    %453 = vmatprep.subr.mxu0 0.0
    %454 = vmatpush1.xpose.msra.mxu0 0.0
    %455 = vmatprep.subr.mxu0 0.0
    %456 = vmatpush1.xpose.msra.mxu0 0.0
    %457 = vmatprep.subr.mxu0 0.0
    %458 = vmatpush1.xpose.msra.mxu0 0.0
    %459 = vmatprep.subr.mxu0 0.0
    %460 = vmatpush1.xpose.msra.mxu0 0.0
    %461 = vmatprep.subr.mxu0 0.0
    %462 = vmatpush1.xpose.msra.mxu0 0.0
    %463 = vmatprep.subr.mxu0 0.0
    %464 = vmatpush1.xpose.msra.mxu0 0.0
    %465 = vmatprep.subr.mxu0 0.0
    %466 = vmatpush1.xpose.msra.mxu0 0.0
    %467 = vmatprep.subr.mxu0 0.0
    %468 = vmatpush1.xpose.msra.mxu0 0.0
    %469 = vmatprep.subr.mxu0 0.0
    %470 = vmatpush1.xpose.msra.mxu0 0.0
    %471 = vmatprep.subr.mxu0 0.0
    %472 = vmatpush1.xpose.msra.mxu0 0.0
    %473 = vmatprep.subr.mxu0 0.0
    %474 = vmatpush1.xpose.msra.mxu0 0.0
    %475 = vmatprep.subr.mxu0 0.0
    %476 = vmatpush1.xpose.msra.mxu0 0.0
    %477 = vmatprep.subr.mxu0 0.0
    %478 = vmatpush1.xpose.msra.mxu0 0.0
    %479 = vmatprep.mubr.f32.mxu0 0.0
    %480 = vmatmul.mubr.f32.gmra.mrb[0].mxu0 %v407
    %v481 = vpop.f32.mrb[0].mxu0
    %v482 = vadd.f32 0.0, %v481
    %v483 = vpop.f32.mrb[0].mxu0
    %484 = vmatprep.mubr.f32.mxu0 0.0
    %485 = vmatmul.mubr.f32.gmra.mrb[0].mxu0 %v409
    %v486 = vpop.f32.mrb[0].mxu0
    %v487 = vadd.f32 0.0, %v486
    %v488 = vpop.f32.mrb[0].mxu0
    %489 = vdwg.mxu0
    %vm490 = vcmask 130048
    %v491 = vsel %vm490, %v393, -inf
    %492 = vmax.xlane.f32.xlu0 %v491
    %v493 = vpop.xlane.xlu0 %492
    %v494 = vsel %vm490, %v398, -inf
    %495 = vmax.xlane.f32.xlu0 %v494
    %v496 = vpop.xlane.xlu0 %495
    %v497 = vsel %vm490, %v482, -inf
    %498 = vmax.xlane.f32.xlu0 %v497
    %v499 = vpop.xlane.xlu0 %498
    %v500 = vsel %vm490, %v487, -inf
    %501 = vmax.xlane.f32.xlu0 %v500
    %v502 = vpop.xlane.xlu0 %501
    %v503 = vsub.f32 %v393, %v493
    %v504 = vsub.f32 %v398, %v496
    %v505 = vsub.f32 %v482, %v499
    %v506 = vsub.f32 %v487, %v502
    %v507 = vmul.f32 %v503, 1.442695
    %v508 = vpow.pop %v507
    %v509 = vmul.f32 %v504, 1.442695
    %v510 = vpow.pop %v509
    %v511 = vmul.f32 %v505, 1.442695
    %v512 = vpow.pop %v511
    %v513 = vmul.f32 %v506, 1.442695
    %v514 = vpow.pop %v513
    %v515 = vsel %vm490, %v508, 0.0
    %516 = vadd.xlane.f32.xlu0 %v515
    %v517 = vpop.xlane.xlu0 %516
    %v518 = vsel %vm490, %v510, 0.0
    %519 = vadd.xlane.f32.xlu0 %v518
    %v520 = vpop.xlane.xlu0 %519
    %v521 = vsel %vm490, %v512, 0.0
    %522 = vadd.xlane.f32.xlu0 %v521
    %v523 = vpop.xlane.xlu0 %522
    %v524 = vsel %vm490, %v514, 0.0
    %525 = vadd.xlane.f32.xlu0 %v524
    %v526 = vpop.xlane.xlu0 %525
    %v527 = vrcp.pop %v517
    %v528 = vrcp.pop %v520
    %v529 = vrcp.pop %v523
    %v530 = vrcp.pop %v526
    %v531 = vmul.f32 %v508, %v527
    %v532 = vmul.f32 %v510, %v528
    %v533 = vmul.f32 %v512, %v529
    %v534 = vmul.f32 %v514, %v530
    %535 = vrot.lane.b32.xlu0 %v297, 64
    %v536 = vpop.permute.xlu0 %535
    %537 = vrot.lane.b32.xlu0 %v300, 64
    %v538 = vpop.permute.xlu0 %537
    %v542 = vsel %vm490, %v531, 0
    %v545 = vsel %vm490, %v532, 0
    %547 = vmatprep.subr.mxu0 0.0
    %548 = vmatpush1.msra.mxu0 %v536
    %549 = vmatprep.subr.mxu0 0.0
    %550 = vmatpush1.msra.mxu0 %v538
    %551 = vmatprep.subr.mxu0 0.0
    %552 = vmatpush1.msra.mxu0 0.0
    %553 = vmatprep.subr.mxu0 0.0
    %554 = vmatpush1.msra.mxu0 0.0
    %555 = vmatprep.subr.mxu0 0.0
    %556 = vmatpush1.msra.mxu0 0.0
    %557 = vmatprep.subr.mxu0 0.0
    %558 = vmatpush1.msra.mxu0 0.0
    %559 = vmatprep.subr.mxu0 0.0
    %560 = vmatpush1.msra.mxu0 0.0
    %561 = vmatprep.subr.mxu0 0.0
    %562 = vmatpush1.msra.mxu0 0.0
    %563 = vmatprep.subr.mxu0 0.0
    %564 = vmatpush1.msra.mxu0 0.0
    %565 = vmatprep.subr.mxu0 0.0
    %566 = vmatpush1.msra.mxu0 0.0
    %567 = vmatprep.subr.mxu0 0.0
    %568 = vmatpush1.msra.mxu0 0.0
    %569 = vmatprep.subr.mxu0 0.0
    %570 = vmatpush1.msra.mxu0 0.0
    %571 = vmatprep.subr.mxu0 0.0
    %572 = vmatpush1.msra.mxu0 0.0
    %573 = vmatprep.subr.mxu0 0.0
    %574 = vmatpush1.msra.mxu0 0.0
    %575 = vmatprep.subr.mxu0 0.0
    %576 = vmatpush1.msra.mxu0 0.0
    %577 = vmatprep.subr.mxu0 0.0
    %578 = vmatpush1.msra.mxu0 0.0
    %579 = vmatprep.subr.mxu0 0.0
    %580 = vmatpush1.msra.mxu0 0.0
    %581 = vmatprep.subr.mxu0 0.0
    %582 = vmatpush1.msra.mxu0 0.0
    %583 = vmatprep.subr.mxu0 0.0
    %584 = vmatpush1.msra.mxu0 0.0
    %585 = vmatprep.subr.mxu0 0.0
    %586 = vmatpush1.msra.mxu0 0.0
    %587 = vmatprep.subr.mxu0 0.0
    %588 = vmatpush1.msra.mxu0 0.0
    %589 = vmatprep.subr.mxu0 0.0
    %590 = vmatpush1.msra.mxu0 0.0
    %591 = vmatprep.subr.mxu0 0.0
    %592 = vmatpush1.msra.mxu0 0.0
    %593 = vmatprep.subr.mxu0 0.0
    %594 = vmatpush1.msra.mxu0 0.0
    %595 = vmatprep.subr.mxu0 0.0
    %596 = vmatpush1.msra.mxu0 0.0
    %597 = vmatprep.subr.mxu0 0.0
    %598 = vmatpush1.msra.mxu0 0.0
    %599 = vmatprep.subr.mxu0 0.0
    %600 = vmatpush1.msra.mxu0 0.0
    %601 = vmatprep.subr.mxu0 0.0
    %602 = vmatpush1.msra.mxu0 0.0
    %603 = vmatprep.subr.mxu0 0.0
    %604 = vmatpush1.msra.mxu0 0.0
    %605 = vmatprep.subr.mxu0 0.0
    %606 = vmatpush1.msra.mxu0 0.0
    %607 = vmatprep.subr.mxu0 0.0
    %608 = vmatpush1.msra.mxu0 0.0
    %609 = vmatprep.subr.mxu0 0.0
    %610 = vmatpush1.msra.mxu0 0.0
    %611 = vmatprep.mubr.f32.mxu0 0.0
    %612 = vmatmul.mubr.f32.gmra.mrb[0].mxu0 %v542
    %v613 = vpop.f32.mrb[0].mxu0
    %v614 = vadd.f32 0.0, %v613
    %v615 = vpop.f32.mrb[0].mxu0
    %616 = vmatprep.mubr.f32.mxu0 0.0
    %617 = vmatmul.mubr.f32.gmra.mrb[0].mxu0 %v545
    %v618 = vpop.f32.mrb[0].mxu0
    %v619 = vadd.f32 0.0, %v618
    %v620 = vpop.f32.mrb[0].mxu0
    %621 = vdwg.mxu0
    %622 = vrot.lane.b32.xlu0 %v305, 64
    %v623 = vpop.permute.xlu0 %622
    %624 = vrot.lane.b32.xlu0 %v308, 64
    %v625 = vpop.permute.xlu0 %624
    %v629 = vsel %vm490, %v533, 0
    %v632 = vsel %vm490, %v534, 0
    %634 = vmatprep.subr.mxu0 0.0
    %635 = vmatpush1.msra.mxu0 %v623
    %636 = vmatprep.subr.mxu0 0.0
    %637 = vmatpush1.msra.mxu0 %v625
    %638 = vmatprep.subr.mxu0 0.0
    %639 = vmatpush1.msra.mxu0 0.0
    %640 = vmatprep.subr.mxu0 0.0
    %641 = vmatpush1.msra.mxu0 0.0
    %642 = vmatprep.subr.mxu0 0.0
    %643 = vmatpush1.msra.mxu0 0.0
    %644 = vmatprep.subr.mxu0 0.0
    %645 = vmatpush1.msra.mxu0 0.0
    %646 = vmatprep.subr.mxu0 0.0
    %647 = vmatpush1.msra.mxu0 0.0
    %648 = vmatprep.subr.mxu0 0.0
    %649 = vmatpush1.msra.mxu0 0.0
    %650 = vmatprep.subr.mxu0 0.0
    %651 = vmatpush1.msra.mxu0 0.0
    %652 = vmatprep.subr.mxu0 0.0
    %653 = vmatpush1.msra.mxu0 0.0
    %654 = vmatprep.subr.mxu0 0.0
    %655 = vmatpush1.msra.mxu0 0.0
    %656 = vmatprep.subr.mxu0 0.0
    %657 = vmatpush1.msra.mxu0 0.0
    %658 = vmatprep.subr.mxu0 0.0
    %659 = vmatpush1.msra.mxu0 0.0
    %660 = vmatprep.subr.mxu0 0.0
    %661 = vmatpush1.msra.mxu0 0.0
    %662 = vmatprep.subr.mxu0 0.0
    %663 = vmatpush1.msra.mxu0 0.0
    %664 = vmatprep.subr.mxu0 0.0
    %665 = vmatpush1.msra.mxu0 0.0
    %666 = vmatprep.subr.mxu0 0.0
    %667 = vmatpush1.msra.mxu0 0.0
    %668 = vmatprep.subr.mxu0 0.0
    %669 = vmatpush1.msra.mxu0 0.0
    %670 = vmatprep.subr.mxu0 0.0
    %671 = vmatpush1.msra.mxu0 0.0
    %672 = vmatprep.subr.mxu0 0.0
    %673 = vmatpush1.msra.mxu0 0.0
    %674 = vmatprep.subr.mxu0 0.0
    %675 = vmatpush1.msra.mxu0 0.0
    %676 = vmatprep.subr.mxu0 0.0
    %677 = vmatpush1.msra.mxu0 0.0
    %678 = vmatprep.subr.mxu0 0.0
    %679 = vmatpush1.msra.mxu0 0.0
    %680 = vmatprep.subr.mxu0 0.0
    %681 = vmatpush1.msra.mxu0 0.0
    %682 = vmatprep.subr.mxu0 0.0
    %683 = vmatpush1.msra.mxu0 0.0
    %684 = vmatprep.subr.mxu0 0.0
    %685 = vmatpush1.msra.mxu0 0.0
    %686 = vmatprep.subr.mxu0 0.0
    %687 = vmatpush1.msra.mxu0 0.0
    %688 = vmatprep.subr.mxu0 0.0
    %689 = vmatpush1.msra.mxu0 0.0
    %690 = vmatprep.subr.mxu0 0.0
    %691 = vmatpush1.msra.mxu0 0.0
    %692 = vmatprep.subr.mxu0 0.0
    %693 = vmatpush1.msra.mxu0 0.0
    %694 = vmatprep.subr.mxu0 0.0
    %695 = vmatpush1.msra.mxu0 0.0
    %696 = vmatprep.subr.mxu0 0.0
    %697 = vmatpush1.msra.mxu0 0.0
    %698 = vmatprep.mubr.f32.mxu0 0.0
    %699 = vmatmul.mubr.f32.gmra.mrb[0].mxu0 %v629
    %v700 = vpop.f32.mrb[0].mxu0
    %v701 = vadd.f32 0.0, %v700
    %v702 = vpop.f32.mrb[0].mxu0
    %703 = vmatprep.mubr.f32.mxu0 0.0
    %704 = vmatmul.mubr.f32.gmra.mrb[0].mxu0 %v632
    %v705 = vpop.f32.mrb[0].mxu0
    %v706 = vadd.f32 0.0, %v705
    %v707 = vpop.f32.mrb[0].mxu0
    %708 = vdwg.mxu0
    %709 = vrot.lane.b32.xlu0 %v297, 120
    %v710 = vpop.permute.xlu0 %709
    %711 = vrot.lane.b32.xlu0 %v300, 120
    %v712 = vpop.permute.xlu0 %711
    %713 = vrot.lane.b32.xlu0 %v297, 88
    %v714 = vpop.permute.xlu0 %713
    %715 = vrot.lane.b32.xlu0 %v300, 88
    %v716 = vpop.permute.xlu0 %715
    %v717 = vsel %vm317, %v710, 0
    %v719 = vsel %vm317, %v712, 0
    %v721 = vsel %vm317, %v714, 0
    %v723 = vsel %vm317, %v716, 0
    %725 = vmatprep.subr.mxu0 0.0
    %726 = vmatpush1.xpose.msra.mxu0 %v721
    %727 = vmatprep.subr.mxu0 0.0
    %728 = vmatpush1.xpose.msra.mxu0 %v723
    %729 = vmatprep.subr.mxu0 0.0
    %730 = vmatpush1.xpose.msra.mxu0 0.0
    %731 = vmatprep.subr.mxu0 0.0
    %732 = vmatpush1.xpose.msra.mxu0 0.0
    %733 = vmatprep.subr.mxu0 0.0
    %734 = vmatpush1.xpose.msra.mxu0 0.0
    %735 = vmatprep.subr.mxu0 0.0
    %736 = vmatpush1.xpose.msra.mxu0 0.0
    %737 = vmatprep.subr.mxu0 0.0
    %738 = vmatpush1.xpose.msra.mxu0 0.0
    %739 = vmatprep.subr.mxu0 0.0
    %740 = vmatpush1.xpose.msra.mxu0 0.0
    %741 = vmatprep.subr.mxu0 0.0
    %742 = vmatpush1.xpose.msra.mxu0 0.0
    %743 = vmatprep.subr.mxu0 0.0
    %744 = vmatpush1.xpose.msra.mxu0 0.0
    %745 = vmatprep.subr.mxu0 0.0
    %746 = vmatpush1.xpose.msra.mxu0 0.0
    %747 = vmatprep.subr.mxu0 0.0
    %748 = vmatpush1.xpose.msra.mxu0 0.0
    %749 = vmatprep.subr.mxu0 0.0
    %750 = vmatpush1.xpose.msra.mxu0 0.0
    %751 = vmatprep.subr.mxu0 0.0
    %752 = vmatpush1.xpose.msra.mxu0 0.0
    %753 = vmatprep.subr.mxu0 0.0
    %754 = vmatpush1.xpose.msra.mxu0 0.0
    %755 = vmatprep.subr.mxu0 0.0
    %756 = vmatpush1.xpose.msra.mxu0 0.0
    %757 = vmatprep.subr.mxu0 0.0
    %758 = vmatpush1.xpose.msra.mxu0 0.0
    %759 = vmatprep.subr.mxu0 0.0
    %760 = vmatpush1.xpose.msra.mxu0 0.0
    %761 = vmatprep.subr.mxu0 0.0
    %762 = vmatpush1.xpose.msra.mxu0 0.0
    %763 = vmatprep.subr.mxu0 0.0
    %764 = vmatpush1.xpose.msra.mxu0 0.0
    %765 = vmatprep.subr.mxu0 0.0
    %766 = vmatpush1.xpose.msra.mxu0 0.0
    %767 = vmatprep.subr.mxu0 0.0
    %768 = vmatpush1.xpose.msra.mxu0 0.0
    %769 = vmatprep.subr.mxu0 0.0
    %770 = vmatpush1.xpose.msra.mxu0 0.0
    %771 = vmatprep.subr.mxu0 0.0
    %772 = vmatpush1.xpose.msra.mxu0 0.0
    %773 = vmatprep.subr.mxu0 0.0
    %774 = vmatpush1.xpose.msra.mxu0 0.0
    %775 = vmatprep.subr.mxu0 0.0
    %776 = vmatpush1.xpose.msra.mxu0 0.0
    %777 = vmatprep.subr.mxu0 0.0
    %778 = vmatpush1.xpose.msra.mxu0 0.0
    %779 = vmatprep.subr.mxu0 0.0
    %780 = vmatpush1.xpose.msra.mxu0 0.0
    %781 = vmatprep.subr.mxu0 0.0
    %782 = vmatpush1.xpose.msra.mxu0 0.0
    %783 = vmatprep.subr.mxu0 0.0
    %784 = vmatpush1.xpose.msra.mxu0 0.0
    %785 = vmatprep.subr.mxu0 0.0
    %786 = vmatpush1.xpose.msra.mxu0 0.0
    %787 = vmatprep.subr.mxu0 0.0
    %788 = vmatpush1.xpose.msra.mxu0 0.0
    %789 = vmatprep.mubr.f32.mxu0 0.0
    %790 = vmatmul.mubr.f32.gmra.mrb[0].mxu0 %v717
    %v791 = vpop.f32.mrb[0].mxu0
    %v792 = vadd.f32 0.0, %v791
    %v793 = vpop.f32.mrb[0].mxu0
    %794 = vmatprep.mubr.f32.mxu0 0.0
    %795 = vmatmul.mubr.f32.gmra.mrb[0].mxu0 %v719
    %v796 = vpop.f32.mrb[0].mxu0
    %v797 = vadd.f32 0.0, %v796
    %v798 = vpop.f32.mrb[0].mxu0
    %799 = vdwg.mxu0
    %800 = vrot.lane.b32.xlu0 %v305, 120
    %v801 = vpop.permute.xlu0 %800
    %802 = vrot.lane.b32.xlu0 %v308, 120
    %v803 = vpop.permute.xlu0 %802
    %804 = vrot.lane.b32.xlu0 %v305, 88
    %v805 = vpop.permute.xlu0 %804
    %806 = vrot.lane.b32.xlu0 %v308, 88
    %v807 = vpop.permute.xlu0 %806
    %v808 = vsel %vm317, %v801, 0
    %v810 = vsel %vm317, %v803, 0
    %v812 = vsel %vm317, %v805, 0
    %v814 = vsel %vm317, %v807, 0
    %816 = vmatprep.subr.mxu0 0.0
    %817 = vmatpush1.xpose.msra.mxu0 %v812
    %818 = vmatprep.subr.mxu0 0.0
    %819 = vmatpush1.xpose.msra.mxu0 %v814
    %820 = vmatprep.subr.mxu0 0.0
    %821 = vmatpush1.xpose.msra.mxu0 0.0
    %822 = vmatprep.subr.mxu0 0.0
    %823 = vmatpush1.xpose.msra.mxu0 0.0
    %824 = vmatprep.subr.mxu0 0.0
    %825 = vmatpush1.xpose.msra.mxu0 0.0
    %826 = vmatprep.subr.mxu0 0.0
    %827 = vmatpush1.xpose.msra.mxu0 0.0
    %828 = vmatprep.subr.mxu0 0.0
    %829 = vmatpush1.xpose.msra.mxu0 0.0
    %830 = vmatprep.subr.mxu0 0.0
    %831 = vmatpush1.xpose.msra.mxu0 0.0
    %832 = vmatprep.subr.mxu0 0.0
    %833 = vmatpush1.xpose.msra.mxu0 0.0
    %834 = vmatprep.subr.mxu0 0.0
    %835 = vmatpush1.xpose.msra.mxu0 0.0
    %836 = vmatprep.subr.mxu0 0.0
    %837 = vmatpush1.xpose.msra.mxu0 0.0
    %838 = vmatprep.subr.mxu0 0.0
    %839 = vmatpush1.xpose.msra.mxu0 0.0
    %840 = vmatprep.subr.mxu0 0.0
    %841 = vmatpush1.xpose.msra.mxu0 0.0
    %842 = vmatprep.subr.mxu0 0.0
    %843 = vmatpush1.xpose.msra.mxu0 0.0
    %844 = vmatprep.subr.mxu0 0.0
    %845 = vmatpush1.xpose.msra.mxu0 0.0
    %846 = vmatprep.subr.mxu0 0.0
    %847 = vmatpush1.xpose.msra.mxu0 0.0
    %848 = vmatprep.subr.mxu0 0.0
    %849 = vmatpush1.xpose.msra.mxu0 0.0
    %850 = vmatprep.subr.mxu0 0.0
    %851 = vmatpush1.xpose.msra.mxu0 0.0
    %852 = vmatprep.subr.mxu0 0.0
    %853 = vmatpush1.xpose.msra.mxu0 0.0
    %854 = vmatprep.subr.mxu0 0.0
    %855 = vmatpush1.xpose.msra.mxu0 0.0
    %856 = vmatprep.subr.mxu0 0.0
    %857 = vmatpush1.xpose.msra.mxu0 0.0
    %858 = vmatprep.subr.mxu0 0.0
    %859 = vmatpush1.xpose.msra.mxu0 0.0
    %860 = vmatprep.subr.mxu0 0.0
    %861 = vmatpush1.xpose.msra.mxu0 0.0
    %862 = vmatprep.subr.mxu0 0.0
    %863 = vmatpush1.xpose.msra.mxu0 0.0
    %864 = vmatprep.subr.mxu0 0.0
    %865 = vmatpush1.xpose.msra.mxu0 0.0
    %866 = vmatprep.subr.mxu0 0.0
    %867 = vmatpush1.xpose.msra.mxu0 0.0
    %868 = vmatprep.subr.mxu0 0.0
    %869 = vmatpush1.xpose.msra.mxu0 0.0
    %870 = vmatprep.subr.mxu0 0.0
    %871 = vmatpush1.xpose.msra.mxu0 0.0
    %872 = vmatprep.subr.mxu0 0.0
    %873 = vmatpush1.xpose.msra.mxu0 0.0
    %874 = vmatprep.subr.mxu0 0.0
    %875 = vmatpush1.xpose.msra.mxu0 0.0
    %876 = vmatprep.subr.mxu0 0.0
    %877 = vmatpush1.xpose.msra.mxu0 0.0
    %878 = vmatprep.subr.mxu0 0.0
    %879 = vmatpush1.xpose.msra.mxu0 0.0
    %880 = vmatprep.mubr.f32.mxu0 0.0
    %881 = vmatmul.mubr.f32.gmra.mrb[0].mxu0 %v808
    %v882 = vpop.f32.mrb[0].mxu0
    %v883 = vadd.f32 0.0, %v882
    %v884 = vpop.f32.mrb[0].mxu0
    %885 = vmatprep.mubr.f32.mxu0 0.0
    %886 = vmatmul.mubr.f32.gmra.mrb[0].mxu0 %v810
    %v887 = vpop.f32.mrb[0].mxu0
    %v888 = vadd.f32 0.0, %v887
    %v889 = vpop.f32.mrb[0].mxu0
    %890 = vdwg.mxu0
    %v891 = vsel %vm490, %v792, -inf
    %892 = vmax.xlane.f32.xlu0 %v891
    %v893 = vpop.xlane.xlu0 %892
    %v894 = vsel %vm490, %v797, -inf
    %895 = vmax.xlane.f32.xlu0 %v894
    %v896 = vpop.xlane.xlu0 %895
    %v897 = vsel %vm490, %v883, -inf
    %898 = vmax.xlane.f32.xlu0 %v897
    %v899 = vpop.xlane.xlu0 %898
    %v900 = vsel %vm490, %v888, -inf
    %901 = vmax.xlane.f32.xlu0 %v900
    %v902 = vpop.xlane.xlu0 %901
    %v903 = vsub.f32 %v792, %v893
    %v904 = vsub.f32 %v797, %v896
    %v905 = vsub.f32 %v883, %v899
    %v906 = vsub.f32 %v888, %v902
    %v907 = vmul.f32 %v903, 1.442695
    %v908 = vpow.pop %v907
    %v909 = vmul.f32 %v904, 1.442695
    %v910 = vpow.pop %v909
    %v911 = vmul.f32 %v905, 1.442695
    %v912 = vpow.pop %v911
    %v913 = vmul.f32 %v906, 1.442695
    %v914 = vpow.pop %v913
    %v915 = vsel %vm490, %v908, 0.0
    %916 = vadd.xlane.f32.xlu0 %v915
    %v917 = vpop.xlane.xlu0 %916
    %v918 = vsel %vm490, %v910, 0.0
    %919 = vadd.xlane.f32.xlu0 %v918
    %v920 = vpop.xlane.xlu0 %919
    %v921 = vsel %vm490, %v912, 0.0
    %922 = vadd.xlane.f32.xlu0 %v921
    %v923 = vpop.xlane.xlu0 %922
    %v924 = vsel %vm490, %v914, 0.0
    %925 = vadd.xlane.f32.xlu0 %v924
    %v926 = vpop.xlane.xlu0 %925
    %v927 = vrcp.pop %v917
    %v928 = vrcp.pop %v920
    %v929 = vrcp.pop %v923
    %v930 = vrcp.pop %v926
    %v931 = vmul.f32 %v908, %v927
    %v932 = vmul.f32 %v910, %v928
    %v933 = vmul.f32 %v912, %v929
    %v934 = vmul.f32 %v914, %v930
    %935 = vrot.lane.b32.xlu0 %v297, 56
    %v936 = vpop.permute.xlu0 %935
    %937 = vrot.lane.b32.xlu0 %v300, 56
    %v938 = vpop.permute.xlu0 %937
    %v942 = vsel %vm490, %v931, 0
    %v945 = vsel %vm490, %v932, 0
    %947 = vmatprep.subr.mxu0 0.0
    %948 = vmatpush1.msra.mxu0 %v936
    %949 = vmatprep.subr.mxu0 0.0
    %950 = vmatpush1.msra.mxu0 %v938
    %951 = vmatprep.subr.mxu0 0.0
    %952 = vmatpush1.msra.mxu0 0.0
    %953 = vmatprep.subr.mxu0 0.0
    %954 = vmatpush1.msra.mxu0 0.0
    %955 = vmatprep.subr.mxu0 0.0
    %956 = vmatpush1.msra.mxu0 0.0
    %957 = vmatprep.subr.mxu0 0.0
    %958 = vmatpush1.msra.mxu0 0.0
    %959 = vmatprep.subr.mxu0 0.0
    %960 = vmatpush1.msra.mxu0 0.0
    %961 = vmatprep.subr.mxu0 0.0
    %962 = vmatpush1.msra.mxu0 0.0
    %963 = vmatprep.subr.mxu0 0.0
    %964 = vmatpush1.msra.mxu0 0.0
    %965 = vmatprep.subr.mxu0 0.0
    %966 = vmatpush1.msra.mxu0 0.0
    %967 = vmatprep.subr.mxu0 0.0
    %968 = vmatpush1.msra.mxu0 0.0
    %969 = vmatprep.subr.mxu0 0.0
    %970 = vmatpush1.msra.mxu0 0.0
    %971 = vmatprep.subr.mxu0 0.0
    %972 = vmatpush1.msra.mxu0 0.0
    %973 = vmatprep.subr.mxu0 0.0
    %974 = vmatpush1.msra.mxu0 0.0
    %975 = vmatprep.subr.mxu0 0.0
    %976 = vmatpush1.msra.mxu0 0.0
    %977 = vmatprep.subr.mxu0 0.0
    %978 = vmatpush1.msra.mxu0 0.0
    %979 = vmatprep.subr.mxu0 0.0
    %980 = vmatpush1.msra.mxu0 0.0
    %981 = vmatprep.subr.mxu0 0.0
    %982 = vmatpush1.msra.mxu0 0.0
    %983 = vmatprep.subr.mxu0 0.0
    %984 = vmatpush1.msra.mxu0 0.0
    %985 = vmatprep.subr.mxu0 0.0
    %986 = vmatpush1.msra.mxu0 0.0
    %987 = vmatprep.subr.mxu0 0.0
    %988 = vmatpush1.msra.mxu0 0.0
    %989 = vmatprep.subr.mxu0 0.0
    %990 = vmatpush1.msra.mxu0 0.0
    %991 = vmatprep.subr.mxu0 0.0
    %992 = vmatpush1.msra.mxu0 0.0
    %993 = vmatprep.subr.mxu0 0.0
    %994 = vmatpush1.msra.mxu0 0.0
    %995 = vmatprep.subr.mxu0 0.0
    %996 = vmatpush1.msra.mxu0 0.0
    %997 = vmatprep.subr.mxu0 0.0
    %998 = vmatpush1.msra.mxu0 0.0
    %999 = vmatprep.subr.mxu0 0.0
    %1000 = vmatpush1.msra.mxu0 0.0
    %1001 = vmatprep.subr.mxu0 0.0
    %1002 = vmatpush1.msra.mxu0 0.0
    %1003 = vmatprep.subr.mxu0 0.0
    %1004 = vmatpush1.msra.mxu0 0.0
    %1005 = vmatprep.subr.mxu0 0.0
    %1006 = vmatpush1.msra.mxu0 0.0
    %1007 = vmatprep.subr.mxu0 0.0
    %1008 = vmatpush1.msra.mxu0 0.0
    %1009 = vmatprep.subr.mxu0 0.0
    %1010 = vmatpush1.msra.mxu0 0.0
    %1011 = vmatprep.mubr.f32.mxu0 0.0
    %1012 = vmatmul.mubr.f32.gmra.mrb[0].mxu0 %v942
    %v1013 = vpop.f32.mrb[0].mxu0
    %v1014 = vadd.f32 0.0, %v1013
    %v1015 = vpop.f32.mrb[0].mxu0
    %1016 = vmatprep.mubr.f32.mxu0 0.0
    %1017 = vmatmul.mubr.f32.gmra.mrb[0].mxu0 %v945
    %v1018 = vpop.f32.mrb[0].mxu0
    %v1019 = vadd.f32 0.0, %v1018
    %v1020 = vpop.f32.mrb[0].mxu0
    %1021 = vdwg.mxu0
    %1022 = vrot.lane.b32.xlu0 %v305, 56
    %v1023 = vpop.permute.xlu0 %1022
    %1024 = vrot.lane.b32.xlu0 %v308, 56
    %v1025 = vpop.permute.xlu0 %1024
    %v1029 = vsel %vm490, %v933, 0
    %v1032 = vsel %vm490, %v934, 0
    %1034 = vmatprep.subr.mxu0 0.0
    %1035 = vmatpush1.msra.mxu0 %v1023
    %1036 = vmatprep.subr.mxu0 0.0
    %1037 = vmatpush1.msra.mxu0 %v1025
    %1038 = vmatprep.subr.mxu0 0.0
    %1039 = vmatpush1.msra.mxu0 0.0
    %1040 = vmatprep.subr.mxu0 0.0
    %1041 = vmatpush1.msra.mxu0 0.0
    %1042 = vmatprep.subr.mxu0 0.0
    %1043 = vmatpush1.msra.mxu0 0.0
    %1044 = vmatprep.subr.mxu0 0.0
    %1045 = vmatpush1.msra.mxu0 0.0
    %1046 = vmatprep.subr.mxu0 0.0
    %1047 = vmatpush1.msra.mxu0 0.0
    %1048 = vmatprep.subr.mxu0 0.0
    %1049 = vmatpush1.msra.mxu0 0.0
    %1050 = vmatprep.subr.mxu0 0.0
    %1051 = vmatpush1.msra.mxu0 0.0
    %1052 = vmatprep.subr.mxu0 0.0
    %1053 = vmatpush1.msra.mxu0 0.0
    %1054 = vmatprep.subr.mxu0 0.0
    %1055 = vmatpush1.msra.mxu0 0.0
    %1056 = vmatprep.subr.mxu0 0.0
    %1057 = vmatpush1.msra.mxu0 0.0
    %1058 = vmatprep.subr.mxu0 0.0
    %1059 = vmatpush1.msra.mxu0 0.0
    %1060 = vmatprep.subr.mxu0 0.0
    %1061 = vmatpush1.msra.mxu0 0.0
    %1062 = vmatprep.subr.mxu0 0.0
    %1063 = vmatpush1.msra.mxu0 0.0
    %1064 = vmatprep.subr.mxu0 0.0
    %1065 = vmatpush1.msra.mxu0 0.0
    %1066 = vmatprep.subr.mxu0 0.0
    %1067 = vmatpush1.msra.mxu0 0.0
    %1068 = vmatprep.subr.mxu0 0.0
    %1069 = vmatpush1.msra.mxu0 0.0
    %1070 = vmatprep.subr.mxu0 0.0
    %1071 = vmatpush1.msra.mxu0 0.0
    %1072 = vmatprep.subr.mxu0 0.0
    %1073 = vmatpush1.msra.mxu0 0.0
    %1074 = vmatprep.subr.mxu0 0.0
    %1075 = vmatpush1.msra.mxu0 0.0
    %1076 = vmatprep.subr.mxu0 0.0
    %1077 = vmatpush1.msra.mxu0 0.0
    %1078 = vmatprep.subr.mxu0 0.0
    %1079 = vmatpush1.msra.mxu0 0.0
    %1080 = vmatprep.subr.mxu0 0.0
    %1081 = vmatpush1.msra.mxu0 0.0
    %1082 = vmatprep.subr.mxu0 0.0
    %1083 = vmatpush1.msra.mxu0 0.0
    %1084 = vmatprep.subr.mxu0 0.0
    %1085 = vmatpush1.msra.mxu0 0.0
    %1086 = vmatprep.subr.mxu0 0.0
    %1087 = vmatpush1.msra.mxu0 0.0
    %1088 = vmatprep.subr.mxu0 0.0
    %1089 = vmatpush1.msra.mxu0 0.0
    %1090 = vmatprep.subr.mxu0 0.0
    %1091 = vmatpush1.msra.mxu0 0.0
    %1092 = vmatprep.subr.mxu0 0.0
    %1093 = vmatpush1.msra.mxu0 0.0
    %1094 = vmatprep.subr.mxu0 0.0
    %1095 = vmatpush1.msra.mxu0 0.0
    %1096 = vmatprep.subr.mxu0 0.0
    %1097 = vmatpush1.msra.mxu0 0.0
    %1098 = vmatprep.mubr.f32.mxu0 0.0
    %1099 = vmatmul.mubr.f32.gmra.mrb[0].mxu0 %v1029
    %v1100 = vpop.f32.mrb[0].mxu0
    %v1101 = vadd.f32 0.0, %v1100
    %v1102 = vpop.f32.mrb[0].mxu0
    %1103 = vmatprep.mubr.f32.mxu0 0.0
    %1104 = vmatmul.mubr.f32.gmra.mrb[0].mxu0 %v1032
    %v1105 = vpop.f32.mrb[0].mxu0
    %v1106 = vadd.f32 0.0, %v1105
    %v1107 = vpop.f32.mrb[0].mxu0
    %1108 = vdwg.mxu0
    %1109 = vrot.lane.b32.xlu0 %v297, 112
    %v1110 = vpop.permute.xlu0 %1109
    %1111 = vrot.lane.b32.xlu0 %v300, 112
    %v1112 = vpop.permute.xlu0 %1111
    %1113 = vrot.lane.b32.xlu0 %v297, 80
    %v1114 = vpop.permute.xlu0 %1113
    %1115 = vrot.lane.b32.xlu0 %v300, 80
    %v1116 = vpop.permute.xlu0 %1115
    %v1117 = vsel %vm317, %v1110, 0
    %v1119 = vsel %vm317, %v1112, 0
    %v1121 = vsel %vm317, %v1114, 0
    %v1123 = vsel %vm317, %v1116, 0
    %1125 = vmatprep.subr.mxu0 0.0
    %1126 = vmatpush1.xpose.msra.mxu0 %v1121
    %1127 = vmatprep.subr.mxu0 0.0
    %1128 = vmatpush1.xpose.msra.mxu0 %v1123
    %1129 = vmatprep.subr.mxu0 0.0
    %1130 = vmatpush1.xpose.msra.mxu0 0.0
    %1131 = vmatprep.subr.mxu0 0.0
    %1132 = vmatpush1.xpose.msra.mxu0 0.0
    %1133 = vmatprep.subr.mxu0 0.0
    %1134 = vmatpush1.xpose.msra.mxu0 0.0
    %1135 = vmatprep.subr.mxu0 0.0
    %1136 = vmatpush1.xpose.msra.mxu0 0.0
    %1137 = vmatprep.subr.mxu0 0.0
    %1138 = vmatpush1.xpose.msra.mxu0 0.0
    %1139 = vmatprep.subr.mxu0 0.0
    %1140 = vmatpush1.xpose.msra.mxu0 0.0
    %1141 = vmatprep.subr.mxu0 0.0
    %1142 = vmatpush1.xpose.msra.mxu0 0.0
    %1143 = vmatprep.subr.mxu0 0.0
    %1144 = vmatpush1.xpose.msra.mxu0 0.0
    %1145 = vmatprep.subr.mxu0 0.0
    %1146 = vmatpush1.xpose.msra.mxu0 0.0
    %1147 = vmatprep.subr.mxu0 0.0
    %1148 = vmatpush1.xpose.msra.mxu0 0.0
    %1149 = vmatprep.subr.mxu0 0.0
    %1150 = vmatpush1.xpose.msra.mxu0 0.0
    %1151 = vmatprep.subr.mxu0 0.0
    %1152 = vmatpush1.xpose.msra.mxu0 0.0
    %1153 = vmatprep.subr.mxu0 0.0
    %1154 = vmatpush1.xpose.msra.mxu0 0.0
    %1155 = vmatprep.subr.mxu0 0.0
    %1156 = vmatpush1.xpose.msra.mxu0 0.0
    %1157 = vmatprep.subr.mxu0 0.0
    %1158 = vmatpush1.xpose.msra.mxu0 0.0
    %1159 = vmatprep.subr.mxu0 0.0
    %1160 = vmatpush1.xpose.msra.mxu0 0.0
    %1161 = vmatprep.subr.mxu0 0.0
    %1162 = vmatpush1.xpose.msra.mxu0 0.0
    %1163 = vmatprep.subr.mxu0 0.0
    %1164 = vmatpush1.xpose.msra.mxu0 0.0
    %1165 = vmatprep.subr.mxu0 0.0
    %1166 = vmatpush1.xpose.msra.mxu0 0.0
    %1167 = vmatprep.subr.mxu0 0.0
    %1168 = vmatpush1.xpose.msra.mxu0 0.0
    %1169 = vmatprep.subr.mxu0 0.0
    %1170 = vmatpush1.xpose.msra.mxu0 0.0
    %1171 = vmatprep.subr.mxu0 0.0
    %1172 = vmatpush1.xpose.msra.mxu0 0.0
    %1173 = vmatprep.subr.mxu0 0.0
    %1174 = vmatpush1.xpose.msra.mxu0 0.0
    %1175 = vmatprep.subr.mxu0 0.0
    %1176 = vmatpush1.xpose.msra.mxu0 0.0
    %1177 = vmatprep.subr.mxu0 0.0
    %1178 = vmatpush1.xpose.msra.mxu0 0.0
    %1179 = vmatprep.subr.mxu0 0.0
    %1180 = vmatpush1.xpose.msra.mxu0 0.0
    %1181 = vmatprep.subr.mxu0 0.0
    %1182 = vmatpush1.xpose.msra.mxu0 0.0
    %1183 = vmatprep.subr.mxu0 0.0
    %1184 = vmatpush1.xpose.msra.mxu0 0.0
    %1185 = vmatprep.subr.mxu0 0.0
    %1186 = vmatpush1.xpose.msra.mxu0 0.0
    %1187 = vmatprep.subr.mxu0 0.0
    %1188 = vmatpush1.xpose.msra.mxu0 0.0
    %1189 = vmatprep.mubr.f32.mxu0 0.0
    %1190 = vmatmul.mubr.f32.gmra.mrb[0].mxu0 %v1117
    %v1191 = vpop.f32.mrb[0].mxu0
    %v1192 = vadd.f32 0.0, %v1191
    %v1193 = vpop.f32.mrb[0].mxu0
    %1194 = vmatprep.mubr.f32.mxu0 0.0
    %1195 = vmatmul.mubr.f32.gmra.mrb[0].mxu0 %v1119
    %v1196 = vpop.f32.mrb[0].mxu0
    %v1197 = vadd.f32 0.0, %v1196
    %v1198 = vpop.f32.mrb[0].mxu0
    %1199 = vdwg.mxu0
    %1200 = vrot.lane.b32.xlu0 %v305, 112
    %v1201 = vpop.permute.xlu0 %1200
    %1202 = vrot.lane.b32.xlu0 %v308, 112
    %v1203 = vpop.permute.xlu0 %1202
    %1204 = vrot.lane.b32.xlu0 %v305, 80
    %v1205 = vpop.permute.xlu0 %1204
    %1206 = vrot.lane.b32.xlu0 %v308, 80
    %v1207 = vpop.permute.xlu0 %1206
    %v1208 = vsel %vm317, %v1201, 0
    %v1210 = vsel %vm317, %v1203, 0
    %v1212 = vsel %vm317, %v1205, 0
    %v1214 = vsel %vm317, %v1207, 0
    %1216 = vmatprep.subr.mxu0 0.0
    %1217 = vmatpush1.xpose.msra.mxu0 %v1212
    %1218 = vmatprep.subr.mxu0 0.0
    %1219 = vmatpush1.xpose.msra.mxu0 %v1214
    %1220 = vmatprep.subr.mxu0 0.0
    %1221 = vmatpush1.xpose.msra.mxu0 0.0
    %1222 = vmatprep.subr.mxu0 0.0
    %1223 = vmatpush1.xpose.msra.mxu0 0.0
    %1224 = vmatprep.subr.mxu0 0.0
    %1225 = vmatpush1.xpose.msra.mxu0 0.0
    %1226 = vmatprep.subr.mxu0 0.0
    %1227 = vmatpush1.xpose.msra.mxu0 0.0
    %1228 = vmatprep.subr.mxu0 0.0
    %1229 = vmatpush1.xpose.msra.mxu0 0.0
    %1230 = vmatprep.subr.mxu0 0.0
    %1231 = vmatpush1.xpose.msra.mxu0 0.0
    %1232 = vmatprep.subr.mxu0 0.0
    %1233 = vmatpush1.xpose.msra.mxu0 0.0
    %1234 = vmatprep.subr.mxu0 0.0
    %1235 = vmatpush1.xpose.msra.mxu0 0.0
    %1236 = vmatprep.subr.mxu0 0.0
    %1237 = vmatpush1.xpose.msra.mxu0 0.0
    %1238 = vmatprep.subr.mxu0 0.0
    %1239 = vmatpush1.xpose.msra.mxu0 0.0
    %1240 = vmatprep.subr.mxu0 0.0
    %1241 = vmatpush1.xpose.msra.mxu0 0.0
    %1242 = vmatprep.subr.mxu0 0.0
    %1243 = vmatpush1.xpose.msra.mxu0 0.0
    %1244 = vmatprep.subr.mxu0 0.0
    %1245 = vmatpush1.xpose.msra.mxu0 0.0
    %1246 = vmatprep.subr.mxu0 0.0
    %1247 = vmatpush1.xpose.msra.mxu0 0.0
    %1248 = vmatprep.subr.mxu0 0.0
    %1249 = vmatpush1.xpose.msra.mxu0 0.0
    %1250 = vmatprep.subr.mxu0 0.0
    %1251 = vmatpush1.xpose.msra.mxu0 0.0
    %1252 = vmatprep.subr.mxu0 0.0
    %1253 = vmatpush1.xpose.msra.mxu0 0.0
    %1254 = vmatprep.subr.mxu0 0.0
    %1255 = vmatpush1.xpose.msra.mxu0 0.0
    %1256 = vmatprep.subr.mxu0 0.0
    %1257 = vmatpush1.xpose.msra.mxu0 0.0
    %1258 = vmatprep.subr.mxu0 0.0
    %1259 = vmatpush1.xpose.msra.mxu0 0.0
    %1260 = vmatprep.subr.mxu0 0.0
    %1261 = vmatpush1.xpose.msra.mxu0 0.0
    %1262 = vmatprep.subr.mxu0 0.0
    %1263 = vmatpush1.xpose.msra.mxu0 0.0
    %1264 = vmatprep.subr.mxu0 0.0
    %1265 = vmatpush1.xpose.msra.mxu0 0.0
    %1266 = vmatprep.subr.mxu0 0.0
    %1267 = vmatpush1.xpose.msra.mxu0 0.0
    %1268 = vmatprep.subr.mxu0 0.0
    %1269 = vmatpush1.xpose.msra.mxu0 0.0
    %1270 = vmatprep.subr.mxu0 0.0
    %1271 = vmatpush1.xpose.msra.mxu0 0.0
    %1272 = vmatprep.subr.mxu0 0.0
    %1273 = vmatpush1.xpose.msra.mxu0 0.0
    %1274 = vmatprep.subr.mxu0 0.0
    %1275 = vmatpush1.xpose.msra.mxu0 0.0
    %1276 = vmatprep.subr.mxu0 0.0
    %1277 = vmatpush1.xpose.msra.mxu0 0.0
    %1278 = vmatprep.subr.mxu0 0.0
    %1279 = vmatpush1.xpose.msra.mxu0 0.0
    %1280 = vmatprep.mubr.f32.mxu0 0.0
    %1281 = vmatmul.mubr.f32.gmra.mrb[0].mxu0 %v1208
    %v1282 = vpop.f32.mrb[0].mxu0
    %v1283 = vadd.f32 0.0, %v1282
    %v1284 = vpop.f32.mrb[0].mxu0
    %1285 = vmatprep.mubr.f32.mxu0 0.0
    %1286 = vmatmul.mubr.f32.gmra.mrb[0].mxu0 %v1210
    %v1287 = vpop.f32.mrb[0].mxu0
    %v1288 = vadd.f32 0.0, %v1287
    %v1289 = vpop.f32.mrb[0].mxu0
    %1290 = vdwg.mxu0
    %v1291 = vsel %vm490, %v1192, -inf
    %1292 = vmax.xlane.f32.xlu0 %v1291
    %v1293 = vpop.xlane.xlu0 %1292
    %v1294 = vsel %vm490, %v1197, -inf
    %1295 = vmax.xlane.f32.xlu0 %v1294
    %v1296 = vpop.xlane.xlu0 %1295
    %v1297 = vsel %vm490, %v1283, -inf
    %1298 = vmax.xlane.f32.xlu0 %v1297
    %v1299 = vpop.xlane.xlu0 %1298
    %v1300 = vsel %vm490, %v1288, -inf
    %1301 = vmax.xlane.f32.xlu0 %v1300
    %v1302 = vpop.xlane.xlu0 %1301
    %v1303 = vsub.f32 %v1192, %v1293
    %v1304 = vsub.f32 %v1197, %v1296
    %v1305 = vsub.f32 %v1283, %v1299
    %v1306 = vsub.f32 %v1288, %v1302
    %v1307 = vmul.f32 %v1303, 1.442695
    %v1308 = vpow.pop %v1307
    %v1309 = vmul.f32 %v1304, 1.442695
    %v1310 = vpow.pop %v1309
    %v1311 = vmul.f32 %v1305, 1.442695
    %v1312 = vpow.pop %v1311
    %v1313 = vmul.f32 %v1306, 1.442695
    %v1314 = vpow.pop %v1313
    %v1315 = vsel %vm490, %v1308, 0.0
    %1316 = vadd.xlane.f32.xlu0 %v1315
    %v1317 = vpop.xlane.xlu0 %1316
    %v1318 = vsel %vm490, %v1310, 0.0
    %1319 = vadd.xlane.f32.xlu0 %v1318
    %v1320 = vpop.xlane.xlu0 %1319
    %v1321 = vsel %vm490, %v1312, 0.0
    %1322 = vadd.xlane.f32.xlu0 %v1321
    %v1323 = vpop.xlane.xlu0 %1322
    %v1324 = vsel %vm490, %v1314, 0.0
    %1325 = vadd.xlane.f32.xlu0 %v1324
    %v1326 = vpop.xlane.xlu0 %1325
    %v1327 = vrcp.pop %v1317
    %v1328 = vrcp.pop %v1320
    %v1329 = vrcp.pop %v1323
    %v1330 = vrcp.pop %v1326
    %v1331 = vmul.f32 %v1308, %v1327
    %v1332 = vmul.f32 %v1310, %v1328
    %v1333 = vmul.f32 %v1312, %v1329
    %v1334 = vmul.f32 %v1314, %v1330
    %1335 = vrot.lane.b32.xlu0 %v297, 48
    %v1336 = vpop.permute.xlu0 %1335
    %1337 = vrot.lane.b32.xlu0 %v300, 48
    %v1338 = vpop.permute.xlu0 %1337
    %v1342 = vsel %vm490, %v1331, 0
    %v1345 = vsel %vm490, %v1332, 0
    %1347 = vmatprep.subr.mxu0 0.0
    %1348 = vmatpush1.msra.mxu0 %v1336
    %1349 = vmatprep.subr.mxu0 0.0
    %1350 = vmatpush1.msra.mxu0 %v1338
    %1351 = vmatprep.subr.mxu0 0.0
    %1352 = vmatpush1.msra.mxu0 0.0
    %1353 = vmatprep.subr.mxu0 0.0
    %1354 = vmatpush1.msra.mxu0 0.0
    %1355 = vmatprep.subr.mxu0 0.0
    %1356 = vmatpush1.msra.mxu0 0.0
    %1357 = vmatprep.subr.mxu0 0.0
    %1358 = vmatpush1.msra.mxu0 0.0
    %1359 = vmatprep.subr.mxu0 0.0
    %1360 = vmatpush1.msra.mxu0 0.0
    %1361 = vmatprep.subr.mxu0 0.0
    %1362 = vmatpush1.msra.mxu0 0.0
    %1363 = vmatprep.subr.mxu0 0.0
    %1364 = vmatpush1.msra.mxu0 0.0
    %1365 = vmatprep.subr.mxu0 0.0
    %1366 = vmatpush1.msra.mxu0 0.0
    %1367 = vmatprep.subr.mxu0 0.0
    %1368 = vmatpush1.msra.mxu0 0.0
    %1369 = vmatprep.subr.mxu0 0.0
    %1370 = vmatpush1.msra.mxu0 0.0
    %1371 = vmatprep.subr.mxu0 0.0
    %1372 = vmatpush1.msra.mxu0 0.0
    %1373 = vmatprep.subr.mxu0 0.0
    %1374 = vmatpush1.msra.mxu0 0.0
    %1375 = vmatprep.subr.mxu0 0.0
    %1376 = vmatpush1.msra.mxu0 0.0
    %1377 = vmatprep.subr.mxu0 0.0
    %1378 = vmatpush1.msra.mxu0 0.0
    %1379 = vmatprep.subr.mxu0 0.0
    %1380 = vmatpush1.msra.mxu0 0.0
    %1381 = vmatprep.subr.mxu0 0.0
    %1382 = vmatpush1.msra.mxu0 0.0
    %1383 = vmatprep.subr.mxu0 0.0
    %1384 = vmatpush1.msra.mxu0 0.0
    %1385 = vmatprep.subr.mxu0 0.0
    %1386 = vmatpush1.msra.mxu0 0.0
    %1387 = vmatprep.subr.mxu0 0.0
    %1388 = vmatpush1.msra.mxu0 0.0
    %1389 = vmatprep.subr.mxu0 0.0
    %1390 = vmatpush1.msra.mxu0 0.0
    %1391 = vmatprep.subr.mxu0 0.0
    %1392 = vmatpush1.msra.mxu0 0.0
    %1393 = vmatprep.subr.mxu0 0.0
    %1394 = vmatpush1.msra.mxu0 0.0
    %1395 = vmatprep.subr.mxu0 0.0
    %1396 = vmatpush1.msra.mxu0 0.0
    %1397 = vmatprep.subr.mxu0 0.0
    %1398 = vmatpush1.msra.mxu0 0.0
    %1399 = vmatprep.subr.mxu0 0.0
    %1400 = vmatpush1.msra.mxu0 0.0
    %1401 = vmatprep.subr.mxu0 0.0
    %1402 = vmatpush1.msra.mxu0 0.0
    %1403 = vmatprep.subr.mxu0 0.0
    %1404 = vmatpush1.msra.mxu0 0.0
    %1405 = vmatprep.subr.mxu0 0.0
    %1406 = vmatpush1.msra.mxu0 0.0
    %1407 = vmatprep.subr.mxu0 0.0
    %1408 = vmatpush1.msra.mxu0 0.0
    %1409 = vmatprep.subr.mxu0 0.0
    %1410 = vmatpush1.msra.mxu0 0.0
    %1411 = vmatprep.mubr.f32.mxu0 0.0
    %1412 = vmatmul.mubr.f32.gmra.mrb[0].mxu0 %v1342
    %v1413 = vpop.f32.mrb[0].mxu0
    %v1414 = vadd.f32 0.0, %v1413
    %v1415 = vpop.f32.mrb[0].mxu0
    %1416 = vmatprep.mubr.f32.mxu0 0.0
    %1417 = vmatmul.mubr.f32.gmra.mrb[0].mxu0 %v1345
    %v1418 = vpop.f32.mrb[0].mxu0
    %v1419 = vadd.f32 0.0, %v1418
    %v1420 = vpop.f32.mrb[0].mxu0
    %1421 = vdwg.mxu0
    %1422 = vrot.lane.b32.xlu0 %v305, 48
    %v1423 = vpop.permute.xlu0 %1422
    %1424 = vrot.lane.b32.xlu0 %v308, 48
    %v1425 = vpop.permute.xlu0 %1424
    %v1429 = vsel %vm490, %v1333, 0
    %v1432 = vsel %vm490, %v1334, 0
    %1434 = vmatprep.subr.mxu0 0.0
    %1435 = vmatpush1.msra.mxu0 %v1423
    %1436 = vmatprep.subr.mxu0 0.0
    %1437 = vmatpush1.msra.mxu0 %v1425
    %1438 = vmatprep.subr.mxu0 0.0
    %1439 = vmatpush1.msra.mxu0 0.0
    %1440 = vmatprep.subr.mxu0 0.0
    %1441 = vmatpush1.msra.mxu0 0.0
    %1442 = vmatprep.subr.mxu0 0.0
    %1443 = vmatpush1.msra.mxu0 0.0
    %1444 = vmatprep.subr.mxu0 0.0
    %1445 = vmatpush1.msra.mxu0 0.0
    %1446 = vmatprep.subr.mxu0 0.0
    %1447 = vmatpush1.msra.mxu0 0.0
    %1448 = vmatprep.subr.mxu0 0.0
    %1449 = vmatpush1.msra.mxu0 0.0
    %1450 = vmatprep.subr.mxu0 0.0
    %1451 = vmatpush1.msra.mxu0 0.0
    %1452 = vmatprep.subr.mxu0 0.0
    %1453 = vmatpush1.msra.mxu0 0.0
    %1454 = vmatprep.subr.mxu0 0.0
    %1455 = vmatpush1.msra.mxu0 0.0
    %1456 = vmatprep.subr.mxu0 0.0
    %1457 = vmatpush1.msra.mxu0 0.0
    %1458 = vmatprep.subr.mxu0 0.0
    %1459 = vmatpush1.msra.mxu0 0.0
    %1460 = vmatprep.subr.mxu0 0.0
    %1461 = vmatpush1.msra.mxu0 0.0
    %1462 = vmatprep.subr.mxu0 0.0
    %1463 = vmatpush1.msra.mxu0 0.0
    %1464 = vmatprep.subr.mxu0 0.0
    %1465 = vmatpush1.msra.mxu0 0.0
    %1466 = vmatprep.subr.mxu0 0.0
    %1467 = vmatpush1.msra.mxu0 0.0
    %1468 = vmatprep.subr.mxu0 0.0
    %1469 = vmatpush1.msra.mxu0 0.0
    %1470 = vmatprep.subr.mxu0 0.0
    %1471 = vmatpush1.msra.mxu0 0.0
    %1472 = vmatprep.subr.mxu0 0.0
    %1473 = vmatpush1.msra.mxu0 0.0
    %1474 = vmatprep.subr.mxu0 0.0
    %1475 = vmatpush1.msra.mxu0 0.0
    %1476 = vmatprep.subr.mxu0 0.0
    %1477 = vmatpush1.msra.mxu0 0.0
    %1478 = vmatprep.subr.mxu0 0.0
    %1479 = vmatpush1.msra.mxu0 0.0
    %1480 = vmatprep.subr.mxu0 0.0
    %1481 = vmatpush1.msra.mxu0 0.0
    %1482 = vmatprep.subr.mxu0 0.0
    %1483 = vmatpush1.msra.mxu0 0.0
    %1484 = vmatprep.subr.mxu0 0.0
    %1485 = vmatpush1.msra.mxu0 0.0
    %1486 = vmatprep.subr.mxu0 0.0
    %1487 = vmatpush1.msra.mxu0 0.0
    %1488 = vmatprep.subr.mxu0 0.0
    %1489 = vmatpush1.msra.mxu0 0.0
    %1490 = vmatprep.subr.mxu0 0.0
    %1491 = vmatpush1.msra.mxu0 0.0
    %1492 = vmatprep.subr.mxu0 0.0
    %1493 = vmatpush1.msra.mxu0 0.0
    %1494 = vmatprep.subr.mxu0 0.0
    %1495 = vmatpush1.msra.mxu0 0.0
    %1496 = vmatprep.subr.mxu0 0.0
    %1497 = vmatpush1.msra.mxu0 0.0
    %1498 = vmatprep.mubr.f32.mxu0 0.0
    %1499 = vmatmul.mubr.f32.gmra.mrb[0].mxu0 %v1429
    %v1500 = vpop.f32.mrb[0].mxu0
    %v1501 = vadd.f32 0.0, %v1500
    %v1502 = vpop.f32.mrb[0].mxu0
    %1503 = vmatprep.mubr.f32.mxu0 0.0
    %1504 = vmatmul.mubr.f32.gmra.mrb[0].mxu0 %v1432
    %v1505 = vpop.f32.mrb[0].mxu0
    %v1506 = vadd.f32 0.0, %v1505
    %v1507 = vpop.f32.mrb[0].mxu0
    %1508 = vdwg.mxu0
    %1509 = vrot.lane.b32.xlu0 %v297, 104
    %v1510 = vpop.permute.xlu0 %1509
    %1511 = vrot.lane.b32.xlu0 %v300, 104
    %v1512 = vpop.permute.xlu0 %1511
    %1513 = vrot.lane.b32.xlu0 %v297, 72
    %v1514 = vpop.permute.xlu0 %1513
    %1515 = vrot.lane.b32.xlu0 %v300, 72
    %v1516 = vpop.permute.xlu0 %1515
    %v1517 = vsel %vm317, %v1510, 0
    %v1519 = vsel %vm317, %v1512, 0
    %v1521 = vsel %vm317, %v1514, 0
    %v1523 = vsel %vm317, %v1516, 0
    %1525 = vmatprep.subr.mxu0 0.0
    %1526 = vmatpush1.xpose.msra.mxu0 %v1521
    %1527 = vmatprep.subr.mxu0 0.0
    %1528 = vmatpush1.xpose.msra.mxu0 %v1523
    %1529 = vmatprep.subr.mxu0 0.0
    %1530 = vmatpush1.xpose.msra.mxu0 0.0
    %1531 = vmatprep.subr.mxu0 0.0
    %1532 = vmatpush1.xpose.msra.mxu0 0.0
    %1533 = vmatprep.subr.mxu0 0.0
    %1534 = vmatpush1.xpose.msra.mxu0 0.0
    %1535 = vmatprep.subr.mxu0 0.0
    %1536 = vmatpush1.xpose.msra.mxu0 0.0
    %1537 = vmatprep.subr.mxu0 0.0
    %1538 = vmatpush1.xpose.msra.mxu0 0.0
    %1539 = vmatprep.subr.mxu0 0.0
    %1540 = vmatpush1.xpose.msra.mxu0 0.0
    %1541 = vmatprep.subr.mxu0 0.0
    %1542 = vmatpush1.xpose.msra.mxu0 0.0
    %1543 = vmatprep.subr.mxu0 0.0
    %1544 = vmatpush1.xpose.msra.mxu0 0.0
    %1545 = vmatprep.subr.mxu0 0.0
    %1546 = vmatpush1.xpose.msra.mxu0 0.0
    %1547 = vmatprep.subr.mxu0 0.0
    %1548 = vmatpush1.xpose.msra.mxu0 0.0
    %1549 = vmatprep.subr.mxu0 0.0
    %1550 = vmatpush1.xpose.msra.mxu0 0.0
    %1551 = vmatprep.subr.mxu0 0.0
    %1552 = vmatpush1.xpose.msra.mxu0 0.0
    %1553 = vmatprep.subr.mxu0 0.0
    %1554 = vmatpush1.xpose.msra.mxu0 0.0
    %1555 = vmatprep.subr.mxu0 0.0
    %1556 = vmatpush1.xpose.msra.mxu0 0.0
    %1557 = vmatprep.subr.mxu0 0.0
    %1558 = vmatpush1.xpose.msra.mxu0 0.0
    %1559 = vmatprep.subr.mxu0 0.0
    %1560 = vmatpush1.xpose.msra.mxu0 0.0
    %1561 = vmatprep.subr.mxu0 0.0
    %1562 = vmatpush1.xpose.msra.mxu0 0.0
    %1563 = vmatprep.subr.mxu0 0.0
    %1564 = vmatpush1.xpose.msra.mxu0 0.0
    %1565 = vmatprep.subr.mxu0 0.0
    %1566 = vmatpush1.xpose.msra.mxu0 0.0
    %1567 = vmatprep.subr.mxu0 0.0
    %1568 = vmatpush1.xpose.msra.mxu0 0.0
    %1569 = vmatprep.subr.mxu0 0.0
    %1570 = vmatpush1.xpose.msra.mxu0 0.0
    %1571 = vmatprep.subr.mxu0 0.0
    %1572 = vmatpush1.xpose.msra.mxu0 0.0
    %1573 = vmatprep.subr.mxu0 0.0
    %1574 = vmatpush1.xpose.msra.mxu0 0.0
    %1575 = vmatprep.subr.mxu0 0.0
    %1576 = vmatpush1.xpose.msra.mxu0 0.0
    %1577 = vmatprep.subr.mxu0 0.0
    %1578 = vmatpush1.xpose.msra.mxu0 0.0
    %1579 = vmatprep.subr.mxu0 0.0
    %1580 = vmatpush1.xpose.msra.mxu0 0.0
    %1581 = vmatprep.subr.mxu0 0.0
    %1582 = vmatpush1.xpose.msra.mxu0 0.0
    %1583 = vmatprep.subr.mxu0 0.0
    %1584 = vmatpush1.xpose.msra.mxu0 0.0
    %1585 = vmatprep.subr.mxu0 0.0
    %1586 = vmatpush1.xpose.msra.mxu0 0.0
    %1587 = vmatprep.subr.mxu0 0.0
    %1588 = vmatpush1.xpose.msra.mxu0 0.0
    %1589 = vmatprep.mubr.f32.mxu0 0.0
    %1590 = vmatmul.mubr.f32.gmra.mrb[0].mxu0 %v1517
    %v1591 = vpop.f32.mrb[0].mxu0
    %v1592 = vadd.f32 0.0, %v1591
    %v1593 = vpop.f32.mrb[0].mxu0
    %1594 = vmatprep.mubr.f32.mxu0 0.0
    %1595 = vmatmul.mubr.f32.gmra.mrb[0].mxu0 %v1519
    %v1596 = vpop.f32.mrb[0].mxu0
    %v1597 = vadd.f32 0.0, %v1596
    %v1598 = vpop.f32.mrb[0].mxu0
    %1599 = vdwg.mxu0
    %1600 = vrot.lane.b32.xlu0 %v305, 104
    %v1601 = vpop.permute.xlu0 %1600
    %1602 = vrot.lane.b32.xlu0 %v308, 104
    %v1603 = vpop.permute.xlu0 %1602
    %1604 = vrot.lane.b32.xlu0 %v305, 72
    %v1605 = vpop.permute.xlu0 %1604
    %1606 = vrot.lane.b32.xlu0 %v308, 72
    %v1607 = vpop.permute.xlu0 %1606
    %v1608 = vsel %vm317, %v1601, 0
    %v1610 = vsel %vm317, %v1603, 0
    %v1612 = vsel %vm317, %v1605, 0
    %v1614 = vsel %vm317, %v1607, 0
    %1616 = vmatprep.subr.mxu0 0.0
    %1617 = vmatpush1.xpose.msra.mxu0 %v1612
    %1618 = vmatprep.subr.mxu0 0.0
    %1619 = vmatpush1.xpose.msra.mxu0 %v1614
    %1620 = vmatprep.subr.mxu0 0.0
    %1621 = vmatpush1.xpose.msra.mxu0 0.0
    %1622 = vmatprep.subr.mxu0 0.0
    %1623 = vmatpush1.xpose.msra.mxu0 0.0
    %1624 = vmatprep.subr.mxu0 0.0
    %1625 = vmatpush1.xpose.msra.mxu0 0.0
    %1626 = vmatprep.subr.mxu0 0.0
    %1627 = vmatpush1.xpose.msra.mxu0 0.0
    %1628 = vmatprep.subr.mxu0 0.0
    %1629 = vmatpush1.xpose.msra.mxu0 0.0
    %1630 = vmatprep.subr.mxu0 0.0
    %1631 = vmatpush1.xpose.msra.mxu0 0.0
    %1632 = vmatprep.subr.mxu0 0.0
    %1633 = vmatpush1.xpose.msra.mxu0 0.0
    %1634 = vmatprep.subr.mxu0 0.0
    %1635 = vmatpush1.xpose.msra.mxu0 0.0
    %1636 = vmatprep.subr.mxu0 0.0
    %1637 = vmatpush1.xpose.msra.mxu0 0.0
    %1638 = vmatprep.subr.mxu0 0.0
    %1639 = vmatpush1.xpose.msra.mxu0 0.0
    %1640 = vmatprep.subr.mxu0 0.0
    %1641 = vmatpush1.xpose.msra.mxu0 0.0
    %1642 = vmatprep.subr.mxu0 0.0
    %1643 = vmatpush1.xpose.msra.mxu0 0.0
    %1644 = vmatprep.subr.mxu0 0.0
    %1645 = vmatpush1.xpose.msra.mxu0 0.0
    %1646 = vmatprep.subr.mxu0 0.0
    %1647 = vmatpush1.xpose.msra.mxu0 0.0
    %1648 = vmatprep.subr.mxu0 0.0
    %1649 = vmatpush1.xpose.msra.mxu0 0.0
    %1650 = vmatprep.subr.mxu0 0.0
    %1651 = vmatpush1.xpose.msra.mxu0 0.0
    %1652 = vmatprep.subr.mxu0 0.0
    %1653 = vmatpush1.xpose.msra.mxu0 0.0
    %1654 = vmatprep.subr.mxu0 0.0
    %1655 = vmatpush1.xpose.msra.mxu0 0.0
    %1656 = vmatprep.subr.mxu0 0.0
    %1657 = vmatpush1.xpose.msra.mxu0 0.0
    %1658 = vmatprep.subr.mxu0 0.0
    %1659 = vmatpush1.xpose.msra.mxu0 0.0
    %1660 = vmatprep.subr.mxu0 0.0
    %1661 = vmatpush1.xpose.msra.mxu0 0.0
    %1662 = vmatprep.subr.mxu0 0.0
    %1663 = vmatpush1.xpose.msra.mxu0 0.0
    %1664 = vmatprep.subr.mxu0 0.0
    %1665 = vmatpush1.xpose.msra.mxu0 0.0
    %1666 = vmatprep.subr.mxu0 0.0
    %1667 = vmatpush1.xpose.msra.mxu0 0.0
    %1668 = vmatprep.subr.mxu0 0.0
    %1669 = vmatpush1.xpose.msra.mxu0 0.0
    %1670 = vmatprep.subr.mxu0 0.0
    %1671 = vmatpush1.xpose.msra.mxu0 0.0
    %1672 = vmatprep.subr.mxu0 0.0
    %1673 = vmatpush1.xpose.msra.mxu0 0.0
    %1674 = vmatprep.subr.mxu0 0.0
    %1675 = vmatpush1.xpose.msra.mxu0 0.0
    %1676 = vmatprep.subr.mxu0 0.0
    %1677 = vmatpush1.xpose.msra.mxu0 0.0
    %1678 = vmatprep.subr.mxu0 0.0
    %1679 = vmatpush1.xpose.msra.mxu0 0.0
    %1680 = vmatprep.mubr.f32.mxu0 0.0
    %1681 = vmatmul.mubr.f32.gmra.mrb[0].mxu0 %v1608
    %v1682 = vpop.f32.mrb[0].mxu0
    %v1683 = vadd.f32 0.0, %v1682
    %v1684 = vpop.f32.mrb[0].mxu0
    %1685 = vmatprep.mubr.f32.mxu0 0.0
    %1686 = vmatmul.mubr.f32.gmra.mrb[0].mxu0 %v1610
    %v1687 = vpop.f32.mrb[0].mxu0
    %v1688 = vadd.f32 0.0, %v1687
    %v1689 = vpop.f32.mrb[0].mxu0
    %1690 = vdwg.mxu0
    %v1691 = vsel %vm490, %v1592, -inf
    %1692 = vmax.xlane.f32.xlu0 %v1691
    %v1693 = vpop.xlane.xlu0 %1692
    %v1694 = vsel %vm490, %v1597, -inf
    %1695 = vmax.xlane.f32.xlu0 %v1694
    %v1696 = vpop.xlane.xlu0 %1695
    %v1697 = vsel %vm490, %v1683, -inf
    %1698 = vmax.xlane.f32.xlu0 %v1697
    %v1699 = vpop.xlane.xlu0 %1698
    %v1700 = vsel %vm490, %v1688, -inf
    %1701 = vmax.xlane.f32.xlu0 %v1700
    %v1702 = vpop.xlane.xlu0 %1701
    %v1703 = vsub.f32 %v1592, %v1693
    %v1704 = vsub.f32 %v1597, %v1696
    %v1705 = vsub.f32 %v1683, %v1699
    %v1706 = vsub.f32 %v1688, %v1702
    %v1707 = vmul.f32 %v1703, 1.442695
    %v1708 = vpow.pop %v1707
    %v1709 = vmul.f32 %v1704, 1.442695
    %v1710 = vpow.pop %v1709
    %v1711 = vmul.f32 %v1705, 1.442695
    %v1712 = vpow.pop %v1711
    %v1713 = vmul.f32 %v1706, 1.442695
    %v1714 = vpow.pop %v1713
    %v1715 = vsel %vm490, %v1708, 0.0
    %1716 = vadd.xlane.f32.xlu0 %v1715
    %v1717 = vpop.xlane.xlu0 %1716
    %v1718 = vsel %vm490, %v1710, 0.0
    %1719 = vadd.xlane.f32.xlu0 %v1718
    %v1720 = vpop.xlane.xlu0 %1719
    %v1721 = vsel %vm490, %v1712, 0.0
    %1722 = vadd.xlane.f32.xlu0 %v1721
    %v1723 = vpop.xlane.xlu0 %1722
    %v1724 = vsel %vm490, %v1714, 0.0
    %1725 = vadd.xlane.f32.xlu0 %v1724
    %v1726 = vpop.xlane.xlu0 %1725
    %v1727 = vrcp.pop %v1717
    %v1728 = vrcp.pop %v1720
    %v1729 = vrcp.pop %v1723
    %v1730 = vrcp.pop %v1726
    %v1731 = vmul.f32 %v1708, %v1727
    %v1732 = vmul.f32 %v1710, %v1728
    %v1733 = vmul.f32 %v1712, %v1729
    %v1734 = vmul.f32 %v1714, %v1730
    %1735 = vrot.lane.b32.xlu0 %v297, 40
    %v1736 = vpop.permute.xlu0 %1735
    %1737 = vrot.lane.b32.xlu0 %v300, 40
    %v1738 = vpop.permute.xlu0 %1737
    %v1742 = vsel %vm490, %v1731, 0
    %v1745 = vsel %vm490, %v1732, 0
    %1747 = vmatprep.subr.mxu0 0.0
    %1748 = vmatpush1.msra.mxu0 %v1736
    %1749 = vmatprep.subr.mxu0 0.0
    %1750 = vmatpush1.msra.mxu0 %v1738
    %1751 = vmatprep.subr.mxu0 0.0
    %1752 = vmatpush1.msra.mxu0 0.0
    %1753 = vmatprep.subr.mxu0 0.0
    %1754 = vmatpush1.msra.mxu0 0.0
    %1755 = vmatprep.subr.mxu0 0.0
    %1756 = vmatpush1.msra.mxu0 0.0
    %1757 = vmatprep.subr.mxu0 0.0
    %1758 = vmatpush1.msra.mxu0 0.0
    %1759 = vmatprep.subr.mxu0 0.0
    %1760 = vmatpush1.msra.mxu0 0.0
    %1761 = vmatprep.subr.mxu0 0.0
    %1762 = vmatpush1.msra.mxu0 0.0
    %1763 = vmatprep.subr.mxu0 0.0
    %1764 = vmatpush1.msra.mxu0 0.0
    %1765 = vmatprep.subr.mxu0 0.0
    %1766 = vmatpush1.msra.mxu0 0.0
    %1767 = vmatprep.subr.mxu0 0.0
    %1768 = vmatpush1.msra.mxu0 0.0
    %1769 = vmatprep.subr.mxu0 0.0
    %1770 = vmatpush1.msra.mxu0 0.0
    %1771 = vmatprep.subr.mxu0 0.0
    %1772 = vmatpush1.msra.mxu0 0.0
    %1773 = vmatprep.subr.mxu0 0.0
    %1774 = vmatpush1.msra.mxu0 0.0
    %1775 = vmatprep.subr.mxu0 0.0
    %1776 = vmatpush1.msra.mxu0 0.0
    %1777 = vmatprep.subr.mxu0 0.0
    %1778 = vmatpush1.msra.mxu0 0.0
    %1779 = vmatprep.subr.mxu0 0.0
    %1780 = vmatpush1.msra.mxu0 0.0
    %1781 = vmatprep.subr.mxu0 0.0
    %1782 = vmatpush1.msra.mxu0 0.0
    %1783 = vmatprep.subr.mxu0 0.0
    %1784 = vmatpush1.msra.mxu0 0.0
    %1785 = vmatprep.subr.mxu0 0.0
    %1786 = vmatpush1.msra.mxu0 0.0
    %1787 = vmatprep.subr.mxu0 0.0
    %1788 = vmatpush1.msra.mxu0 0.0
    %1789 = vmatprep.subr.mxu0 0.0
    %1790 = vmatpush1.msra.mxu0 0.0
    %1791 = vmatprep.subr.mxu0 0.0
    %1792 = vmatpush1.msra.mxu0 0.0
    %1793 = vmatprep.subr.mxu0 0.0
    %1794 = vmatpush1.msra.mxu0 0.0
    %1795 = vmatprep.subr.mxu0 0.0
    %1796 = vmatpush1.msra.mxu0 0.0
    %1797 = vmatprep.subr.mxu0 0.0
    %1798 = vmatpush1.msra.mxu0 0.0
    %1799 = vmatprep.subr.mxu0 0.0
    %1800 = vmatpush1.msra.mxu0 0.0
    %1801 = vmatprep.subr.mxu0 0.0
    %1802 = vmatpush1.msra.mxu0 0.0
    %1803 = vmatprep.subr.mxu0 0.0
    %1804 = vmatpush1.msra.mxu0 0.0
    %1805 = vmatprep.subr.mxu0 0.0
    %1806 = vmatpush1.msra.mxu0 0.0
    %1807 = vmatprep.subr.mxu0 0.0
    %1808 = vmatpush1.msra.mxu0 0.0
    %1809 = vmatprep.subr.mxu0 0.0
    %1810 = vmatpush1.msra.mxu0 0.0
    %1811 = vmatprep.mubr.f32.mxu0 0.0
    %1812 = vmatmul.mubr.f32.gmra.mrb[0].mxu0 %v1742
    %v1813 = vpop.f32.mrb[0].mxu0
    %v1814 = vadd.f32 0.0, %v1813
    %v1815 = vpop.f32.mrb[0].mxu0
    %1816 = vmatprep.mubr.f32.mxu0 0.0
    %1817 = vmatmul.mubr.f32.gmra.mrb[0].mxu0 %v1745
    %v1818 = vpop.f32.mrb[0].mxu0
    %v1819 = vadd.f32 0.0, %v1818
    %v1820 = vpop.f32.mrb[0].mxu0
    %1821 = vdwg.mxu0
    %1822 = vrot.lane.b32.xlu0 %v305, 40
    %v1823 = vpop.permute.xlu0 %1822
    %1824 = vrot.lane.b32.xlu0 %v308, 40
    %v1825 = vpop.permute.xlu0 %1824
    %v1829 = vsel %vm490, %v1733, 0
    %v1832 = vsel %vm490, %v1734, 0
    %1834 = vmatprep.subr.mxu0 0.0
    %1835 = vmatpush1.msra.mxu0 %v1823
    %1836 = vmatprep.subr.mxu0 0.0
    %1837 = vmatpush1.msra.mxu0 %v1825
    %1838 = vmatprep.subr.mxu0 0.0
    %1839 = vmatpush1.msra.mxu0 0.0
    %1840 = vmatprep.subr.mxu0 0.0
    %1841 = vmatpush1.msra.mxu0 0.0
    %1842 = vmatprep.subr.mxu0 0.0
    %1843 = vmatpush1.msra.mxu0 0.0
    %1844 = vmatprep.subr.mxu0 0.0
    %1845 = vmatpush1.msra.mxu0 0.0
    %1846 = vmatprep.subr.mxu0 0.0
    %1847 = vmatpush1.msra.mxu0 0.0
    %1848 = vmatprep.subr.mxu0 0.0
    %1849 = vmatpush1.msra.mxu0 0.0
    %1850 = vmatprep.subr.mxu0 0.0
    %1851 = vmatpush1.msra.mxu0 0.0
    %1852 = vmatprep.subr.mxu0 0.0
    %1853 = vmatpush1.msra.mxu0 0.0
    %1854 = vmatprep.subr.mxu0 0.0
    %1855 = vmatpush1.msra.mxu0 0.0
    %1856 = vmatprep.subr.mxu0 0.0
    %1857 = vmatpush1.msra.mxu0 0.0
    %1858 = vmatprep.subr.mxu0 0.0
    %1859 = vmatpush1.msra.mxu0 0.0
    %1860 = vmatprep.subr.mxu0 0.0
    %1861 = vmatpush1.msra.mxu0 0.0
    %1862 = vmatprep.subr.mxu0 0.0
    %1863 = vmatpush1.msra.mxu0 0.0
    %1864 = vmatprep.subr.mxu0 0.0
    %1865 = vmatpush1.msra.mxu0 0.0
    %1866 = vmatprep.subr.mxu0 0.0
    %1867 = vmatpush1.msra.mxu0 0.0
    %1868 = vmatprep.subr.mxu0 0.0
    %1869 = vmatpush1.msra.mxu0 0.0
    %1870 = vmatprep.subr.mxu0 0.0
    %1871 = vmatpush1.msra.mxu0 0.0
    %1872 = vmatprep.subr.mxu0 0.0
    %1873 = vmatpush1.msra.mxu0 0.0
    %1874 = vmatprep.subr.mxu0 0.0
    %1875 = vmatpush1.msra.mxu0 0.0
    %1876 = vmatprep.subr.mxu0 0.0
    %1877 = vmatpush1.msra.mxu0 0.0
    %1878 = vmatprep.subr.mxu0 0.0
    %1879 = vmatpush1.msra.mxu0 0.0
    %1880 = vmatprep.subr.mxu0 0.0
    %1881 = vmatpush1.msra.mxu0 0.0
    %1882 = vmatprep.subr.mxu0 0.0
    %1883 = vmatpush1.msra.mxu0 0.0
    %1884 = vmatprep.subr.mxu0 0.0
    %1885 = vmatpush1.msra.mxu0 0.0
    %1886 = vmatprep.subr.mxu0 0.0
    %1887 = vmatpush1.msra.mxu0 0.0
    %1888 = vmatprep.subr.mxu0 0.0
    %1889 = vmatpush1.msra.mxu0 0.0
    %1890 = vmatprep.subr.mxu0 0.0
    %1891 = vmatpush1.msra.mxu0 0.0
    %1892 = vmatprep.subr.mxu0 0.0
    %1893 = vmatpush1.msra.mxu0 0.0
    %1894 = vmatprep.subr.mxu0 0.0
    %1895 = vmatpush1.msra.mxu0 0.0
    %1896 = vmatprep.subr.mxu0 0.0
    %1897 = vmatpush1.msra.mxu0 0.0
    %1898 = vmatprep.mubr.f32.mxu0 0.0
    %1899 = vmatmul.mubr.f32.gmra.mrb[0].mxu0 %v1829
    %v1900 = vpop.f32.mrb[0].mxu0
    %v1901 = vadd.f32 0.0, %v1900
    %v1902 = vpop.f32.mrb[0].mxu0
    %1903 = vmatprep.mubr.f32.mxu0 0.0
    %1904 = vmatmul.mubr.f32.gmra.mrb[0].mxu0 %v1832
    %v1905 = vpop.f32.mrb[0].mxu0
    %v1906 = vadd.f32 0.0, %v1905
    %v1907 = vpop.f32.mrb[0].mxu0
    %1908 = vdwg.mxu0
    %1913 = vrot.lane.b32.xlu0 %v1014, 8
    %v1914 = vpop.permute.xlu0 %1913
    %1915 = vrot.lane.b32.xlu0 %v1019, 8
    %v1916 = vpop.permute.xlu0 %1915
    %1917 = vrot.lane.b32.xlu0 %v1101, 8
    %v1918 = vpop.permute.xlu0 %1917
    %1919 = vrot.lane.b32.xlu0 %v1106, 8
    %v1920 = vpop.permute.xlu0 %1919
    %1929 = vrot.lane.b32.xlu0 %v1414, 16
    %v1930 = vpop.permute.xlu0 %1929
    %1931 = vrot.lane.b32.xlu0 %v1419, 16
    %v1932 = vpop.permute.xlu0 %1931
    %1933 = vrot.lane.b32.xlu0 %v1501, 16
    %v1934 = vpop.permute.xlu0 %1933
    %1935 = vrot.lane.b32.xlu0 %v1506, 16
    %v1936 = vpop.permute.xlu0 %1935
    %1945 = vrot.lane.b32.xlu0 %v1814, 24
    %v1946 = vpop.permute.xlu0 %1945
    %1947 = vrot.lane.b32.xlu0 %v1819, 24
    %v1948 = vpop.permute.xlu0 %1947
    %1949 = vrot.lane.b32.xlu0 %v1901, 24
    %v1950 = vpop.permute.xlu0 %1949
    %1951 = vrot.lane.b32.xlu0 %v1906, 24
    %v1952 = vpop.permute.xlu0 %1951
    %v1957 = vsel %vm317, %v614, %v1914
    %v1958 = vsel %vm317, %v619, %v1916
    %v1959 = vsel %vm317, %v701, %v1918
    %v1960 = vsel %vm317, %v706, %v1920
    %v1961 = vsel %vm490, %v1957, %v1930
    %v1962 = vsel %vm490, %v1958, %v1932
    %v1963 = vsel %vm490, %v1959, %v1934
    %v1964 = vsel %vm490, %v1960, %v1936
    %vm1965 = vcmask 195584
    %v1966 = vsel %vm1965, %v1961, %v1946
    %v1967 = vsel %vm1965, %v1962, %v1948
    %v1968 = vsel %vm1965, %v1963, %v1950
    %v1969 = vsel %vm1965, %v1964, %v1952
    %v1970 = vpack.c.bf16 %v1967, %v1966
    %v1971 = vpack.c.bf16 %v1969, %v1968
    %v1972 = vld [vmem:[#allocation10] sm:$0xf]
    %v1973 = vld [vmem:[#allocation10 + $0x4] sm:$0xf]
    %v1974 = vld [vmem:[#allocation10 + $0x8] sm:$0xf]
    %v1975 = vld [vmem:[#allocation10 + $0xc] sm:$0xf]
    %v1976 = vlaneseq
    %v1977 = vshrl.u32 %v1976, 7
    %v1978 = vsub.s32 2, %v1977
    %v1979 = vrot.slane %v121, %v1978
    %v1984 = vunpack.c.l.b16 %v1972
    %v1985 = vunpack.c.l.b16 %v1973
    %v1986 = vunpack.c.l.b16 %v1974
    %v1987 = vunpack.c.l.b16 %v1975
    %v1988 = vpack.c.b16 %v1985, %v1984
    %v1989 = vpack.c.b16 %v1987, %v1986
    %vm1992 = vcmask 261120
    %v1994 = vsel %vm1992, %v1970, 0
    %v1997 = vsel %vm1992, %v1971, 0
    %1999 = vmatprep.subr.bf16.mxu0 0
    %2000 = vmatpush1.bf16.msra.mxu0 %v1988
    %2001 = vmatprep.subr.bf16.mxu0 0
    %2002 = vmatpush1.bf16.msra.mxu0 %v1989
    %2003 = vmatprep.subr.bf16.mxu0 0
    %2004 = vmatpush1.bf16.msra.mxu0 0
    %2005 = vmatprep.subr.bf16.mxu0 0
    %2006 = vmatpush1.bf16.msra.mxu0 0
    %2007 = vmatprep.subr.bf16.mxu0 0
    %2008 = vmatpush1.bf16.msra.mxu0 0
    %2009 = vmatprep.subr.bf16.mxu0 0
    %2010 = vmatpush1.bf16.msra.mxu0 0
    %2011 = vmatprep.subr.bf16.mxu0 0
    %2012 = vmatpush1.bf16.msra.mxu0 0
    %2013 = vmatprep.subr.bf16.mxu0 0
    %2014 = vmatpush1.bf16.msra.mxu0 0
    %2015 = vmatprep.subr.bf16.mxu0 0
    %2016 = vmatpush1.bf16.msra.mxu0 0
    %2017 = vmatprep.subr.bf16.mxu0 0
    %2018 = vmatpush1.bf16.msra.mxu0 0
    %2019 = vmatprep.subr.bf16.mxu0 0
    %2020 = vmatpush1.bf16.msra.mxu0 0
    %2021 = vmatprep.subr.bf16.mxu0 0
    %2022 = vmatpush1.bf16.msra.mxu0 0
    %2023 = vmatprep.subr.bf16.mxu0 0
    %2024 = vmatpush1.bf16.msra.mxu0 0
    %2025 = vmatprep.subr.bf16.mxu0 0
    %2026 = vmatpush1.bf16.msra.mxu0 0
    %2027 = vmatprep.subr.bf16.mxu0 0
    %2028 = vmatpush1.bf16.msra.mxu0 0
    %2029 = vmatprep.subr.bf16.mxu0 0
    %2030 = vmatpush1.bf16.msra.mxu0 0
    %2031 = vmatprep.mubr.bf16.mxu0 0
    %2032 = vmatmul.mubr.bf16.gmra.mrb[0].mxu0 %v1994
    %v2033 = vpop.f32.mrb[0].mxu0
    %v2034 = vadd.f32 %v1979, %v2033
    %v2035 = vpop.f32.mrb[0].mxu0
    %v2036 = vpop.f32.mrb[0].mxu0
    %v2037 = vadd.f32 %v1979, %v2036
    %v2038 = vpop.f32.mrb[0].mxu0
    %2039 = vmatprep.mubr.bf16.mxu0 0
    %2040 = vmatmul.mubr.bf16.gmra.mrb[0].mxu0 %v1997
    %v2041 = vpop.f32.mrb[0].mxu0
    %v2042 = vadd.f32 %v1979, %v2041
    %v2043 = vpop.f32.mrb[0].mxu0
    %v2044 = vpop.f32.mrb[0].mxu0
    %v2045 = vadd.f32 %v1979, %v2044
    %v2046 = vpop.f32.mrb[0].mxu0
    %2047 = vdwg.mxu0
    %v2048 = vadd.f32 %v124, %v2034
    %v2049 = vadd.f32 %v125, %v2037
    %v2050 = vadd.f32 %v126, %v2042
    %v2051 = vadd.f32 %v127, %v2045
    %2052 = vadd.xlane.f32.xlu0 %v2048
    %v2053 = vpop.xlane.xlu0 %2052
    %2054 = vadd.xlane.f32.xlu0 %v2049
    %v2055 = vpop.xlane.xlu0 %2054
    %2056 = vadd.xlane.f32.xlu0 %v2050
    %v2057 = vpop.xlane.xlu0 %2056
    %2058 = vadd.xlane.f32.xlu0 %v2051
    %v2059 = vpop.xlane.xlu0 %2058
    %v2060 = vmul.f32 %v2053, 0.03125
    %v2061 = vmul.f32 %v2055, 0.03125
    %v2062 = vmul.f32 %v2057, 0.03125
    %v2063 = vmul.f32 %v2059, 0.03125
    %v2064 = vmul.f32 %v2048, %v2048
    %v2065 = vmul.f32 %v2049, %v2049
    %v2066 = vmul.f32 %v2050, %v2050
    %v2067 = vmul.f32 %v2051, %v2051
    %2068 = vadd.xlane.f32.xlu0 %v2064
    %v2069 = vpop.xlane.xlu0 %2068
    %2070 = vadd.xlane.f32.xlu0 %v2065
    %v2071 = vpop.xlane.xlu0 %2070
    %2072 = vadd.xlane.f32.xlu0 %v2066
    %v2073 = vpop.xlane.xlu0 %2072
    %2074 = vadd.xlane.f32.xlu0 %v2067
    %v2075 = vpop.xlane.xlu0 %2074
    %v2076 = vmul.f32 %v2069, 0.03125
    %v2077 = vmul.f32 %v2071, 0.03125
    %v2078 = vmul.f32 %v2073, 0.03125
    %v2079 = vmul.f32 %v2075, 0.03125
    %v2080 = vmul.f32 %v2060, %v2060
    %v2081 = vmul.f32 %v2061, %v2061
    %v2082 = vmul.f32 %v2062, %v2062
    %v2083 = vmul.f32 %v2063, %v2063
    %v2084 = vsub.f32 %v2076, %v2080
    %v2085 = vsub.f32 %v2077, %v2081
    %v2086 = vsub.f32 %v2078, %v2082
    %v2087 = vsub.f32 %v2079, %v2083
    %v2088 = vsub.f32 %v2048, %v2060
    %v2089 = vsub.f32 %v2049, %v2061
    %v2090 = vsub.f32 %v2050, %v2062
    %v2091 = vsub.f32 %v2051, %v2063
    %v2092 = vadd.f32 %v2084, 1e-05
    %v2093 = vadd.f32 %v2085, 1e-05
    %v2094 = vadd.f32 %v2086, 1e-05
    %v2095 = vadd.f32 %v2087, 1e-05
    %v2096 = vrsqrt.pop %v2092
    %v2097 = vrsqrt.pop %v2093
    %v2098 = vrsqrt.pop %v2094
    %v2099 = vrsqrt.pop %v2095
    %v2100 = vmul.f32 %v2088, %v2096
    %v2101 = vmul.f32 %v2089, %v2097
    %v2102 = vmul.f32 %v2090, %v2098
    %v2103 = vmul.f32 %v2091, %v2099
    %v2104 = vlaneseq
    %v2105 = vshrl.u32 %v2104, 7
    %v2106 = vsub.s32 3, %v2105
    %v2107 = vrot.slane %v121, %v2106
    %v2108 = vmul.f32 %v2100, %v2107
    %v2109 = vmul.f32 %v2101, %v2107
    %v2110 = vmul.f32 %v2102, %v2107
    %v2111 = vmul.f32 %v2103, %v2107
    %v2112 = vlaneseq
    %v2113 = vshrl.u32 %v2112, 7
    %v2114 = vsub.s32 4, %v2113
    %v2115 = vrot.slane %v121, %v2114
    %v2116 = vadd.f32 %v2108, %v2115
    %v2117 = vadd.f32 %v2109, %v2115
    %v2118 = vadd.f32 %v2110, %v2115
    %v2119 = vadd.f32 %v2111, %v2115
    %v2120 = vpack.c.bf16 %v2117, %v2116
    %v2121 = vpack.c.bf16 %v2119, %v2118
    %v2122 = vld [vmem:[#allocation11] sm:$0xf]
    %v2123 = vld [vmem:[#allocation11 + $0x4] sm:$0xf]
    %v2124 = vld [vmem:[#allocation11 + $0x8] sm:$0xf]
    %v2125 = vld [vmem:[#allocation11 + $0xc] sm:$0xf]
    %v2126 = vld [vmem:[#allocation11 + $0x10] sm:$0xf]
    %v2127 = vld [vmem:[#allocation11 + $0x14] sm:$0xf]
    %v2128 = vld [vmem:[#allocation11 + $0x18] sm:$0xf]
    %v2129 = vld [vmem:[#allocation11 + $0x1c] sm:$0xf]
    %v2130 = vld [vmem:[#allocation11 + $0x20] sm:$0xf]
    %v2131 = vld [vmem:[#allocation11 + $0x24] sm:$0xf]
    %v2132 = vld [vmem:[#allocation11 + $0x28] sm:$0xf]
    %v2133 = vld [vmem:[#allocation11 + $0x2c] sm:$0xf]
    %v2134 = vld [vmem:[#allocation11 + $0x30] sm:$0xf]
    %v2135 = vld [vmem:[#allocation11 + $0x34] sm:$0xf]
    %v2136 = vld [vmem:[#allocation11 + $0x38] sm:$0xf]
    %v2137 = vld [vmem:[#allocation11 + $0x3c] sm:$0xf]
    %v2138 = vlaneseq
    %v2139 = vshrl.u32 %v2138, 7
    %v2140 = vsub.s32 0, %v2139
    %v2141 = vrot.slane %v123, %v2140
    %v2158 = vunpack.c.l.b16 %v2122
    %v2159 = vunpack.c.l.b16 %v2123
    %v2160 = vunpack.c.l.b16 %v2124
    %v2161 = vunpack.c.l.b16 %v2125
    %v2162 = vunpack.c.l.b16 %v2126
    %v2163 = vunpack.c.l.b16 %v2127
    %v2164 = vunpack.c.l.b16 %v2128
    %v2165 = vunpack.c.l.b16 %v2129
    %v2166 = vunpack.c.l.b16 %v2130
    %v2167 = vunpack.c.l.b16 %v2131
    %v2168 = vunpack.c.l.b16 %v2132
    %v2169 = vunpack.c.l.b16 %v2133
    %v2170 = vunpack.c.l.b16 %v2134
    %v2171 = vunpack.c.l.b16 %v2135
    %v2172 = vunpack.c.l.b16 %v2136
    %v2173 = vunpack.c.l.b16 %v2137
    %v2174 = vpack.c.b16 %v2159, %v2158
    %v2175 = vpack.c.b16 %v2161, %v2160
    %v2176 = vpack.c.b16 %v2163, %v2162
    %v2177 = vpack.c.b16 %v2165, %v2164
    %v2178 = vpack.c.b16 %v2167, %v2166
    %v2179 = vpack.c.b16 %v2169, %v2168
    %v2180 = vpack.c.b16 %v2171, %v2170
    %v2181 = vpack.c.b16 %v2173, %v2172
    %2190 = vmatprep.subr.bf16.mxu0 0
    %2191 = vmatpush1.bf16.msra.mxu0 %v2174
    %2192 = vmatprep.subr.bf16.mxu0 0
    %2193 = vmatpush1.bf16.msra.mxu0 %v2175
    %2194 = vmatprep.subr.bf16.mxu0 0
    %2195 = vmatpush1.bf16.msra.mxu0 %v2176
    %2196 = vmatprep.subr.bf16.mxu0 0
    %2197 = vmatpush1.bf16.msra.mxu0 %v2177
    %2198 = vmatprep.subr.bf16.mxu0 0
    %2199 = vmatpush1.bf16.msra.mxu0 %v2178
    %2200 = vmatprep.subr.bf16.mxu0 0
    %2201 = vmatpush1.bf16.msra.mxu0 %v2179
    %2202 = vmatprep.subr.bf16.mxu0 0
    %2203 = vmatpush1.bf16.msra.mxu0 %v2180
    %2204 = vmatprep.subr.bf16.mxu0 0
    %2205 = vmatpush1.bf16.msra.mxu0 %v2181
    %2206 = vmatprep.subr.bf16.mxu0 0
    %2207 = vmatpush1.bf16.msra.mxu0 0
    %2208 = vmatprep.subr.bf16.mxu0 0
    %2209 = vmatpush1.bf16.msra.mxu0 0
    %2210 = vmatprep.subr.bf16.mxu0 0
    %2211 = vmatpush1.bf16.msra.mxu0 0
    %2212 = vmatprep.subr.bf16.mxu0 0
    %2213 = vmatpush1.bf16.msra.mxu0 0
    %2214 = vmatprep.subr.bf16.mxu0 0
    %2215 = vmatpush1.bf16.msra.mxu0 0
    %2216 = vmatprep.subr.bf16.mxu0 0
    %2217 = vmatpush1.bf16.msra.mxu0 0
    %2218 = vmatprep.subr.bf16.mxu0 0
    %2219 = vmatpush1.bf16.msra.mxu0 0
    %2220 = vmatprep.subr.bf16.mxu0 0
    %2221 = vmatpush1.bf16.msra.mxu0 0
    %2222 = vmatprep.mubr.bf16.mxu0 0
    %2223 = vmatmul.mubr.bf16.gmra.mrb[0].mxu0 %v2120
    %v2224 = vpop.f32.mrb[0].mxu0
    %v2225 = vadd.f32 %v2141, %v2224
    %v2226 = vpop.f32.mrb[0].mxu0
    %v2227 = vpop.f32.mrb[0].mxu0
    %v2228 = vadd.f32 %v2141, %v2227
    %v2229 = vpop.f32.mrb[0].mxu0
    %2230 = vmatprep.mubr.bf16.mxu0 0
    %2231 = vmatmul.mubr.bf16.gmra.mrb[0].mxu0 %v2121
    %v2232 = vpop.f32.mrb[0].mxu0
    %v2233 = vadd.f32 %v2141, %v2232
    %v2234 = vpop.f32.mrb[0].mxu0
    %v2235 = vpop.f32.mrb[0].mxu0
    %v2236 = vadd.f32 %v2141, %v2235
    %v2237 = vpop.f32.mrb[0].mxu0
    %2238 = vdwg.mxu0
    %v2239 = vmul.f32 %v2225, 0.70710677
    %v2240 = vmul.f32 %v2228, 0.70710677
    %v2241 = vmul.f32 %v2233, 0.70710677
    %v2242 = vmul.f32 %v2236, 0.70710677
    %v2243 = vand.u32 2147483647, %v2239
    %v2244 = vand.u32 2147483647, %v2240
    %v2245 = vand.u32 2147483647, %v2241
    %v2246 = vand.u32 2147483647, %v2242
    %v2247 = vmul.f32 %v2243, 0.3275911
    %v2248 = vmul.f32 %v2244, 0.3275911
    %v2249 = vmul.f32 %v2245, 0.3275911
    %v2250 = vmul.f32 %v2246, 0.3275911
    %v2251 = vadd.f32 %v2247, 1.0
    %v2252 = vadd.f32 %v2248, 1.0
    %v2253 = vadd.f32 %v2249, 1.0
    %v2254 = vadd.f32 %v2250, 1.0
    %v2255 = vrcp.pop %v2251
    %v2256 = vmul.f32 1.0, %v2255
    %v2257 = vrcp.pop %v2252
    %v2258 = vmul.f32 1.0, %v2257
    %v2259 = vrcp.pop %v2253
    %v2260 = vmul.f32 1.0, %v2259
    %v2261 = vrcp.pop %v2254
    %v2262 = vmul.f32 1.0, %v2261
    %v2263 = vmul.f32 %v2256, 1.0614054
    %v2264 = vmul.f32 %v2258, 1.0614054
    %v2265 = vmul.f32 %v2260, 1.0614054
    %v2266 = vmul.f32 %v2262, 1.0614054
    %v2267 = vsub.f32 %v2263, 1.4531521
    %v2268 = vsub.f32 %v2264, 1.4531521
    %v2269 = vsub.f32 %v2265, 1.4531521
    %v2270 = vsub.f32 %v2266, 1.4531521
    %v2271 = vmul.f32 %v2267, %v2256
    %v2272 = vmul.f32 %v2268, %v2258
    %v2273 = vmul.f32 %v2269, %v2260
    %v2274 = vmul.f32 %v2270, %v2262
    %v2275 = vadd.f32 %v2271, 1.4214138
    %v2276 = vadd.f32 %v2272, 1.4214138
    %v2277 = vadd.f32 %v2273, 1.4214138
    %v2278 = vadd.f32 %v2274, 1.4214138
    %v2279 = vmul.f32 %v2275, %v2256
    %v2280 = vmul.f32 %v2276, %v2258
    %v2281 = vmul.f32 %v2277, %v2260
    %v2282 = vmul.f32 %v2278, %v2262
    %v2283 = vsub.f32 %v2279, 0.28449672
    %v2284 = vsub.f32 %v2280, 0.28449672
    %v2285 = vsub.f32 %v2281, 0.28449672
    %v2286 = vsub.f32 %v2282, 0.28449672
    %v2287 = vmul.f32 %v2283, %v2256
    %v2288 = vmul.f32 %v2284, %v2258
    %v2289 = vmul.f32 %v2285, %v2260
    %v2290 = vmul.f32 %v2286, %v2262
    %v2291 = vadd.f32 %v2287, 0.2548296
    %v2292 = vadd.f32 %v2288, 0.2548296
    %v2293 = vadd.f32 %v2289, 0.2548296
    %v2294 = vadd.f32 %v2290, 0.2548296
    %v2295 = vmul.f32 %v2291, %v2256
    %v2296 = vmul.f32 %v2292, %v2258
    %v2297 = vmul.f32 %v2293, %v2260
    %v2298 = vmul.f32 %v2294, %v2262
    %v2299 = vsub.f32 0.0, %v2243
    %v2300 = vsub.f32 0.0, %v2244
    %v2301 = vsub.f32 0.0, %v2245
    %v2302 = vsub.f32 0.0, %v2246
    %v2303 = vmul.f32 %v2299, %v2243
    %v2304 = vmul.f32 %v2300, %v2244
    %v2305 = vmul.f32 %v2301, %v2245
    %v2306 = vmul.f32 %v2302, %v2246
    %v2307 = vmul.f32 %v2303, 1.442695
    %v2308 = vpow.pop %v2307
    %v2309 = vmul.f32 %v2304, 1.442695
    %v2310 = vpow.pop %v2309
    %v2311 = vmul.f32 %v2305, 1.442695
    %v2312 = vpow.pop %v2311
    %v2313 = vmul.f32 %v2306, 1.442695
    %v2314 = vpow.pop %v2313
    %v2315 = vmul.f32 %v2295, %v2308
    %v2316 = vmul.f32 %v2296, %v2310
    %v2317 = vmul.f32 %v2297, %v2312
    %v2318 = vmul.f32 %v2298, %v2314
    %v2319 = vsub.f32 1.0, %v2315
    %v2320 = vsub.f32 1.0, %v2316
    %v2321 = vsub.f32 1.0, %v2317
    %v2322 = vsub.f32 1.0, %v2318
    %vm2323 = vcmp.ge.f32.partialorder %v2239, 0.0
    %vm2324 = vcmp.ge.f32.partialorder %v2240, 0.0
    %vm2325 = vcmp.ge.f32.partialorder %v2241, 0.0
    %vm2326 = vcmp.ge.f32.partialorder %v2242, 0.0
    %v2327 = vsub.f32 0.0, %v2319
    %v2328 = vsub.f32 0.0, %v2320
    %v2329 = vsub.f32 0.0, %v2321
    %v2330 = vsub.f32 0.0, %v2322
    %v2331 = vsel %vm2323, %v2319, %v2327
    %v2332 = vsel %vm2324, %v2320, %v2328
    %v2333 = vsel %vm2325, %v2321, %v2329
    %v2334 = vsel %vm2326, %v2322, %v2330
    %v2335 = vmul.f32 %v2225, 0.5
    %v2336 = vmul.f32 %v2228, 0.5
    %v2337 = vmul.f32 %v2233, 0.5
    %v2338 = vmul.f32 %v2236, 0.5
    %v2339 = vadd.f32 %v2331, 1.0
    %v2340 = vadd.f32 %v2332, 1.0
    %v2341 = vadd.f32 %v2333, 1.0
    %v2342 = vadd.f32 %v2334, 1.0
    %v2343 = vmul.f32 %v2335, %v2339
    %v2344 = vmul.f32 %v2336, %v2340
    %v2345 = vmul.f32 %v2337, %v2341
    %v2346 = vmul.f32 %v2338, %v2342
    %v2347 = vpack.c.bf16 %v2344, %v2343
    %v2348 = vpack.c.bf16 %v2346, %v2345
    %v2349 = vld [vmem:[#allocation13] sm:$0xf]
    %v2350 = vld [vmem:[#allocation13 + $0x4] sm:$0xf]
    %v2351 = vld [vmem:[#allocation13 + $0x8] sm:$0xf]
    %v2352 = vld [vmem:[#allocation13 + $0xc] sm:$0xf]
    %v2353 = vld [vmem:[#allocation13 + $0x10] sm:$0xf]
    %v2354 = vld [vmem:[#allocation13 + $0x14] sm:$0xf]
    %v2355 = vld [vmem:[#allocation13 + $0x18] sm:$0xf]
    %v2356 = vld [vmem:[#allocation13 + $0x1c] sm:$0xf]
    %v2357 = vld [vmem:[#allocation13 + $0x20] sm:$0xf]
    %v2358 = vld [vmem:[#allocation13 + $0x24] sm:$0xf]
    %v2359 = vld [vmem:[#allocation13 + $0x28] sm:$0xf]
    %v2360 = vld [vmem:[#allocation13 + $0x2c] sm:$0xf]
    %v2361 = vld [vmem:[#allocation13 + $0x30] sm:$0xf]
    %v2362 = vld [vmem:[#allocation13 + $0x34] sm:$0xf]
    %v2363 = vld [vmem:[#allocation13 + $0x38] sm:$0xf]
    %v2364 = vld [vmem:[#allocation13 + $0x3c] sm:$0xf]
    %v2365 = vlaneseq
    %v2366 = vshrl.u32 %v2365, 7
    %v2367 = vsub.s32 5, %v2366
    %v2368 = vrot.slane %v121, %v2367
    %v2385 = vunpack.c.l.b16 %v2349
    %v2386 = vunpack.c.l.b16 %v2350
    %v2387 = vunpack.c.l.b16 %v2351
    %v2388 = vunpack.c.l.b16 %v2352
    %v2389 = vunpack.c.l.b16 %v2353
    %v2390 = vunpack.c.l.b16 %v2354
    %v2391 = vunpack.c.l.b16 %v2355
    %v2392 = vunpack.c.l.b16 %v2356
    %v2393 = vunpack.c.l.b16 %v2357
    %v2394 = vunpack.c.l.b16 %v2358
    %v2395 = vunpack.c.l.b16 %v2359
    %v2396 = vunpack.c.l.b16 %v2360
    %v2397 = vunpack.c.l.b16 %v2361
    %v2398 = vunpack.c.l.b16 %v2362
    %v2399 = vunpack.c.l.b16 %v2363
    %v2400 = vunpack.c.l.b16 %v2364
    %v2401 = vpack.c.b16 %v2386, %v2385
    %v2402 = vpack.c.b16 %v2388, %v2387
    %v2403 = vpack.c.b16 %v2390, %v2389
    %v2404 = vpack.c.b16 %v2392, %v2391
    %v2405 = vpack.c.b16 %v2394, %v2393
    %v2406 = vpack.c.b16 %v2396, %v2395
    %v2407 = vpack.c.b16 %v2398, %v2397
    %v2408 = vpack.c.b16 %v2400, %v2399
    %2417 = vmatprep.subr.bf16.mxu0 0
    %2418 = vmatpush1.bf16.msra.mxu0 %v2401
    %2419 = vmatprep.subr.bf16.mxu0 0
    %2420 = vmatpush1.bf16.msra.mxu0 %v2402
    %2421 = vmatprep.subr.bf16.mxu0 0
    %2422 = vmatpush1.bf16.msra.mxu0 %v2403
    %2423 = vmatprep.subr.bf16.mxu0 0
    %2424 = vmatpush1.bf16.msra.mxu0 %v2404
    %2425 = vmatprep.subr.bf16.mxu0 0
    %2426 = vmatpush1.bf16.msra.mxu0 %v2405
    %2427 = vmatprep.subr.bf16.mxu0 0
    %2428 = vmatpush1.bf16.msra.mxu0 %v2406
    %2429 = vmatprep.subr.bf16.mxu0 0
    %2430 = vmatpush1.bf16.msra.mxu0 %v2407
    %2431 = vmatprep.subr.bf16.mxu0 0
    %2432 = vmatpush1.bf16.msra.mxu0 %v2408
    %2433 = vmatprep.subr.bf16.mxu0 0
    %2434 = vmatpush1.bf16.msra.mxu0 0
    %2435 = vmatprep.subr.bf16.mxu0 0
    %2436 = vmatpush1.bf16.msra.mxu0 0
    %2437 = vmatprep.subr.bf16.mxu0 0
    %2438 = vmatpush1.bf16.msra.mxu0 0
    %2439 = vmatprep.subr.bf16.mxu0 0
    %2440 = vmatpush1.bf16.msra.mxu0 0
    %2441 = vmatprep.subr.bf16.mxu0 0
    %2442 = vmatpush1.bf16.msra.mxu0 0
    %2443 = vmatprep.subr.bf16.mxu0 0
    %2444 = vmatpush1.bf16.msra.mxu0 0
    %2445 = vmatprep.subr.bf16.mxu0 0
    %2446 = vmatpush1.bf16.msra.mxu0 0
    %2447 = vmatprep.subr.bf16.mxu0 0
    %2448 = vmatpush1.bf16.msra.mxu0 0
    %2449 = vmatprep.mubr.bf16.mxu0 0
    %2450 = vmatmul.mubr.bf16.gmra.mrb[0].mxu0 %v2347
    %v2451 = vpop.f32.mrb[0].mxu0
    %v2452 = vadd.f32 %v2368, %v2451
    %v2453 = vpop.f32.mrb[0].mxu0
    %v2454 = vpop.f32.mrb[0].mxu0
    %v2455 = vadd.f32 %v2368, %v2454
    %v2456 = vpop.f32.mrb[0].mxu0
    %2457 = vmatprep.mubr.bf16.mxu0 0
    %2458 = vmatmul.mubr.bf16.gmra.mrb[0].mxu0 %v2348
    %v2459 = vpop.f32.mrb[0].mxu0
    %v2460 = vadd.f32 %v2368, %v2459
    %v2461 = vpop.f32.mrb[0].mxu0
    %v2462 = vpop.f32.mrb[0].mxu0
    %v2463 = vadd.f32 %v2368, %v2462
    %v2464 = vpop.f32.mrb[0].mxu0
    %2465 = vdwg.mxu0
    %v2466 = vadd.f32 %v2048, %v2452
    %v2467 = vadd.f32 %v2049, %v2455
    %v2468 = vadd.f32 %v2050, %v2460
    %v2469 = vadd.f32 %v2051, %v2463
    %2470 = vadd.xlane.f32.xlu0 %v2466
    %v2471 = vpop.xlane.xlu0 %2470
    %2472 = vadd.xlane.f32.xlu0 %v2467
    %v2473 = vpop.xlane.xlu0 %2472
    %2474 = vadd.xlane.f32.xlu0 %v2468
    %v2475 = vpop.xlane.xlu0 %2474
    %2476 = vadd.xlane.f32.xlu0 %v2469
    %v2477 = vpop.xlane.xlu0 %2476
    %v2478 = vmul.f32 %v2471, 0.03125
    %v2479 = vmul.f32 %v2473, 0.03125
    %v2480 = vmul.f32 %v2475, 0.03125
    %v2481 = vmul.f32 %v2477, 0.03125
    %v2482 = vmul.f32 %v2466, %v2466
    %v2483 = vmul.f32 %v2467, %v2467
    %v2484 = vmul.f32 %v2468, %v2468
    %v2485 = vmul.f32 %v2469, %v2469
    %2486 = vadd.xlane.f32.xlu0 %v2482
    %v2487 = vpop.xlane.xlu0 %2486
    %2488 = vadd.xlane.f32.xlu0 %v2483
    %v2489 = vpop.xlane.xlu0 %2488
    %2490 = vadd.xlane.f32.xlu0 %v2484
    %v2491 = vpop.xlane.xlu0 %2490
    %2492 = vadd.xlane.f32.xlu0 %v2485
    %v2493 = vpop.xlane.xlu0 %2492
    %v2494 = vmul.f32 %v2487, 0.03125
    %v2495 = vmul.f32 %v2489, 0.03125
    %v2496 = vmul.f32 %v2491, 0.03125
    %v2497 = vmul.f32 %v2493, 0.03125
    %v2498 = vmul.f32 %v2478, %v2478
    %v2499 = vmul.f32 %v2479, %v2479
    %v2500 = vmul.f32 %v2480, %v2480
    %v2501 = vmul.f32 %v2481, %v2481
    %v2502 = vsub.f32 %v2494, %v2498
    %v2503 = vsub.f32 %v2495, %v2499
    %v2504 = vsub.f32 %v2496, %v2500
    %v2505 = vsub.f32 %v2497, %v2501
    %v2506 = vsub.f32 %v2466, %v2478
    %v2507 = vsub.f32 %v2467, %v2479
    %v2508 = vsub.f32 %v2468, %v2480
    %v2509 = vsub.f32 %v2469, %v2481
    %v2510 = vadd.f32 %v2502, 1e-05
    %v2511 = vadd.f32 %v2503, 1e-05
    %v2512 = vadd.f32 %v2504, 1e-05
    %v2513 = vadd.f32 %v2505, 1e-05
    %v2514 = vrsqrt.pop %v2510
    %v2515 = vrsqrt.pop %v2511
    %v2516 = vrsqrt.pop %v2512
    %v2517 = vrsqrt.pop %v2513
    %v2518 = vmul.f32 %v2506, %v2514
    %v2519 = vmul.f32 %v2507, %v2515
    %v2520 = vmul.f32 %v2508, %v2516
    %v2521 = vmul.f32 %v2509, %v2517
    %v2522 = vlaneseq
    %v2523 = vshrl.u32 %v2522, 7
    %v2524 = vsub.s32 6, %v2523
    %v2525 = vrot.slane %v121, %v2524
    %v2526 = vmul.f32 %v2518, %v2525
    %v2527 = vmul.f32 %v2519, %v2525
    %v2528 = vmul.f32 %v2520, %v2525
    %v2529 = vmul.f32 %v2521, %v2525
    %v2530 = vlaneseq
    %v2531 = vshrl.u32 %v2530, 7
    %v2532 = vsub.s32 7, %v2531
    %v2533 = vrot.slane %v121, %v2532
    %v2534 = vadd.f32 %v2526, %v2533
    %v2535 = vadd.f32 %v2527, %v2533
    %v2536 = vadd.f32 %v2528, %v2533
    %v2537 = vadd.f32 %v2529, %v2533
    %v2538 = vpack.c.bf16 %v2535, %v2534
    %v2539 = vpack.c.bf16 %v2537, %v2536
    %s2540 = scalar_lea.vmem [#allocation8], 64
    %v2541 = vld [vmem:[%s2540] sm:$0xf]
    %v2542 = vld [vmem:[%s2540 + $0x4] sm:$0xf]
    %v2543 = vld [vmem:[%s2540 + $0x8] sm:$0xf]
    %v2544 = vld [vmem:[%s2540 + $0xc] sm:$0xf]
    %v2545 = vld [vmem:[%s2540 + $0x10] sm:$0xf]
    %v2546 = vld [vmem:[%s2540 + $0x14] sm:$0xf]
    %v2547 = vld [vmem:[%s2540 + $0x18] sm:$0xf]
    %v2548 = vld [vmem:[%s2540 + $0x1c] sm:$0xf]
    %v2549 = vld [vmem:[%s2540 + $0x20] sm:$0xf]
    %v2550 = vld [vmem:[%s2540 + $0x24] sm:$0xf]
    %v2551 = vld [vmem:[%s2540 + $0x28] sm:$0xf]
    %v2552 = vld [vmem:[%s2540 + $0x2c] sm:$0xf]
    %v2553 = vld [vmem:[%s2540 + $0x30] sm:$0xf]
    %v2554 = vld [vmem:[%s2540 + $0x34] sm:$0xf]
    %v2555 = vld [vmem:[%s2540 + $0x38] sm:$0xf]
    %v2556 = vld [vmem:[%s2540 + $0x3c] sm:$0xf]
    %v2573 = vunpack.c.l.b16 %v2541
    %v2574 = vunpack.c.l.b16 %v2542
    %v2575 = vunpack.c.l.b16 %v2543
    %v2576 = vunpack.c.l.b16 %v2544
    %v2577 = vunpack.c.l.b16 %v2545
    %v2578 = vunpack.c.l.b16 %v2546
    %v2579 = vunpack.c.l.b16 %v2547
    %v2580 = vunpack.c.l.b16 %v2548
    %v2581 = vunpack.c.l.b16 %v2549
    %v2582 = vunpack.c.l.b16 %v2550
    %v2583 = vunpack.c.l.b16 %v2551
    %v2584 = vunpack.c.l.b16 %v2552
    %v2585 = vunpack.c.l.b16 %v2553
    %v2586 = vunpack.c.l.b16 %v2554
    %v2587 = vunpack.c.l.b16 %v2555
    %v2588 = vunpack.c.l.b16 %v2556
    %v2589 = vpack.c.b16 %v2574, %v2573
    %v2590 = vpack.c.b16 %v2576, %v2575
    %v2591 = vpack.c.b16 %v2578, %v2577
    %v2592 = vpack.c.b16 %v2580, %v2579
    %v2593 = vpack.c.b16 %v2582, %v2581
    %v2594 = vpack.c.b16 %v2584, %v2583
    %v2595 = vpack.c.b16 %v2586, %v2585
    %v2596 = vpack.c.b16 %v2588, %v2587
    %2605 = vmatprep.subr.bf16.mxu0 0
    %2606 = vmatpush1.bf16.msra.mxu0 %v2589
    %2607 = vmatprep.subr.bf16.mxu0 0
    %2608 = vmatpush1.bf16.msra.mxu0 %v2590
    %2609 = vmatprep.subr.bf16.mxu0 0
    %2610 = vmatpush1.bf16.msra.mxu0 %v2591
    %2611 = vmatprep.subr.bf16.mxu0 0
    %2612 = vmatpush1.bf16.msra.mxu0 %v2592
    %2613 = vmatprep.subr.bf16.mxu0 0
    %2614 = vmatpush1.bf16.msra.mxu0 %v2593
    %2615 = vmatprep.subr.bf16.mxu0 0
    %2616 = vmatpush1.bf16.msra.mxu0 %v2594
    %2617 = vmatprep.subr.bf16.mxu0 0
    %2618 = vmatpush1.bf16.msra.mxu0 %v2595
    %2619 = vmatprep.subr.bf16.mxu0 0
    %2620 = vmatpush1.bf16.msra.mxu0 %v2596
    %2621 = vmatprep.subr.bf16.mxu0 0
    %2622 = vmatpush1.bf16.msra.mxu0 0
    %2623 = vmatprep.subr.bf16.mxu0 0
    %2624 = vmatpush1.bf16.msra.mxu0 0
    %2625 = vmatprep.subr.bf16.mxu0 0
    %2626 = vmatpush1.bf16.msra.mxu0 0
    %2627 = vmatprep.subr.bf16.mxu0 0
    %2628 = vmatpush1.bf16.msra.mxu0 0
    %2629 = vmatprep.subr.bf16.mxu0 0
    %2630 = vmatpush1.bf16.msra.mxu0 0
    %2631 = vmatprep.subr.bf16.mxu0 0
    %2632 = vmatpush1.bf16.msra.mxu0 0
    %2633 = vmatprep.subr.bf16.mxu0 0
    %2634 = vmatpush1.bf16.msra.mxu0 0
    %2635 = vmatprep.subr.bf16.mxu0 0
    %2636 = vmatpush1.bf16.msra.mxu0 0
    %2637 = vmatprep.mubr.bf16.mxu0 0
    %2638 = vmatmul.mubr.bf16.gmra.mrb[0].mxu0 %v2538
    %v2639 = vpop.f32.mrb[0].mxu0
    %v2640 = vadd.f32 0.0, %v2639
    %v2641 = vpop.f32.mrb[0].mxu0
    %v2642 = vpop.f32.mrb[0].mxu0
    %v2643 = vadd.f32 0.0, %v2642
    %v2644 = vpop.f32.mrb[0].mxu0
    %2645 = vmatprep.mubr.bf16.mxu0 0
    %2646 = vmatmul.mubr.bf16.gmra.mrb[0].mxu0 %v2539
    %v2647 = vpop.f32.mrb[0].mxu0
    %v2648 = vadd.f32 0.0, %v2647
    %v2649 = vpop.f32.mrb[0].mxu0
    %v2650 = vpop.f32.mrb[0].mxu0
    %v2651 = vadd.f32 0.0, %v2650
    %v2652 = vpop.f32.mrb[0].mxu0
    %2653 = vdwg.mxu0
    %2656 = vrot.lane.b32.xlu0 %v2640, 96
    %v2657 = vpop.permute.xlu0 %2656
    %2658 = vrot.lane.b32.xlu0 %v2643, 96
    %v2659 = vpop.permute.xlu0 %2658
    %v2660 = vsel %vm317, %v2640, 0
    %v2662 = vsel %vm317, %v2643, 0
    %v2664 = vsel %vm317, %v2657, 0
    %v2666 = vsel %vm317, %v2659, 0
    %2668 = vmatprep.subr.mxu0 0.0
    %2669 = vmatpush1.xpose.msra.mxu0 %v2664
    %2670 = vmatprep.subr.mxu0 0.0
    %2671 = vmatpush1.xpose.msra.mxu0 %v2666
    %2672 = vmatprep.subr.mxu0 0.0
    %2673 = vmatpush1.xpose.msra.mxu0 0.0
    %2674 = vmatprep.subr.mxu0 0.0
    %2675 = vmatpush1.xpose.msra.mxu0 0.0
    %2676 = vmatprep.subr.mxu0 0.0
    %2677 = vmatpush1.xpose.msra.mxu0 0.0
    %2678 = vmatprep.subr.mxu0 0.0
    %2679 = vmatpush1.xpose.msra.mxu0 0.0
    %2680 = vmatprep.subr.mxu0 0.0
    %2681 = vmatpush1.xpose.msra.mxu0 0.0
    %2682 = vmatprep.subr.mxu0 0.0
    %2683 = vmatpush1.xpose.msra.mxu0 0.0
    %2684 = vmatprep.subr.mxu0 0.0
    %2685 = vmatpush1.xpose.msra.mxu0 0.0
    %2686 = vmatprep.subr.mxu0 0.0
    %2687 = vmatpush1.xpose.msra.mxu0 0.0
    %2688 = vmatprep.subr.mxu0 0.0
    %2689 = vmatpush1.xpose.msra.mxu0 0.0
    %2690 = vmatprep.subr.mxu0 0.0
    %2691 = vmatpush1.xpose.msra.mxu0 0.0
    %2692 = vmatprep.subr.mxu0 0.0
    %2693 = vmatpush1.xpose.msra.mxu0 0.0
    %2694 = vmatprep.subr.mxu0 0.0
    %2695 = vmatpush1.xpose.msra.mxu0 0.0
    %2696 = vmatprep.subr.mxu0 0.0
    %2697 = vmatpush1.xpose.msra.mxu0 0.0
    %2698 = vmatprep.subr.mxu0 0.0
    %2699 = vmatpush1.xpose.msra.mxu0 0.0
    %2700 = vmatprep.subr.mxu0 0.0
    %2701 = vmatpush1.xpose.msra.mxu0 0.0
    %2702 = vmatprep.subr.mxu0 0.0
    %2703 = vmatpush1.xpose.msra.mxu0 0.0
    %2704 = vmatprep.subr.mxu0 0.0
    %2705 = vmatpush1.xpose.msra.mxu0 0.0
    %2706 = vmatprep.subr.mxu0 0.0
    %2707 = vmatpush1.xpose.msra.mxu0 0.0
    %2708 = vmatprep.subr.mxu0 0.0
    %2709 = vmatpush1.xpose.msra.mxu0 0.0
    %2710 = vmatprep.subr.mxu0 0.0
    %2711 = vmatpush1.xpose.msra.mxu0 0.0
    %2712 = vmatprep.subr.mxu0 0.0
    %2713 = vmatpush1.xpose.msra.mxu0 0.0
    %2714 = vmatprep.subr.mxu0 0.0
    %2715 = vmatpush1.xpose.msra.mxu0 0.0
    %2716 = vmatprep.subr.mxu0 0.0
    %2717 = vmatpush1.xpose.msra.mxu0 0.0
    %2718 = vmatprep.subr.mxu0 0.0
    %2719 = vmatpush1.xpose.msra.mxu0 0.0
    %2720 = vmatprep.subr.mxu0 0.0
    %2721 = vmatpush1.xpose.msra.mxu0 0.0
    %2722 = vmatprep.subr.mxu0 0.0
    %2723 = vmatpush1.xpose.msra.mxu0 0.0
    %2724 = vmatprep.subr.mxu0 0.0
    %2725 = vmatpush1.xpose.msra.mxu0 0.0
    %2726 = vmatprep.subr.mxu0 0.0
    %2727 = vmatpush1.xpose.msra.mxu0 0.0
    %2728 = vmatprep.subr.mxu0 0.0
    %2729 = vmatpush1.xpose.msra.mxu0 0.0
    %2730 = vmatprep.subr.mxu0 0.0
    %2731 = vmatpush1.xpose.msra.mxu0 0.0
    %2732 = vmatprep.mubr.f32.mxu0 0.0
    %2733 = vmatmul.mubr.f32.gmra.mrb[0].mxu0 %v2660
    %v2734 = vpop.f32.mrb[0].mxu0
    %v2735 = vadd.f32 0.0, %v2734
    %v2736 = vpop.f32.mrb[0].mxu0
    %2737 = vmatprep.mubr.f32.mxu0 0.0
    %2738 = vmatmul.mubr.f32.gmra.mrb[0].mxu0 %v2662
    %v2739 = vpop.f32.mrb[0].mxu0
    %v2740 = vadd.f32 0.0, %v2739
    %v2741 = vpop.f32.mrb[0].mxu0
    %2742 = vdwg.mxu0
    %2745 = vrot.lane.b32.xlu0 %v2648, 96
    %v2746 = vpop.permute.xlu0 %2745
    %2747 = vrot.lane.b32.xlu0 %v2651, 96
    %v2748 = vpop.permute.xlu0 %2747
    %v2749 = vsel %vm317, %v2648, 0
    %v2751 = vsel %vm317, %v2651, 0
    %v2753 = vsel %vm317, %v2746, 0
    %v2755 = vsel %vm317, %v2748, 0
    %2757 = vmatprep.subr.mxu0 0.0
    %2758 = vmatpush1.xpose.msra.mxu0 %v2753
    %2759 = vmatprep.subr.mxu0 0.0
    %2760 = vmatpush1.xpose.msra.mxu0 %v2755
    %2761 = vmatprep.subr.mxu0 0.0
    %2762 = vmatpush1.xpose.msra.mxu0 0.0
    %2763 = vmatprep.subr.mxu0 0.0
    %2764 = vmatpush1.xpose.msra.mxu0 0.0
    %2765 = vmatprep.subr.mxu0 0.0
    %2766 = vmatpush1.xpose.msra.mxu0 0.0
    %2767 = vmatprep.subr.mxu0 0.0
    %2768 = vmatpush1.xpose.msra.mxu0 0.0
    %2769 = vmatprep.subr.mxu0 0.0
    %2770 = vmatpush1.xpose.msra.mxu0 0.0
    %2771 = vmatprep.subr.mxu0 0.0
    %2772 = vmatpush1.xpose.msra.mxu0 0.0
    %2773 = vmatprep.subr.mxu0 0.0
    %2774 = vmatpush1.xpose.msra.mxu0 0.0
    %2775 = vmatprep.subr.mxu0 0.0
    %2776 = vmatpush1.xpose.msra.mxu0 0.0
    %2777 = vmatprep.subr.mxu0 0.0
    %2778 = vmatpush1.xpose.msra.mxu0 0.0
    %2779 = vmatprep.subr.mxu0 0.0
    %2780 = vmatpush1.xpose.msra.mxu0 0.0
    %2781 = vmatprep.subr.mxu0 0.0
    %2782 = vmatpush1.xpose.msra.mxu0 0.0
    %2783 = vmatprep.subr.mxu0 0.0
    %2784 = vmatpush1.xpose.msra.mxu0 0.0
    %2785 = vmatprep.subr.mxu0 0.0
    %2786 = vmatpush1.xpose.msra.mxu0 0.0
    %2787 = vmatprep.subr.mxu0 0.0
    %2788 = vmatpush1.xpose.msra.mxu0 0.0
    %2789 = vmatprep.subr.mxu0 0.0
    %2790 = vmatpush1.xpose.msra.mxu0 0.0
    %2791 = vmatprep.subr.mxu0 0.0
    %2792 = vmatpush1.xpose.msra.mxu0 0.0
    %2793 = vmatprep.subr.mxu0 0.0
    %2794 = vmatpush1.xpose.msra.mxu0 0.0
    %2795 = vmatprep.subr.mxu0 0.0
    %2796 = vmatpush1.xpose.msra.mxu0 0.0
    %2797 = vmatprep.subr.mxu0 0.0
    %2798 = vmatpush1.xpose.msra.mxu0 0.0
    %2799 = vmatprep.subr.mxu0 0.0
    %2800 = vmatpush1.xpose.msra.mxu0 0.0
    %2801 = vmatprep.subr.mxu0 0.0
    %2802 = vmatpush1.xpose.msra.mxu0 0.0
    %2803 = vmatprep.subr.mxu0 0.0
    %2804 = vmatpush1.xpose.msra.mxu0 0.0
    %2805 = vmatprep.subr.mxu0 0.0
    %2806 = vmatpush1.xpose.msra.mxu0 0.0
    %2807 = vmatprep.subr.mxu0 0.0
    %2808 = vmatpush1.xpose.msra.mxu0 0.0
    %2809 = vmatprep.subr.mxu0 0.0
    %2810 = vmatpush1.xpose.msra.mxu0 0.0
    %2811 = vmatprep.subr.mxu0 0.0
    %2812 = vmatpush1.xpose.msra.mxu0 0.0
    %2813 = vmatprep.subr.mxu0 0.0
    %2814 = vmatpush1.xpose.msra.mxu0 0.0
    %2815 = vmatprep.subr.mxu0 0.0
    %2816 = vmatpush1.xpose.msra.mxu0 0.0
    %2817 = vmatprep.subr.mxu0 0.0
    %2818 = vmatpush1.xpose.msra.mxu0 0.0
    %2819 = vmatprep.subr.mxu0 0.0
    %2820 = vmatpush1.xpose.msra.mxu0 0.0
    %2821 = vmatprep.mubr.f32.mxu0 0.0
    %2822 = vmatmul.mubr.f32.gmra.mrb[0].mxu0 %v2749
    %v2823 = vpop.f32.mrb[0].mxu0
    %v2824 = vadd.f32 0.0, %v2823
    %v2825 = vpop.f32.mrb[0].mxu0
    %2826 = vmatprep.mubr.f32.mxu0 0.0
    %2827 = vmatmul.mubr.f32.gmra.mrb[0].mxu0 %v2751
    %v2828 = vpop.f32.mrb[0].mxu0
    %v2829 = vadd.f32 0.0, %v2828
    %v2830 = vpop.f32.mrb[0].mxu0
    %2831 = vdwg.mxu0
    %v2832 = vsel %vm490, %v2735, -inf
    %2833 = vmax.xlane.f32.xlu0 %v2832
    %v2834 = vpop.xlane.xlu0 %2833
    %v2835 = vsel %vm490, %v2740, -inf
    %2836 = vmax.xlane.f32.xlu0 %v2835
    %v2837 = vpop.xlane.xlu0 %2836
    %v2838 = vsel %vm490, %v2824, -inf
    %2839 = vmax.xlane.f32.xlu0 %v2838
    %v2840 = vpop.xlane.xlu0 %2839
    %v2841 = vsel %vm490, %v2829, -inf
    %2842 = vmax.xlane.f32.xlu0 %v2841
    %v2843 = vpop.xlane.xlu0 %2842
    %v2844 = vsub.f32 %v2735, %v2834
    %v2845 = vsub.f32 %v2740, %v2837
    %v2846 = vsub.f32 %v2824, %v2840
    %v2847 = vsub.f32 %v2829, %v2843
    %v2848 = vmul.f32 %v2844, 1.442695
    %v2849 = vpow.pop %v2848
    %v2850 = vmul.f32 %v2845, 1.442695
    %v2851 = vpow.pop %v2850
    %v2852 = vmul.f32 %v2846, 1.442695
    %v2853 = vpow.pop %v2852
    %v2854 = vmul.f32 %v2847, 1.442695
    %v2855 = vpow.pop %v2854
    %v2856 = vsel %vm490, %v2849, 0.0
    %2857 = vadd.xlane.f32.xlu0 %v2856
    %v2858 = vpop.xlane.xlu0 %2857
    %v2859 = vsel %vm490, %v2851, 0.0
    %2860 = vadd.xlane.f32.xlu0 %v2859
    %v2861 = vpop.xlane.xlu0 %2860
    %v2862 = vsel %vm490, %v2853, 0.0
    %2863 = vadd.xlane.f32.xlu0 %v2862
    %v2864 = vpop.xlane.xlu0 %2863
    %v2865 = vsel %vm490, %v2855, 0.0
    %2866 = vadd.xlane.f32.xlu0 %v2865
    %v2867 = vpop.xlane.xlu0 %2866
    %v2868 = vrcp.pop %v2858
    %v2869 = vrcp.pop %v2861
    %v2870 = vrcp.pop %v2864
    %v2871 = vrcp.pop %v2867
    %v2872 = vmul.f32 %v2849, %v2868
    %v2873 = vmul.f32 %v2851, %v2869
    %v2874 = vmul.f32 %v2853, %v2870
    %v2875 = vmul.f32 %v2855, %v2871
    %2876 = vrot.lane.b32.xlu0 %v2640, 64
    %v2877 = vpop.permute.xlu0 %2876
    %2878 = vrot.lane.b32.xlu0 %v2643, 64
    %v2879 = vpop.permute.xlu0 %2878
    %v2883 = vsel %vm490, %v2872, 0
    %v2886 = vsel %vm490, %v2873, 0
    %2888 = vmatprep.subr.mxu0 0.0
    %2889 = vmatpush1.msra.mxu0 %v2877
    %2890 = vmatprep.subr.mxu0 0.0
    %2891 = vmatpush1.msra.mxu0 %v2879
    %2892 = vmatprep.subr.mxu0 0.0
    %2893 = vmatpush1.msra.mxu0 0.0
    %2894 = vmatprep.subr.mxu0 0.0
    %2895 = vmatpush1.msra.mxu0 0.0
    %2896 = vmatprep.subr.mxu0 0.0
    %2897 = vmatpush1.msra.mxu0 0.0
    %2898 = vmatprep.subr.mxu0 0.0
    %2899 = vmatpush1.msra.mxu0 0.0
    %2900 = vmatprep.subr.mxu0 0.0
    %2901 = vmatpush1.msra.mxu0 0.0
    %2902 = vmatprep.subr.mxu0 0.0
    %2903 = vmatpush1.msra.mxu0 0.0
    %2904 = vmatprep.subr.mxu0 0.0
    %2905 = vmatpush1.msra.mxu0 0.0
    %2906 = vmatprep.subr.mxu0 0.0
    %2907 = vmatpush1.msra.mxu0 0.0
    %2908 = vmatprep.subr.mxu0 0.0
    %2909 = vmatpush1.msra.mxu0 0.0
    %2910 = vmatprep.subr.mxu0 0.0
    %2911 = vmatpush1.msra.mxu0 0.0
    %2912 = vmatprep.subr.mxu0 0.0
    %2913 = vmatpush1.msra.mxu0 0.0
    %2914 = vmatprep.subr.mxu0 0.0
    %2915 = vmatpush1.msra.mxu0 0.0
    %2916 = vmatprep.subr.mxu0 0.0
    %2917 = vmatpush1.msra.mxu0 0.0
    %2918 = vmatprep.subr.mxu0 0.0
    %2919 = vmatpush1.msra.mxu0 0.0
    %2920 = vmatprep.subr.mxu0 0.0
    %2921 = vmatpush1.msra.mxu0 0.0
    %2922 = vmatprep.subr.mxu0 0.0
    %2923 = vmatpush1.msra.mxu0 0.0
    %2924 = vmatprep.subr.mxu0 0.0
    %2925 = vmatpush1.msra.mxu0 0.0
    %2926 = vmatprep.subr.mxu0 0.0
    %2927 = vmatpush1.msra.mxu0 0.0
    %2928 = vmatprep.subr.mxu0 0.0
    %2929 = vmatpush1.msra.mxu0 0.0
    %2930 = vmatprep.subr.mxu0 0.0
    %2931 = vmatpush1.msra.mxu0 0.0
    %2932 = vmatprep.subr.mxu0 0.0
    %2933 = vmatpush1.msra.mxu0 0.0
    %2934 = vmatprep.subr.mxu0 0.0
    %2935 = vmatpush1.msra.mxu0 0.0
    %2936 = vmatprep.subr.mxu0 0.0
    %2937 = vmatpush1.msra.mxu0 0.0
    %2938 = vmatprep.subr.mxu0 0.0
    %2939 = vmatpush1.msra.mxu0 0.0
    %2940 = vmatprep.subr.mxu0 0.0
    %2941 = vmatpush1.msra.mxu0 0.0
    %2942 = vmatprep.subr.mxu0 0.0
    %2943 = vmatpush1.msra.mxu0 0.0
    %2944 = vmatprep.subr.mxu0 0.0
    %2945 = vmatpush1.msra.mxu0 0.0
    %2946 = vmatprep.subr.mxu0 0.0
    %2947 = vmatpush1.msra.mxu0 0.0
    %2948 = vmatprep.subr.mxu0 0.0
    %2949 = vmatpush1.msra.mxu0 0.0
    %2950 = vmatprep.subr.mxu0 0.0
    %2951 = vmatpush1.msra.mxu0 0.0
    %2952 = vmatprep.mubr.f32.mxu0 0.0
    %2953 = vmatmul.mubr.f32.gmra.mrb[0].mxu0 %v2883
    %v2954 = vpop.f32.mrb[0].mxu0
    %v2955 = vadd.f32 0.0, %v2954
    %v2956 = vpop.f32.mrb[0].mxu0
    %2957 = vmatprep.mubr.f32.mxu0 0.0
    %2958 = vmatmul.mubr.f32.gmra.mrb[0].mxu0 %v2886
    %v2959 = vpop.f32.mrb[0].mxu0
    %v2960 = vadd.f32 0.0, %v2959
    %v2961 = vpop.f32.mrb[0].mxu0
    %2962 = vdwg.mxu0
    %2963 = vrot.lane.b32.xlu0 %v2648, 64
    %v2964 = vpop.permute.xlu0 %2963
    %2965 = vrot.lane.b32.xlu0 %v2651, 64
    %v2966 = vpop.permute.xlu0 %2965
    %v2970 = vsel %vm490, %v2874, 0
    %v2973 = vsel %vm490, %v2875, 0
    %2975 = vmatprep.subr.mxu0 0.0
    %2976 = vmatpush1.msra.mxu0 %v2964
    %2977 = vmatprep.subr.mxu0 0.0
    %2978 = vmatpush1.msra.mxu0 %v2966
    %2979 = vmatprep.subr.mxu0 0.0
    %2980 = vmatpush1.msra.mxu0 0.0
    %2981 = vmatprep.subr.mxu0 0.0
    %2982 = vmatpush1.msra.mxu0 0.0
    %2983 = vmatprep.subr.mxu0 0.0
    %2984 = vmatpush1.msra.mxu0 0.0
    %2985 = vmatprep.subr.mxu0 0.0
    %2986 = vmatpush1.msra.mxu0 0.0
    %2987 = vmatprep.subr.mxu0 0.0
    %2988 = vmatpush1.msra.mxu0 0.0
    %2989 = vmatprep.subr.mxu0 0.0
    %2990 = vmatpush1.msra.mxu0 0.0
    %2991 = vmatprep.subr.mxu0 0.0
    %2992 = vmatpush1.msra.mxu0 0.0
    %2993 = vmatprep.subr.mxu0 0.0
    %2994 = vmatpush1.msra.mxu0 0.0
    %2995 = vmatprep.subr.mxu0 0.0
    %2996 = vmatpush1.msra.mxu0 0.0
    %2997 = vmatprep.subr.mxu0 0.0
    %2998 = vmatpush1.msra.mxu0 0.0
    %2999 = vmatprep.subr.mxu0 0.0
    %3000 = vmatpush1.msra.mxu0 0.0
    %3001 = vmatprep.subr.mxu0 0.0
    %3002 = vmatpush1.msra.mxu0 0.0
    %3003 = vmatprep.subr.mxu0 0.0
    %3004 = vmatpush1.msra.mxu0 0.0
    %3005 = vmatprep.subr.mxu0 0.0
    %3006 = vmatpush1.msra.mxu0 0.0
    %3007 = vmatprep.subr.mxu0 0.0
    %3008 = vmatpush1.msra.mxu0 0.0
    %3009 = vmatprep.subr.mxu0 0.0
    %3010 = vmatpush1.msra.mxu0 0.0
    %3011 = vmatprep.subr.mxu0 0.0
    %3012 = vmatpush1.msra.mxu0 0.0
    %3013 = vmatprep.subr.mxu0 0.0
    %3014 = vmatpush1.msra.mxu0 0.0
    %3015 = vmatprep.subr.mxu0 0.0
    %3016 = vmatpush1.msra.mxu0 0.0
    %3017 = vmatprep.subr.mxu0 0.0
    %3018 = vmatpush1.msra.mxu0 0.0
    %3019 = vmatprep.subr.mxu0 0.0
    %3020 = vmatpush1.msra.mxu0 0.0
    %3021 = vmatprep.subr.mxu0 0.0
    %3022 = vmatpush1.msra.mxu0 0.0
    %3023 = vmatprep.subr.mxu0 0.0
    %3024 = vmatpush1.msra.mxu0 0.0
    %3025 = vmatprep.subr.mxu0 0.0
    %3026 = vmatpush1.msra.mxu0 0.0
    %3027 = vmatprep.subr.mxu0 0.0
    %3028 = vmatpush1.msra.mxu0 0.0
    %3029 = vmatprep.subr.mxu0 0.0
    %3030 = vmatpush1.msra.mxu0 0.0
    %3031 = vmatprep.subr.mxu0 0.0
    %3032 = vmatpush1.msra.mxu0 0.0
    %3033 = vmatprep.subr.mxu0 0.0
    %3034 = vmatpush1.msra.mxu0 0.0
    %3035 = vmatprep.subr.mxu0 0.0
    %3036 = vmatpush1.msra.mxu0 0.0
    %3037 = vmatprep.subr.mxu0 0.0
    %3038 = vmatpush1.msra.mxu0 0.0
    %3039 = vmatprep.mubr.f32.mxu0 0.0
    %3040 = vmatmul.mubr.f32.gmra.mrb[0].mxu0 %v2970
    %v3041 = vpop.f32.mrb[0].mxu0
    %v3042 = vadd.f32 0.0, %v3041
    %v3043 = vpop.f32.mrb[0].mxu0
    %3044 = vmatprep.mubr.f32.mxu0 0.0
    %3045 = vmatmul.mubr.f32.gmra.mrb[0].mxu0 %v2973
    %v3046 = vpop.f32.mrb[0].mxu0
    %v3047 = vadd.f32 0.0, %v3046
    %v3048 = vpop.f32.mrb[0].mxu0
    %3049 = vdwg.mxu0
    %3050 = vrot.lane.b32.xlu0 %v2640, 120
    %v3051 = vpop.permute.xlu0 %3050
    %3052 = vrot.lane.b32.xlu0 %v2643, 120
    %v3053 = vpop.permute.xlu0 %3052
    %3054 = vrot.lane.b32.xlu0 %v2640, 88
    %v3055 = vpop.permute.xlu0 %3054
    %3056 = vrot.lane.b32.xlu0 %v2643, 88
    %v3057 = vpop.permute.xlu0 %3056
    %v3058 = vsel %vm317, %v3051, 0
    %v3060 = vsel %vm317, %v3053, 0
    %v3062 = vsel %vm317, %v3055, 0
    %v3064 = vsel %vm317, %v3057, 0
    %3066 = vmatprep.subr.mxu0 0.0
    %3067 = vmatpush1.xpose.msra.mxu0 %v3062
    %3068 = vmatprep.subr.mxu0 0.0
    %3069 = vmatpush1.xpose.msra.mxu0 %v3064
    %3070 = vmatprep.subr.mxu0 0.0
    %3071 = vmatpush1.xpose.msra.mxu0 0.0
    %3072 = vmatprep.subr.mxu0 0.0
    %3073 = vmatpush1.xpose.msra.mxu0 0.0
    %3074 = vmatprep.subr.mxu0 0.0
    %3075 = vmatpush1.xpose.msra.mxu0 0.0
    %3076 = vmatprep.subr.mxu0 0.0
    %3077 = vmatpush1.xpose.msra.mxu0 0.0
    %3078 = vmatprep.subr.mxu0 0.0
    %3079 = vmatpush1.xpose.msra.mxu0 0.0
    %3080 = vmatprep.subr.mxu0 0.0
    %3081 = vmatpush1.xpose.msra.mxu0 0.0
    %3082 = vmatprep.subr.mxu0 0.0
    %3083 = vmatpush1.xpose.msra.mxu0 0.0
    %3084 = vmatprep.subr.mxu0 0.0
    %3085 = vmatpush1.xpose.msra.mxu0 0.0
    %3086 = vmatprep.subr.mxu0 0.0
    %3087 = vmatpush1.xpose.msra.mxu0 0.0
    %3088 = vmatprep.subr.mxu0 0.0
    %3089 = vmatpush1.xpose.msra.mxu0 0.0
    %3090 = vmatprep.subr.mxu0 0.0
    %3091 = vmatpush1.xpose.msra.mxu0 0.0
    %3092 = vmatprep.subr.mxu0 0.0
    %3093 = vmatpush1.xpose.msra.mxu0 0.0
    %3094 = vmatprep.subr.mxu0 0.0
    %3095 = vmatpush1.xpose.msra.mxu0 0.0
    %3096 = vmatprep.subr.mxu0 0.0
    %3097 = vmatpush1.xpose.msra.mxu0 0.0
    %3098 = vmatprep.subr.mxu0 0.0
    %3099 = vmatpush1.xpose.msra.mxu0 0.0
    %3100 = vmatprep.subr.mxu0 0.0
    %3101 = vmatpush1.xpose.msra.mxu0 0.0
    %3102 = vmatprep.subr.mxu0 0.0
    %3103 = vmatpush1.xpose.msra.mxu0 0.0
    %3104 = vmatprep.subr.mxu0 0.0
    %3105 = vmatpush1.xpose.msra.mxu0 0.0
    %3106 = vmatprep.subr.mxu0 0.0
    %3107 = vmatpush1.xpose.msra.mxu0 0.0
    %3108 = vmatprep.subr.mxu0 0.0
    %3109 = vmatpush1.xpose.msra.mxu0 0.0
    %3110 = vmatprep.subr.mxu0 0.0
    %3111 = vmatpush1.xpose.msra.mxu0 0.0
    %3112 = vmatprep.subr.mxu0 0.0
    %3113 = vmatpush1.xpose.msra.mxu0 0.0
    %3114 = vmatprep.subr.mxu0 0.0
    %3115 = vmatpush1.xpose.msra.mxu0 0.0
    %3116 = vmatprep.subr.mxu0 0.0
    %3117 = vmatpush1.xpose.msra.mxu0 0.0
    %3118 = vmatprep.subr.mxu0 0.0
    %3119 = vmatpush1.xpose.msra.mxu0 0.0
    %3120 = vmatprep.subr.mxu0 0.0
    %3121 = vmatpush1.xpose.msra.mxu0 0.0
    %3122 = vmatprep.subr.mxu0 0.0
    %3123 = vmatpush1.xpose.msra.mxu0 0.0
    %3124 = vmatprep.subr.mxu0 0.0
    %3125 = vmatpush1.xpose.msra.mxu0 0.0
    %3126 = vmatprep.subr.mxu0 0.0
    %3127 = vmatpush1.xpose.msra.mxu0 0.0
    %3128 = vmatprep.subr.mxu0 0.0
    %3129 = vmatpush1.xpose.msra.mxu0 0.0
    %3130 = vmatprep.mubr.f32.mxu0 0.0
    %3131 = vmatmul.mubr.f32.gmra.mrb[0].mxu0 %v3058
    %v3132 = vpop.f32.mrb[0].mxu0
    %v3133 = vadd.f32 0.0, %v3132
    %v3134 = vpop.f32.mrb[0].mxu0
    %3135 = vmatprep.mubr.f32.mxu0 0.0
    %3136 = vmatmul.mubr.f32.gmra.mrb[0].mxu0 %v3060
    %v3137 = vpop.f32.mrb[0].mxu0
    %v3138 = vadd.f32 0.0, %v3137
    %v3139 = vpop.f32.mrb[0].mxu0
    %3140 = vdwg.mxu0
    %3141 = vrot.lane.b32.xlu0 %v2648, 120
    %v3142 = vpop.permute.xlu0 %3141
    %3143 = vrot.lane.b32.xlu0 %v2651, 120
    %v3144 = vpop.permute.xlu0 %3143
    %3145 = vrot.lane.b32.xlu0 %v2648, 88
    %v3146 = vpop.permute.xlu0 %3145
    %3147 = vrot.lane.b32.xlu0 %v2651, 88
    %v3148 = vpop.permute.xlu0 %3147
    %v3149 = vsel %vm317, %v3142, 0
    %v3151 = vsel %vm317, %v3144, 0
    %v3153 = vsel %vm317, %v3146, 0
    %v3155 = vsel %vm317, %v3148, 0
    %3157 = vmatprep.subr.mxu0 0.0
    %3158 = vmatpush1.xpose.msra.mxu0 %v3153
    %3159 = vmatprep.subr.mxu0 0.0
    %3160 = vmatpush1.xpose.msra.mxu0 %v3155
    %3161 = vmatprep.subr.mxu0 0.0
    %3162 = vmatpush1.xpose.msra.mxu0 0.0
    %3163 = vmatprep.subr.mxu0 0.0
    %3164 = vmatpush1.xpose.msra.mxu0 0.0
    %3165 = vmatprep.subr.mxu0 0.0
    %3166 = vmatpush1.xpose.msra.mxu0 0.0
    %3167 = vmatprep.subr.mxu0 0.0
    %3168 = vmatpush1.xpose.msra.mxu0 0.0
    %3169 = vmatprep.subr.mxu0 0.0
    %3170 = vmatpush1.xpose.msra.mxu0 0.0
    %3171 = vmatprep.subr.mxu0 0.0
    %3172 = vmatpush1.xpose.msra.mxu0 0.0
    %3173 = vmatprep.subr.mxu0 0.0
    %3174 = vmatpush1.xpose.msra.mxu0 0.0
    %3175 = vmatprep.subr.mxu0 0.0
    %3176 = vmatpush1.xpose.msra.mxu0 0.0
    %3177 = vmatprep.subr.mxu0 0.0
    %3178 = vmatpush1.xpose.msra.mxu0 0.0
    %3179 = vmatprep.subr.mxu0 0.0
    %3180 = vmatpush1.xpose.msra.mxu0 0.0
    %3181 = vmatprep.subr.mxu0 0.0
    %3182 = vmatpush1.xpose.msra.mxu0 0.0
    %3183 = vmatprep.subr.mxu0 0.0
    %3184 = vmatpush1.xpose.msra.mxu0 0.0
    %3185 = vmatprep.subr.mxu0 0.0
    %3186 = vmatpush1.xpose.msra.mxu0 0.0
    %3187 = vmatprep.subr.mxu0 0.0
    %3188 = vmatpush1.xpose.msra.mxu0 0.0
    %3189 = vmatprep.subr.mxu0 0.0
    %3190 = vmatpush1.xpose.msra.mxu0 0.0
    %3191 = vmatprep.subr.mxu0 0.0
    %3192 = vmatpush1.xpose.msra.mxu0 0.0
    %3193 = vmatprep.subr.mxu0 0.0
    %3194 = vmatpush1.xpose.msra.mxu0 0.0
    %3195 = vmatprep.subr.mxu0 0.0
    %3196 = vmatpush1.xpose.msra.mxu0 0.0
    %3197 = vmatprep.subr.mxu0 0.0
    %3198 = vmatpush1.xpose.msra.mxu0 0.0
    %3199 = vmatprep.subr.mxu0 0.0
    %3200 = vmatpush1.xpose.msra.mxu0 0.0
    %3201 = vmatprep.subr.mxu0 0.0
    %3202 = vmatpush1.xpose.msra.mxu0 0.0
    %3203 = vmatprep.subr.mxu0 0.0
    %3204 = vmatpush1.xpose.msra.mxu0 0.0
    %3205 = vmatprep.subr.mxu0 0.0
    %3206 = vmatpush1.xpose.msra.mxu0 0.0
    %3207 = vmatprep.subr.mxu0 0.0
    %3208 = vmatpush1.xpose.msra.mxu0 0.0
    %3209 = vmatprep.subr.mxu0 0.0
    %3210 = vmatpush1.xpose.msra.mxu0 0.0
    %3211 = vmatprep.subr.mxu0 0.0
    %3212 = vmatpush1.xpose.msra.mxu0 0.0
    %3213 = vmatprep.subr.mxu0 0.0
    %3214 = vmatpush1.xpose.msra.mxu0 0.0
    %3215 = vmatprep.subr.mxu0 0.0
    %3216 = vmatpush1.xpose.msra.mxu0 0.0
    %3217 = vmatprep.subr.mxu0 0.0
    %3218 = vmatpush1.xpose.msra.mxu0 0.0
    %3219 = vmatprep.subr.mxu0 0.0
    %3220 = vmatpush1.xpose.msra.mxu0 0.0
    %3221 = vmatprep.mubr.f32.mxu0 0.0
    %3222 = vmatmul.mubr.f32.gmra.mrb[0].mxu0 %v3149
    %v3223 = vpop.f32.mrb[0].mxu0
    %v3224 = vadd.f32 0.0, %v3223
    %v3225 = vpop.f32.mrb[0].mxu0
    %3226 = vmatprep.mubr.f32.mxu0 0.0
    %3227 = vmatmul.mubr.f32.gmra.mrb[0].mxu0 %v3151
    %v3228 = vpop.f32.mrb[0].mxu0
    %v3229 = vadd.f32 0.0, %v3228
    %v3230 = vpop.f32.mrb[0].mxu0
    %3231 = vdwg.mxu0
    %v3232 = vsel %vm490, %v3133, -inf
    %3233 = vmax.xlane.f32.xlu0 %v3232
    %v3234 = vpop.xlane.xlu0 %3233
    %v3235 = vsel %vm490, %v3138, -inf
    %3236 = vmax.xlane.f32.xlu0 %v3235
    %v3237 = vpop.xlane.xlu0 %3236
    %v3238 = vsel %vm490, %v3224, -inf
    %3239 = vmax.xlane.f32.xlu0 %v3238
    %v3240 = vpop.xlane.xlu0 %3239
    %v3241 = vsel %vm490, %v3229, -inf
    %3242 = vmax.xlane.f32.xlu0 %v3241
    %v3243 = vpop.xlane.xlu0 %3242
    %v3244 = vsub.f32 %v3133, %v3234
    %v3245 = vsub.f32 %v3138, %v3237
    %v3246 = vsub.f32 %v3224, %v3240
    %v3247 = vsub.f32 %v3229, %v3243
    %v3248 = vmul.f32 %v3244, 1.442695
    %v3249 = vpow.pop %v3248
    %v3250 = vmul.f32 %v3245, 1.442695
    %v3251 = vpow.pop %v3250
    %v3252 = vmul.f32 %v3246, 1.442695
    %v3253 = vpow.pop %v3252
    %v3254 = vmul.f32 %v3247, 1.442695
    %v3255 = vpow.pop %v3254
    %v3256 = vsel %vm490, %v3249, 0.0
    %3257 = vadd.xlane.f32.xlu0 %v3256
    %v3258 = vpop.xlane.xlu0 %3257
    %v3259 = vsel %vm490, %v3251, 0.0
    %3260 = vadd.xlane.f32.xlu0 %v3259
    %v3261 = vpop.xlane.xlu0 %3260
    %v3262 = vsel %vm490, %v3253, 0.0
    %3263 = vadd.xlane.f32.xlu0 %v3262
    %v3264 = vpop.xlane.xlu0 %3263
    %v3265 = vsel %vm490, %v3255, 0.0
    %3266 = vadd.xlane.f32.xlu0 %v3265
    %v3267 = vpop.xlane.xlu0 %3266
    %v3268 = vrcp.pop %v3258
    %v3269 = vrcp.pop %v3261
    %v3270 = vrcp.pop %v3264
    %v3271 = vrcp.pop %v3267
    %v3272 = vmul.f32 %v3249, %v3268
    %v3273 = vmul.f32 %v3251, %v3269
    %v3274 = vmul.f32 %v3253, %v3270
    %v3275 = vmul.f32 %v3255, %v3271
    %3276 = vrot.lane.b32.xlu0 %v2640, 56
    %v3277 = vpop.permute.xlu0 %3276
    %3278 = vrot.lane.b32.xlu0 %v2643, 56
    %v3279 = vpop.permute.xlu0 %3278
    %v3283 = vsel %vm490, %v3272, 0
    %v3286 = vsel %vm490, %v3273, 0
    %3288 = vmatprep.subr.mxu0 0.0
    %3289 = vmatpush1.msra.mxu0 %v3277
    %3290 = vmatprep.subr.mxu0 0.0
    %3291 = vmatpush1.msra.mxu0 %v3279
    %3292 = vmatprep.subr.mxu0 0.0
    %3293 = vmatpush1.msra.mxu0 0.0
    %3294 = vmatprep.subr.mxu0 0.0
    %3295 = vmatpush1.msra.mxu0 0.0
    %3296 = vmatprep.subr.mxu0 0.0
    %3297 = vmatpush1.msra.mxu0 0.0
    %3298 = vmatprep.subr.mxu0 0.0
    %3299 = vmatpush1.msra.mxu0 0.0
    %3300 = vmatprep.subr.mxu0 0.0
    %3301 = vmatpush1.msra.mxu0 0.0
    %3302 = vmatprep.subr.mxu0 0.0
    %3303 = vmatpush1.msra.mxu0 0.0
    %3304 = vmatprep.subr.mxu0 0.0
    %3305 = vmatpush1.msra.mxu0 0.0
    %3306 = vmatprep.subr.mxu0 0.0
    %3307 = vmatpush1.msra.mxu0 0.0
    %3308 = vmatprep.subr.mxu0 0.0
    %3309 = vmatpush1.msra.mxu0 0.0
    %3310 = vmatprep.subr.mxu0 0.0
    %3311 = vmatpush1.msra.mxu0 0.0
    %3312 = vmatprep.subr.mxu0 0.0
    %3313 = vmatpush1.msra.mxu0 0.0
    %3314 = vmatprep.subr.mxu0 0.0
    %3315 = vmatpush1.msra.mxu0 0.0
    %3316 = vmatprep.subr.mxu0 0.0
    %3317 = vmatpush1.msra.mxu0 0.0
    %3318 = vmatprep.subr.mxu0 0.0
    %3319 = vmatpush1.msra.mxu0 0.0
    %3320 = vmatprep.subr.mxu0 0.0
    %3321 = vmatpush1.msra.mxu0 0.0
    %3322 = vmatprep.subr.mxu0 0.0
    %3323 = vmatpush1.msra.mxu0 0.0
    %3324 = vmatprep.subr.mxu0 0.0
    %3325 = vmatpush1.msra.mxu0 0.0
    %3326 = vmatprep.subr.mxu0 0.0
    %3327 = vmatpush1.msra.mxu0 0.0
    %3328 = vmatprep.subr.mxu0 0.0
    %3329 = vmatpush1.msra.mxu0 0.0
    %3330 = vmatprep.subr.mxu0 0.0
    %3331 = vmatpush1.msra.mxu0 0.0
    %3332 = vmatprep.subr.mxu0 0.0
    %3333 = vmatpush1.msra.mxu0 0.0
    %3334 = vmatprep.subr.mxu0 0.0
    %3335 = vmatpush1.msra.mxu0 0.0
    %3336 = vmatprep.subr.mxu0 0.0
    %3337 = vmatpush1.msra.mxu0 0.0
    %3338 = vmatprep.subr.mxu0 0.0
    %3339 = vmatpush1.msra.mxu0 0.0
    %3340 = vmatprep.subr.mxu0 0.0
    %3341 = vmatpush1.msra.mxu0 0.0
    %3342 = vmatprep.subr.mxu0 0.0
    %3343 = vmatpush1.msra.mxu0 0.0
    %3344 = vmatprep.subr.mxu0 0.0
    %3345 = vmatpush1.msra.mxu0 0.0
    %3346 = vmatprep.subr.mxu0 0.0
    %3347 = vmatpush1.msra.mxu0 0.0
    %3348 = vmatprep.subr.mxu0 0.0
    %3349 = vmatpush1.msra.mxu0 0.0
    %3350 = vmatprep.subr.mxu0 0.0
    %3351 = vmatpush1.msra.mxu0 0.0
    %3352 = vmatprep.mubr.f32.mxu0 0.0
    %3353 = vmatmul.mubr.f32.gmra.mrb[0].mxu0 %v3283
    %v3354 = vpop.f32.mrb[0].mxu0
    %v3355 = vadd.f32 0.0, %v3354
    %v3356 = vpop.f32.mrb[0].mxu0
    %3357 = vmatprep.mubr.f32.mxu0 0.0
    %3358 = vmatmul.mubr.f32.gmra.mrb[0].mxu0 %v3286
    %v3359 = vpop.f32.mrb[0].mxu0
    %v3360 = vadd.f32 0.0, %v3359
    %v3361 = vpop.f32.mrb[0].mxu0
    %3362 = vdwg.mxu0
    %3363 = vrot.lane.b32.xlu0 %v2648, 56
    %v3364 = vpop.permute.xlu0 %3363
    %3365 = vrot.lane.b32.xlu0 %v2651, 56
    %v3366 = vpop.permute.xlu0 %3365
    %v3370 = vsel %vm490, %v3274, 0
    %v3373 = vsel %vm490, %v3275, 0
    %3375 = vmatprep.subr.mxu0 0.0
    %3376 = vmatpush1.msra.mxu0 %v3364
    %3377 = vmatprep.subr.mxu0 0.0
    %3378 = vmatpush1.msra.mxu0 %v3366
    %3379 = vmatprep.subr.mxu0 0.0
    %3380 = vmatpush1.msra.mxu0 0.0
    %3381 = vmatprep.subr.mxu0 0.0
    %3382 = vmatpush1.msra.mxu0 0.0
    %3383 = vmatprep.subr.mxu0 0.0
    %3384 = vmatpush1.msra.mxu0 0.0
    %3385 = vmatprep.subr.mxu0 0.0
    %3386 = vmatpush1.msra.mxu0 0.0
    %3387 = vmatprep.subr.mxu0 0.0
    %3388 = vmatpush1.msra.mxu0 0.0
    %3389 = vmatprep.subr.mxu0 0.0
    %3390 = vmatpush1.msra.mxu0 0.0
    %3391 = vmatprep.subr.mxu0 0.0
    %3392 = vmatpush1.msra.mxu0 0.0
    %3393 = vmatprep.subr.mxu0 0.0
    %3394 = vmatpush1.msra.mxu0 0.0
    %3395 = vmatprep.subr.mxu0 0.0
    %3396 = vmatpush1.msra.mxu0 0.0
    %3397 = vmatprep.subr.mxu0 0.0
    %3398 = vmatpush1.msra.mxu0 0.0
    %3399 = vmatprep.subr.mxu0 0.0
    %3400 = vmatpush1.msra.mxu0 0.0
    %3401 = vmatprep.subr.mxu0 0.0
    %3402 = vmatpush1.msra.mxu0 0.0
    %3403 = vmatprep.subr.mxu0 0.0
    %3404 = vmatpush1.msra.mxu0 0.0
    %3405 = vmatprep.subr.mxu0 0.0
    %3406 = vmatpush1.msra.mxu0 0.0
    %3407 = vmatprep.subr.mxu0 0.0
    %3408 = vmatpush1.msra.mxu0 0.0
    %3409 = vmatprep.subr.mxu0 0.0
    %3410 = vmatpush1.msra.mxu0 0.0
    %3411 = vmatprep.subr.mxu0 0.0
    %3412 = vmatpush1.msra.mxu0 0.0
    %3413 = vmatprep.subr.mxu0 0.0
    %3414 = vmatpush1.msra.mxu0 0.0
    %3415 = vmatprep.subr.mxu0 0.0
    %3416 = vmatpush1.msra.mxu0 0.0
    %3417 = vmatprep.subr.mxu0 0.0
    %3418 = vmatpush1.msra.mxu0 0.0
    %3419 = vmatprep.subr.mxu0 0.0
    %3420 = vmatpush1.msra.mxu0 0.0
    %3421 = vmatprep.subr.mxu0 0.0
    %3422 = vmatpush1.msra.mxu0 0.0
    %3423 = vmatprep.subr.mxu0 0.0
    %3424 = vmatpush1.msra.mxu0 0.0
    %3425 = vmatprep.subr.mxu0 0.0
    %3426 = vmatpush1.msra.mxu0 0.0
    %3427 = vmatprep.subr.mxu0 0.0
    %3428 = vmatpush1.msra.mxu0 0.0
    %3429 = vmatprep.subr.mxu0 0.0
    %3430 = vmatpush1.msra.mxu0 0.0
    %3431 = vmatprep.subr.mxu0 0.0
    %3432 = vmatpush1.msra.mxu0 0.0
    %3433 = vmatprep.subr.mxu0 0.0
    %3434 = vmatpush1.msra.mxu0 0.0
    %3435 = vmatprep.subr.mxu0 0.0
    %3436 = vmatpush1.msra.mxu0 0.0
    %3437 = vmatprep.subr.mxu0 0.0
    %3438 = vmatpush1.msra.mxu0 0.0
    %3439 = vmatprep.mubr.f32.mxu0 0.0
    %3440 = vmatmul.mubr.f32.gmra.mrb[0].mxu0 %v3370
    %v3441 = vpop.f32.mrb[0].mxu0
    %v3442 = vadd.f32 0.0, %v3441
    %v3443 = vpop.f32.mrb[0].mxu0
    %3444 = vmatprep.mubr.f32.mxu0 0.0
    %3445 = vmatmul.mubr.f32.gmra.mrb[0].mxu0 %v3373
    %v3446 = vpop.f32.mrb[0].mxu0
    %v3447 = vadd.f32 0.0, %v3446
    %v3448 = vpop.f32.mrb[0].mxu0
    %3449 = vdwg.mxu0
    %3450 = vrot.lane.b32.xlu0 %v2640, 112
    %v3451 = vpop.permute.xlu0 %3450
    %3452 = vrot.lane.b32.xlu0 %v2643, 112
    %v3453 = vpop.permute.xlu0 %3452
    %3454 = vrot.lane.b32.xlu0 %v2640, 80
    %v3455 = vpop.permute.xlu0 %3454
    %3456 = vrot.lane.b32.xlu0 %v2643, 80
    %v3457 = vpop.permute.xlu0 %3456
    %v3458 = vsel %vm317, %v3451, 0
    %v3460 = vsel %vm317, %v3453, 0
    %v3462 = vsel %vm317, %v3455, 0
    %v3464 = vsel %vm317, %v3457, 0
    %3466 = vmatprep.subr.mxu0 0.0
    %3467 = vmatpush1.xpose.msra.mxu0 %v3462
    %3468 = vmatprep.subr.mxu0 0.0
    %3469 = vmatpush1.xpose.msra.mxu0 %v3464
    %3470 = vmatprep.subr.mxu0 0.0
    %3471 = vmatpush1.xpose.msra.mxu0 0.0
    %3472 = vmatprep.subr.mxu0 0.0
    %3473 = vmatpush1.xpose.msra.mxu0 0.0
    %3474 = vmatprep.subr.mxu0 0.0
    %3475 = vmatpush1.xpose.msra.mxu0 0.0
    %3476 = vmatprep.subr.mxu0 0.0
    %3477 = vmatpush1.xpose.msra.mxu0 0.0
    %3478 = vmatprep.subr.mxu0 0.0
    %3479 = vmatpush1.xpose.msra.mxu0 0.0
    %3480 = vmatprep.subr.mxu0 0.0
    %3481 = vmatpush1.xpose.msra.mxu0 0.0
    %3482 = vmatprep.subr.mxu0 0.0
    %3483 = vmatpush1.xpose.msra.mxu0 0.0
    %3484 = vmatprep.subr.mxu0 0.0
    %3485 = vmatpush1.xpose.msra.mxu0 0.0
    %3486 = vmatprep.subr.mxu0 0.0
    %3487 = vmatpush1.xpose.msra.mxu0 0.0
    %3488 = vmatprep.subr.mxu0 0.0
    %3489 = vmatpush1.xpose.msra.mxu0 0.0
    %3490 = vmatprep.subr.mxu0 0.0
    %3491 = vmatpush1.xpose.msra.mxu0 0.0
    %3492 = vmatprep.subr.mxu0 0.0
    %3493 = vmatpush1.xpose.msra.mxu0 0.0
    %3494 = vmatprep.subr.mxu0 0.0
    %3495 = vmatpush1.xpose.msra.mxu0 0.0
    %3496 = vmatprep.subr.mxu0 0.0
    %3497 = vmatpush1.xpose.msra.mxu0 0.0
    %3498 = vmatprep.subr.mxu0 0.0
    %3499 = vmatpush1.xpose.msra.mxu0 0.0
    %3500 = vmatprep.subr.mxu0 0.0
    %3501 = vmatpush1.xpose.msra.mxu0 0.0
    %3502 = vmatprep.subr.mxu0 0.0
    %3503 = vmatpush1.xpose.msra.mxu0 0.0
    %3504 = vmatprep.subr.mxu0 0.0
    %3505 = vmatpush1.xpose.msra.mxu0 0.0
    %3506 = vmatprep.subr.mxu0 0.0
    %3507 = vmatpush1.xpose.msra.mxu0 0.0
    %3508 = vmatprep.subr.mxu0 0.0
    %3509 = vmatpush1.xpose.msra.mxu0 0.0
    %3510 = vmatprep.subr.mxu0 0.0
    %3511 = vmatpush1.xpose.msra.mxu0 0.0
    %3512 = vmatprep.subr.mxu0 0.0
    %3513 = vmatpush1.xpose.msra.mxu0 0.0
    %3514 = vmatprep.subr.mxu0 0.0
    %3515 = vmatpush1.xpose.msra.mxu0 0.0
    %3516 = vmatprep.subr.mxu0 0.0
    %3517 = vmatpush1.xpose.msra.mxu0 0.0
    %3518 = vmatprep.subr.mxu0 0.0
    %3519 = vmatpush1.xpose.msra.mxu0 0.0
    %3520 = vmatprep.subr.mxu0 0.0
    %3521 = vmatpush1.xpose.msra.mxu0 0.0
    %3522 = vmatprep.subr.mxu0 0.0
    %3523 = vmatpush1.xpose.msra.mxu0 0.0
    %3524 = vmatprep.subr.mxu0 0.0
    %3525 = vmatpush1.xpose.msra.mxu0 0.0
    %3526 = vmatprep.subr.mxu0 0.0
    %3527 = vmatpush1.xpose.msra.mxu0 0.0
    %3528 = vmatprep.subr.mxu0 0.0
    %3529 = vmatpush1.xpose.msra.mxu0 0.0
    %3530 = vmatprep.mubr.f32.mxu0 0.0
    %3531 = vmatmul.mubr.f32.gmra.mrb[0].mxu0 %v3458
    %v3532 = vpop.f32.mrb[0].mxu0
    %v3533 = vadd.f32 0.0, %v3532
    %v3534 = vpop.f32.mrb[0].mxu0
    %3535 = vmatprep.mubr.f32.mxu0 0.0
    %3536 = vmatmul.mubr.f32.gmra.mrb[0].mxu0 %v3460
    %v3537 = vpop.f32.mrb[0].mxu0
    %v3538 = vadd.f32 0.0, %v3537
    %v3539 = vpop.f32.mrb[0].mxu0
    %3540 = vdwg.mxu0
    %3541 = vrot.lane.b32.xlu0 %v2648, 112
    %v3542 = vpop.permute.xlu0 %3541
    %3543 = vrot.lane.b32.xlu0 %v2651, 112
    %v3544 = vpop.permute.xlu0 %3543
    %3545 = vrot.lane.b32.xlu0 %v2648, 80
    %v3546 = vpop.permute.xlu0 %3545
    %3547 = vrot.lane.b32.xlu0 %v2651, 80
    %v3548 = vpop.permute.xlu0 %3547
    %v3549 = vsel %vm317, %v3542, 0
    %v3551 = vsel %vm317, %v3544, 0
    %v3553 = vsel %vm317, %v3546, 0
    %v3555 = vsel %vm317, %v3548, 0
    %3557 = vmatprep.subr.mxu0 0.0
    %3558 = vmatpush1.xpose.msra.mxu0 %v3553
    %3559 = vmatprep.subr.mxu0 0.0
    %3560 = vmatpush1.xpose.msra.mxu0 %v3555
    %3561 = vmatprep.subr.mxu0 0.0
    %3562 = vmatpush1.xpose.msra.mxu0 0.0
    %3563 = vmatprep.subr.mxu0 0.0
    %3564 = vmatpush1.xpose.msra.mxu0 0.0
    %3565 = vmatprep.subr.mxu0 0.0
    %3566 = vmatpush1.xpose.msra.mxu0 0.0
    %3567 = vmatprep.subr.mxu0 0.0
    %3568 = vmatpush1.xpose.msra.mxu0 0.0
    %3569 = vmatprep.subr.mxu0 0.0
    %3570 = vmatpush1.xpose.msra.mxu0 0.0
    %3571 = vmatprep.subr.mxu0 0.0
    %3572 = vmatpush1.xpose.msra.mxu0 0.0
    %3573 = vmatprep.subr.mxu0 0.0
    %3574 = vmatpush1.xpose.msra.mxu0 0.0
    %3575 = vmatprep.subr.mxu0 0.0
    %3576 = vmatpush1.xpose.msra.mxu0 0.0
    %3577 = vmatprep.subr.mxu0 0.0
    %3578 = vmatpush1.xpose.msra.mxu0 0.0
    %3579 = vmatprep.subr.mxu0 0.0
    %3580 = vmatpush1.xpose.msra.mxu0 0.0
    %3581 = vmatprep.subr.mxu0 0.0
    %3582 = vmatpush1.xpose.msra.mxu0 0.0
    %3583 = vmatprep.subr.mxu0 0.0
    %3584 = vmatpush1.xpose.msra.mxu0 0.0
    %3585 = vmatprep.subr.mxu0 0.0
    %3586 = vmatpush1.xpose.msra.mxu0 0.0
    %3587 = vmatprep.subr.mxu0 0.0
    %3588 = vmatpush1.xpose.msra.mxu0 0.0
    %3589 = vmatprep.subr.mxu0 0.0
    %3590 = vmatpush1.xpose.msra.mxu0 0.0
    %3591 = vmatprep.subr.mxu0 0.0
    %3592 = vmatpush1.xpose.msra.mxu0 0.0
    %3593 = vmatprep.subr.mxu0 0.0
    %3594 = vmatpush1.xpose.msra.mxu0 0.0
    %3595 = vmatprep.subr.mxu0 0.0
    %3596 = vmatpush1.xpose.msra.mxu0 0.0
    %3597 = vmatprep.subr.mxu0 0.0
    %3598 = vmatpush1.xpose.msra.mxu0 0.0
    %3599 = vmatprep.subr.mxu0 0.0
    %3600 = vmatpush1.xpose.msra.mxu0 0.0
    %3601 = vmatprep.subr.mxu0 0.0
    %3602 = vmatpush1.xpose.msra.mxu0 0.0
    %3603 = vmatprep.subr.mxu0 0.0
    %3604 = vmatpush1.xpose.msra.mxu0 0.0
    %3605 = vmatprep.subr.mxu0 0.0
    %3606 = vmatpush1.xpose.msra.mxu0 0.0
    %3607 = vmatprep.subr.mxu0 0.0
    %3608 = vmatpush1.xpose.msra.mxu0 0.0
    %3609 = vmatprep.subr.mxu0 0.0
    %3610 = vmatpush1.xpose.msra.mxu0 0.0
    %3611 = vmatprep.subr.mxu0 0.0
    %3612 = vmatpush1.xpose.msra.mxu0 0.0
    %3613 = vmatprep.subr.mxu0 0.0
    %3614 = vmatpush1.xpose.msra.mxu0 0.0
    %3615 = vmatprep.subr.mxu0 0.0
    %3616 = vmatpush1.xpose.msra.mxu0 0.0
    %3617 = vmatprep.subr.mxu0 0.0
    %3618 = vmatpush1.xpose.msra.mxu0 0.0
    %3619 = vmatprep.subr.mxu0 0.0
    %3620 = vmatpush1.xpose.msra.mxu0 0.0
    %3621 = vmatprep.mubr.f32.mxu0 0.0
    %3622 = vmatmul.mubr.f32.gmra.mrb[0].mxu0 %v3549
    %v3623 = vpop.f32.mrb[0].mxu0
    %v3624 = vadd.f32 0.0, %v3623
    %v3625 = vpop.f32.mrb[0].mxu0
    %3626 = vmatprep.mubr.f32.mxu0 0.0
    %3627 = vmatmul.mubr.f32.gmra.mrb[0].mxu0 %v3551
    %v3628 = vpop.f32.mrb[0].mxu0
    %v3629 = vadd.f32 0.0, %v3628
    %v3630 = vpop.f32.mrb[0].mxu0
    %3631 = vdwg.mxu0
    %v3632 = vsel %vm490, %v3533, -inf
    %3633 = vmax.xlane.f32.xlu0 %v3632
    %v3634 = vpop.xlane.xlu0 %3633
    %v3635 = vsel %vm490, %v3538, -inf
    %3636 = vmax.xlane.f32.xlu0 %v3635
    %v3637 = vpop.xlane.xlu0 %3636
    %v3638 = vsel %vm490, %v3624, -inf
    %3639 = vmax.xlane.f32.xlu0 %v3638
    %v3640 = vpop.xlane.xlu0 %3639
    %v3641 = vsel %vm490, %v3629, -inf
    %3642 = vmax.xlane.f32.xlu0 %v3641
    %v3643 = vpop.xlane.xlu0 %3642
    %v3644 = vsub.f32 %v3533, %v3634
    %v3645 = vsub.f32 %v3538, %v3637
    %v3646 = vsub.f32 %v3624, %v3640
    %v3647 = vsub.f32 %v3629, %v3643
    %v3648 = vmul.f32 %v3644, 1.442695
    %v3649 = vpow.pop %v3648
    %v3650 = vmul.f32 %v3645, 1.442695
    %v3651 = vpow.pop %v3650
    %v3652 = vmul.f32 %v3646, 1.442695
    %v3653 = vpow.pop %v3652
    %v3654 = vmul.f32 %v3647, 1.442695
    %v3655 = vpow.pop %v3654
    %v3656 = vsel %vm490, %v3649, 0.0
    %3657 = vadd.xlane.f32.xlu0 %v3656
    %v3658 = vpop.xlane.xlu0 %3657
    %v3659 = vsel %vm490, %v3651, 0.0
    %3660 = vadd.xlane.f32.xlu0 %v3659
    %v3661 = vpop.xlane.xlu0 %3660
    %v3662 = vsel %vm490, %v3653, 0.0
    %3663 = vadd.xlane.f32.xlu0 %v3662
    %v3664 = vpop.xlane.xlu0 %3663
    %v3665 = vsel %vm490, %v3655, 0.0
    %3666 = vadd.xlane.f32.xlu0 %v3665
    %v3667 = vpop.xlane.xlu0 %3666
    %v3668 = vrcp.pop %v3658
    %v3669 = vrcp.pop %v3661
    %v3670 = vrcp.pop %v3664
    %v3671 = vrcp.pop %v3667
    %v3672 = vmul.f32 %v3649, %v3668
    %v3673 = vmul.f32 %v3651, %v3669
    %v3674 = vmul.f32 %v3653, %v3670
    %v3675 = vmul.f32 %v3655, %v3671
    %3676 = vrot.lane.b32.xlu0 %v2640, 48
    %v3677 = vpop.permute.xlu0 %3676
    %3678 = vrot.lane.b32.xlu0 %v2643, 48
    %v3679 = vpop.permute.xlu0 %3678
    %v3683 = vsel %vm490, %v3672, 0
    %v3686 = vsel %vm490, %v3673, 0
    %3688 = vmatprep.subr.mxu0 0.0
    %3689 = vmatpush1.msra.mxu0 %v3677
    %3690 = vmatprep.subr.mxu0 0.0
    %3691 = vmatpush1.msra.mxu0 %v3679
    %3692 = vmatprep.subr.mxu0 0.0
    %3693 = vmatpush1.msra.mxu0 0.0
    %3694 = vmatprep.subr.mxu0 0.0
    %3695 = vmatpush1.msra.mxu0 0.0
    %3696 = vmatprep.subr.mxu0 0.0
    %3697 = vmatpush1.msra.mxu0 0.0
    %3698 = vmatprep.subr.mxu0 0.0
    %3699 = vmatpush1.msra.mxu0 0.0
    %3700 = vmatprep.subr.mxu0 0.0
    %3701 = vmatpush1.msra.mxu0 0.0
    %3702 = vmatprep.subr.mxu0 0.0
    %3703 = vmatpush1.msra.mxu0 0.0
    %3704 = vmatprep.subr.mxu0 0.0
    %3705 = vmatpush1.msra.mxu0 0.0
    %3706 = vmatprep.subr.mxu0 0.0
    %3707 = vmatpush1.msra.mxu0 0.0
    %3708 = vmatprep.subr.mxu0 0.0
    %3709 = vmatpush1.msra.mxu0 0.0
    %3710 = vmatprep.subr.mxu0 0.0
    %3711 = vmatpush1.msra.mxu0 0.0
    %3712 = vmatprep.subr.mxu0 0.0
    %3713 = vmatpush1.msra.mxu0 0.0
    %3714 = vmatprep.subr.mxu0 0.0
    %3715 = vmatpush1.msra.mxu0 0.0
    %3716 = vmatprep.subr.mxu0 0.0
    %3717 = vmatpush1.msra.mxu0 0.0
    %3718 = vmatprep.subr.mxu0 0.0
    %3719 = vmatpush1.msra.mxu0 0.0
    %3720 = vmatprep.subr.mxu0 0.0
    %3721 = vmatpush1.msra.mxu0 0.0
    %3722 = vmatprep.subr.mxu0 0.0
    %3723 = vmatpush1.msra.mxu0 0.0
    %3724 = vmatprep.subr.mxu0 0.0
    %3725 = vmatpush1.msra.mxu0 0.0
    %3726 = vmatprep.subr.mxu0 0.0
    %3727 = vmatpush1.msra.mxu0 0.0
    %3728 = vmatprep.subr.mxu0 0.0
    %3729 = vmatpush1.msra.mxu0 0.0
    %3730 = vmatprep.subr.mxu0 0.0
    %3731 = vmatpush1.msra.mxu0 0.0
    %3732 = vmatprep.subr.mxu0 0.0
    %3733 = vmatpush1.msra.mxu0 0.0
    %3734 = vmatprep.subr.mxu0 0.0
    %3735 = vmatpush1.msra.mxu0 0.0
    %3736 = vmatprep.subr.mxu0 0.0
    %3737 = vmatpush1.msra.mxu0 0.0
    %3738 = vmatprep.subr.mxu0 0.0
    %3739 = vmatpush1.msra.mxu0 0.0
    %3740 = vmatprep.subr.mxu0 0.0
    %3741 = vmatpush1.msra.mxu0 0.0
    %3742 = vmatprep.subr.mxu0 0.0
    %3743 = vmatpush1.msra.mxu0 0.0
    %3744 = vmatprep.subr.mxu0 0.0
    %3745 = vmatpush1.msra.mxu0 0.0
    %3746 = vmatprep.subr.mxu0 0.0
    %3747 = vmatpush1.msra.mxu0 0.0
    %3748 = vmatprep.subr.mxu0 0.0
    %3749 = vmatpush1.msra.mxu0 0.0
    %3750 = vmatprep.subr.mxu0 0.0
    %3751 = vmatpush1.msra.mxu0 0.0
    %3752 = vmatprep.mubr.f32.mxu0 0.0
    %3753 = vmatmul.mubr.f32.gmra.mrb[0].mxu0 %v3683
    %v3754 = vpop.f32.mrb[0].mxu0
    %v3755 = vadd.f32 0.0, %v3754
    %v3756 = vpop.f32.mrb[0].mxu0
    %3757 = vmatprep.mubr.f32.mxu0 0.0
    %3758 = vmatmul.mubr.f32.gmra.mrb[0].mxu0 %v3686
    %v3759 = vpop.f32.mrb[0].mxu0
    %v3760 = vadd.f32 0.0, %v3759
    %v3761 = vpop.f32.mrb[0].mxu0
    %3762 = vdwg.mxu0
    %3763 = vrot.lane.b32.xlu0 %v2648, 48
    %v3764 = vpop.permute.xlu0 %3763
    %3765 = vrot.lane.b32.xlu0 %v2651, 48
    %v3766 = vpop.permute.xlu0 %3765
    %v3770 = vsel %vm490, %v3674, 0
    %v3773 = vsel %vm490, %v3675, 0
    %3775 = vmatprep.subr.mxu0 0.0
    %3776 = vmatpush1.msra.mxu0 %v3764
    %3777 = vmatprep.subr.mxu0 0.0
    %3778 = vmatpush1.msra.mxu0 %v3766
    %3779 = vmatprep.subr.mxu0 0.0
    %3780 = vmatpush1.msra.mxu0 0.0
    %3781 = vmatprep.subr.mxu0 0.0
    %3782 = vmatpush1.msra.mxu0 0.0
    %3783 = vmatprep.subr.mxu0 0.0
    %3784 = vmatpush1.msra.mxu0 0.0
    %3785 = vmatprep.subr.mxu0 0.0
    %3786 = vmatpush1.msra.mxu0 0.0
    %3787 = vmatprep.subr.mxu0 0.0
    %3788 = vmatpush1.msra.mxu0 0.0
    %3789 = vmatprep.subr.mxu0 0.0
    %3790 = vmatpush1.msra.mxu0 0.0
    %3791 = vmatprep.subr.mxu0 0.0
    %3792 = vmatpush1.msra.mxu0 0.0
    %3793 = vmatprep.subr.mxu0 0.0
    %3794 = vmatpush1.msra.mxu0 0.0
    %3795 = vmatprep.subr.mxu0 0.0
    %3796 = vmatpush1.msra.mxu0 0.0
    %3797 = vmatprep.subr.mxu0 0.0
    %3798 = vmatpush1.msra.mxu0 0.0
    %3799 = vmatprep.subr.mxu0 0.0
    %3800 = vmatpush1.msra.mxu0 0.0
    %3801 = vmatprep.subr.mxu0 0.0
    %3802 = vmatpush1.msra.mxu0 0.0
    %3803 = vmatprep.subr.mxu0 0.0
    %3804 = vmatpush1.msra.mxu0 0.0
    %3805 = vmatprep.subr.mxu0 0.0
    %3806 = vmatpush1.msra.mxu0 0.0
    %3807 = vmatprep.subr.mxu0 0.0
    %3808 = vmatpush1.msra.mxu0 0.0
    %3809 = vmatprep.subr.mxu0 0.0
    %3810 = vmatpush1.msra.mxu0 0.0
    %3811 = vmatprep.subr.mxu0 0.0
    %3812 = vmatpush1.msra.mxu0 0.0
    %3813 = vmatprep.subr.mxu0 0.0
    %3814 = vmatpush1.msra.mxu0 0.0
    %3815 = vmatprep.subr.mxu0 0.0
    %3816 = vmatpush1.msra.mxu0 0.0
    %3817 = vmatprep.subr.mxu0 0.0
    %3818 = vmatpush1.msra.mxu0 0.0
    %3819 = vmatprep.subr.mxu0 0.0
    %3820 = vmatpush1.msra.mxu0 0.0
    %3821 = vmatprep.subr.mxu0 0.0
    %3822 = vmatpush1.msra.mxu0 0.0
    %3823 = vmatprep.subr.mxu0 0.0
    %3824 = vmatpush1.msra.mxu0 0.0
    %3825 = vmatprep.subr.mxu0 0.0
    %3826 = vmatpush1.msra.mxu0 0.0
    %3827 = vmatprep.subr.mxu0 0.0
    %3828 = vmatpush1.msra.mxu0 0.0
    %3829 = vmatprep.subr.mxu0 0.0
    %3830 = vmatpush1.msra.mxu0 0.0
    %3831 = vmatprep.subr.mxu0 0.0
    %3832 = vmatpush1.msra.mxu0 0.0
    %3833 = vmatprep.subr.mxu0 0.0
    %3834 = vmatpush1.msra.mxu0 0.0
    %3835 = vmatprep.subr.mxu0 0.0
    %3836 = vmatpush1.msra.mxu0 0.0
    %3837 = vmatprep.subr.mxu0 0.0
    %3838 = vmatpush1.msra.mxu0 0.0
    %3839 = vmatprep.mubr.f32.mxu0 0.0
    %3840 = vmatmul.mubr.f32.gmra.mrb[0].mxu0 %v3770
    %v3841 = vpop.f32.mrb[0].mxu0
    %v3842 = vadd.f32 0.0, %v3841
    %v3843 = vpop.f32.mrb[0].mxu0
    %3844 = vmatprep.mubr.f32.mxu0 0.0
    %3845 = vmatmul.mubr.f32.gmra.mrb[0].mxu0 %v3773
    %v3846 = vpop.f32.mrb[0].mxu0
    %v3847 = vadd.f32 0.0, %v3846
    %v3848 = vpop.f32.mrb[0].mxu0
    %3849 = vdwg.mxu0
    %3850 = vrot.lane.b32.xlu0 %v2640, 104
    %v3851 = vpop.permute.xlu0 %3850
    %3852 = vrot.lane.b32.xlu0 %v2643, 104
    %v3853 = vpop.permute.xlu0 %3852
    %3854 = vrot.lane.b32.xlu0 %v2640, 72
    %v3855 = vpop.permute.xlu0 %3854
    %3856 = vrot.lane.b32.xlu0 %v2643, 72
    %v3857 = vpop.permute.xlu0 %3856
    %v3858 = vsel %vm317, %v3851, 0
    %v3860 = vsel %vm317, %v3853, 0
    %v3862 = vsel %vm317, %v3855, 0
    %v3864 = vsel %vm317, %v3857, 0
    %3866 = vmatprep.subr.mxu0 0.0
    %3867 = vmatpush1.xpose.msra.mxu0 %v3862
    %3868 = vmatprep.subr.mxu0 0.0
    %3869 = vmatpush1.xpose.msra.mxu0 %v3864
    %3870 = vmatprep.subr.mxu0 0.0
    %3871 = vmatpush1.xpose.msra.mxu0 0.0
    %3872 = vmatprep.subr.mxu0 0.0
    %3873 = vmatpush1.xpose.msra.mxu0 0.0
    %3874 = vmatprep.subr.mxu0 0.0
    %3875 = vmatpush1.xpose.msra.mxu0 0.0
    %3876 = vmatprep.subr.mxu0 0.0
    %3877 = vmatpush1.xpose.msra.mxu0 0.0
    %3878 = vmatprep.subr.mxu0 0.0
    %3879 = vmatpush1.xpose.msra.mxu0 0.0
    %3880 = vmatprep.subr.mxu0 0.0
    %3881 = vmatpush1.xpose.msra.mxu0 0.0
    %3882 = vmatprep.subr.mxu0 0.0
    %3883 = vmatpush1.xpose.msra.mxu0 0.0
    %3884 = vmatprep.subr.mxu0 0.0
    %3885 = vmatpush1.xpose.msra.mxu0 0.0
    %3886 = vmatprep.subr.mxu0 0.0
    %3887 = vmatpush1.xpose.msra.mxu0 0.0
    %3888 = vmatprep.subr.mxu0 0.0
    %3889 = vmatpush1.xpose.msra.mxu0 0.0
    %3890 = vmatprep.subr.mxu0 0.0
    %3891 = vmatpush1.xpose.msra.mxu0 0.0
    %3892 = vmatprep.subr.mxu0 0.0
    %3893 = vmatpush1.xpose.msra.mxu0 0.0
    %3894 = vmatprep.subr.mxu0 0.0
    %3895 = vmatpush1.xpose.msra.mxu0 0.0
    %3896 = vmatprep.subr.mxu0 0.0
    %3897 = vmatpush1.xpose.msra.mxu0 0.0
    %3898 = vmatprep.subr.mxu0 0.0
    %3899 = vmatpush1.xpose.msra.mxu0 0.0
    %3900 = vmatprep.subr.mxu0 0.0
    %3901 = vmatpush1.xpose.msra.mxu0 0.0
    %3902 = vmatprep.subr.mxu0 0.0
    %3903 = vmatpush1.xpose.msra.mxu0 0.0
    %3904 = vmatprep.subr.mxu0 0.0
    %3905 = vmatpush1.xpose.msra.mxu0 0.0
    %3906 = vmatprep.subr.mxu0 0.0
    %3907 = vmatpush1.xpose.msra.mxu0 0.0
    %3908 = vmatprep.subr.mxu0 0.0
    %3909 = vmatpush1.xpose.msra.mxu0 0.0
    %3910 = vmatprep.subr.mxu0 0.0
    %3911 = vmatpush1.xpose.msra.mxu0 0.0
    %3912 = vmatprep.subr.mxu0 0.0
    %3913 = vmatpush1.xpose.msra.mxu0 0.0
    %3914 = vmatprep.subr.mxu0 0.0
    %3915 = vmatpush1.xpose.msra.mxu0 0.0
    %3916 = vmatprep.subr.mxu0 0.0
    %3917 = vmatpush1.xpose.msra.mxu0 0.0
    %3918 = vmatprep.subr.mxu0 0.0
    %3919 = vmatpush1.xpose.msra.mxu0 0.0
    %3920 = vmatprep.subr.mxu0 0.0
    %3921 = vmatpush1.xpose.msra.mxu0 0.0
    %3922 = vmatprep.subr.mxu0 0.0
    %3923 = vmatpush1.xpose.msra.mxu0 0.0
    %3924 = vmatprep.subr.mxu0 0.0
    %3925 = vmatpush1.xpose.msra.mxu0 0.0
    %3926 = vmatprep.subr.mxu0 0.0
    %3927 = vmatpush1.xpose.msra.mxu0 0.0
    %3928 = vmatprep.subr.mxu0 0.0
    %3929 = vmatpush1.xpose.msra.mxu0 0.0
    %3930 = vmatprep.mubr.f32.mxu0 0.0
    %3931 = vmatmul.mubr.f32.gmra.mrb[0].mxu0 %v3858
    %v3932 = vpop.f32.mrb[0].mxu0
    %v3933 = vadd.f32 0.0, %v3932
    %v3934 = vpop.f32.mrb[0].mxu0
    %3935 = vmatprep.mubr.f32.mxu0 0.0
    %3936 = vmatmul.mubr.f32.gmra.mrb[0].mxu0 %v3860
    %v3937 = vpop.f32.mrb[0].mxu0
    %v3938 = vadd.f32 0.0, %v3937
    %v3939 = vpop.f32.mrb[0].mxu0
    %3940 = vdwg.mxu0
    %3941 = vrot.lane.b32.xlu0 %v2648, 104
    %v3942 = vpop.permute.xlu0 %3941
    %3943 = vrot.lane.b32.xlu0 %v2651, 104
    %v3944 = vpop.permute.xlu0 %3943
    %3945 = vrot.lane.b32.xlu0 %v2648, 72
    %v3946 = vpop.permute.xlu0 %3945
    %3947 = vrot.lane.b32.xlu0 %v2651, 72
    %v3948 = vpop.permute.xlu0 %3947
    %v3949 = vsel %vm317, %v3942, 0
    %v3951 = vsel %vm317, %v3944, 0
    %v3953 = vsel %vm317, %v3946, 0
    %v3955 = vsel %vm317, %v3948, 0
    %3957 = vmatprep.subr.mxu0 0.0
    %3958 = vmatpush1.xpose.msra.mxu0 %v3953
    %3959 = vmatprep.subr.mxu0 0.0
    %3960 = vmatpush1.xpose.msra.mxu0 %v3955
    %3961 = vmatprep.subr.mxu0 0.0
    %3962 = vmatpush1.xpose.msra.mxu0 0.0
    %3963 = vmatprep.subr.mxu0 0.0
    %3964 = vmatpush1.xpose.msra.mxu0 0.0
    %3965 = vmatprep.subr.mxu0 0.0
    %3966 = vmatpush1.xpose.msra.mxu0 0.0
    %3967 = vmatprep.subr.mxu0 0.0
    %3968 = vmatpush1.xpose.msra.mxu0 0.0
    %3969 = vmatprep.subr.mxu0 0.0
    %3970 = vmatpush1.xpose.msra.mxu0 0.0
    %3971 = vmatprep.subr.mxu0 0.0
    %3972 = vmatpush1.xpose.msra.mxu0 0.0
    %3973 = vmatprep.subr.mxu0 0.0
    %3974 = vmatpush1.xpose.msra.mxu0 0.0
    %3975 = vmatprep.subr.mxu0 0.0
    %3976 = vmatpush1.xpose.msra.mxu0 0.0
    %3977 = vmatprep.subr.mxu0 0.0
    %3978 = vmatpush1.xpose.msra.mxu0 0.0
    %3979 = vmatprep.subr.mxu0 0.0
    %3980 = vmatpush1.xpose.msra.mxu0 0.0
    %3981 = vmatprep.subr.mxu0 0.0
    %3982 = vmatpush1.xpose.msra.mxu0 0.0
    %3983 = vmatprep.subr.mxu0 0.0
    %3984 = vmatpush1.xpose.msra.mxu0 0.0
    %3985 = vmatprep.subr.mxu0 0.0
    %3986 = vmatpush1.xpose.msra.mxu0 0.0
    %3987 = vmatprep.subr.mxu0 0.0
    %3988 = vmatpush1.xpose.msra.mxu0 0.0
    %3989 = vmatprep.subr.mxu0 0.0
    %3990 = vmatpush1.xpose.msra.mxu0 0.0
    %3991 = vmatprep.subr.mxu0 0.0
    %3992 = vmatpush1.xpose.msra.mxu0 0.0
    %3993 = vmatprep.subr.mxu0 0.0
    %3994 = vmatpush1.xpose.msra.mxu0 0.0
    %3995 = vmatprep.subr.mxu0 0.0
    %3996 = vmatpush1.xpose.msra.mxu0 0.0
    %3997 = vmatprep.subr.mxu0 0.0
    %3998 = vmatpush1.xpose.msra.mxu0 0.0
    %3999 = vmatprep.subr.mxu0 0.0
    %4000 = vmatpush1.xpose.msra.mxu0 0.0
    %4001 = vmatprep.subr.mxu0 0.0
    %4002 = vmatpush1.xpose.msra.mxu0 0.0
    %4003 = vmatprep.subr.mxu0 0.0
    %4004 = vmatpush1.xpose.msra.mxu0 0.0
    %4005 = vmatprep.subr.mxu0 0.0
    %4006 = vmatpush1.xpose.msra.mxu0 0.0
    %4007 = vmatprep.subr.mxu0 0.0
    %4008 = vmatpush1.xpose.msra.mxu0 0.0
    %4009 = vmatprep.subr.mxu0 0.0
    %4010 = vmatpush1.xpose.msra.mxu0 0.0
    %4011 = vmatprep.subr.mxu0 0.0
    %4012 = vmatpush1.xpose.msra.mxu0 0.0
    %4013 = vmatprep.subr.mxu0 0.0
    %4014 = vmatpush1.xpose.msra.mxu0 0.0
    %4015 = vmatprep.subr.mxu0 0.0
    %4016 = vmatpush1.xpose.msra.mxu0 0.0
    %4017 = vmatprep.subr.mxu0 0.0
    %4018 = vmatpush1.xpose.msra.mxu0 0.0
    %4019 = vmatprep.subr.mxu0 0.0
    %4020 = vmatpush1.xpose.msra.mxu0 0.0
    %4021 = vmatprep.mubr.f32.mxu0 0.0
    %4022 = vmatmul.mubr.f32.gmra.mrb[0].mxu0 %v3949
    %v4023 = vpop.f32.mrb[0].mxu0
    %v4024 = vadd.f32 0.0, %v4023
    %v4025 = vpop.f32.mrb[0].mxu0
    %4026 = vmatprep.mubr.f32.mxu0 0.0
    %4027 = vmatmul.mubr.f32.gmra.mrb[0].mxu0 %v3951
    %v4028 = vpop.f32.mrb[0].mxu0
    %v4029 = vadd.f32 0.0, %v4028
    %v4030 = vpop.f32.mrb[0].mxu0
    %4031 = vdwg.mxu0
    %v4032 = vsel %vm490, %v3933, -inf
    %4033 = vmax.xlane.f32.xlu0 %v4032
    %v4034 = vpop.xlane.xlu0 %4033
    %v4035 = vsel %vm490, %v3938, -inf
    %4036 = vmax.xlane.f32.xlu0 %v4035
    %v4037 = vpop.xlane.xlu0 %4036
    %v4038 = vsel %vm490, %v4024, -inf
    %4039 = vmax.xlane.f32.xlu0 %v4038
    %v4040 = vpop.xlane.xlu0 %4039
    %v4041 = vsel %vm490, %v4029, -inf
    %4042 = vmax.xlane.f32.xlu0 %v4041
    %v4043 = vpop.xlane.xlu0 %4042
    %v4044 = vsub.f32 %v3933, %v4034
    %v4045 = vsub.f32 %v3938, %v4037
    %v4046 = vsub.f32 %v4024, %v4040
    %v4047 = vsub.f32 %v4029, %v4043
    %v4048 = vmul.f32 %v4044, 1.442695
    %v4049 = vpow.pop %v4048
    %v4050 = vmul.f32 %v4045, 1.442695
    %v4051 = vpow.pop %v4050
    %v4052 = vmul.f32 %v4046, 1.442695
    %v4053 = vpow.pop %v4052
    %v4054 = vmul.f32 %v4047, 1.442695
    %v4055 = vpow.pop %v4054
    %v4056 = vsel %vm490, %v4049, 0.0
    %4057 = vadd.xlane.f32.xlu0 %v4056
    %v4058 = vpop.xlane.xlu0 %4057
    %v4059 = vsel %vm490, %v4051, 0.0
    %4060 = vadd.xlane.f32.xlu0 %v4059
    %v4061 = vpop.xlane.xlu0 %4060
    %v4062 = vsel %vm490, %v4053, 0.0
    %4063 = vadd.xlane.f32.xlu0 %v4062
    %v4064 = vpop.xlane.xlu0 %4063
    %v4065 = vsel %vm490, %v4055, 0.0
    %4066 = vadd.xlane.f32.xlu0 %v4065
    %v4067 = vpop.xlane.xlu0 %4066
    %v4068 = vrcp.pop %v4058
    %v4069 = vrcp.pop %v4061
    %v4070 = vrcp.pop %v4064
    %v4071 = vrcp.pop %v4067
    %v4072 = vmul.f32 %v4049, %v4068
    %v4073 = vmul.f32 %v4051, %v4069
    %v4074 = vmul.f32 %v4053, %v4070
    %v4075 = vmul.f32 %v4055, %v4071
    %4076 = vrot.lane.b32.xlu0 %v2640, 40
    %v4077 = vpop.permute.xlu0 %4076
    %4078 = vrot.lane.b32.xlu0 %v2643, 40
    %v4079 = vpop.permute.xlu0 %4078
    %v4083 = vsel %vm490, %v4072, 0
    %v4086 = vsel %vm490, %v4073, 0
    %4088 = vmatprep.subr.mxu0 0.0
    %4089 = vmatpush1.msra.mxu0 %v4077
    %4090 = vmatprep.subr.mxu0 0.0
    %4091 = vmatpush1.msra.mxu0 %v4079
    %4092 = vmatprep.subr.mxu0 0.0
    %4093 = vmatpush1.msra.mxu0 0.0
    %4094 = vmatprep.subr.mxu0 0.0
    %4095 = vmatpush1.msra.mxu0 0.0
    %4096 = vmatprep.subr.mxu0 0.0
    %4097 = vmatpush1.msra.mxu0 0.0
    %4098 = vmatprep.subr.mxu0 0.0
    %4099 = vmatpush1.msra.mxu0 0.0
    %4100 = vmatprep.subr.mxu0 0.0
    %4101 = vmatpush1.msra.mxu0 0.0
    %4102 = vmatprep.subr.mxu0 0.0
    %4103 = vmatpush1.msra.mxu0 0.0
    %4104 = vmatprep.subr.mxu0 0.0
    %4105 = vmatpush1.msra.mxu0 0.0
    %4106 = vmatprep.subr.mxu0 0.0
    %4107 = vmatpush1.msra.mxu0 0.0
    %4108 = vmatprep.subr.mxu0 0.0
    %4109 = vmatpush1.msra.mxu0 0.0
    %4110 = vmatprep.subr.mxu0 0.0
    %4111 = vmatpush1.msra.mxu0 0.0
    %4112 = vmatprep.subr.mxu0 0.0
    %4113 = vmatpush1.msra.mxu0 0.0
    %4114 = vmatprep.subr.mxu0 0.0
    %4115 = vmatpush1.msra.mxu0 0.0
    %4116 = vmatprep.subr.mxu0 0.0
    %4117 = vmatpush1.msra.mxu0 0.0
    %4118 = vmatprep.subr.mxu0 0.0
    %4119 = vmatpush1.msra.mxu0 0.0
    %4120 = vmatprep.subr.mxu0 0.0
    %4121 = vmatpush1.msra.mxu0 0.0
    %4122 = vmatprep.subr.mxu0 0.0
    %4123 = vmatpush1.msra.mxu0 0.0
    %4124 = vmatprep.subr.mxu0 0.0
    %4125 = vmatpush1.msra.mxu0 0.0
    %4126 = vmatprep.subr.mxu0 0.0
    %4127 = vmatpush1.msra.mxu0 0.0
    %4128 = vmatprep.subr.mxu0 0.0
    %4129 = vmatpush1.msra.mxu0 0.0
    %4130 = vmatprep.subr.mxu0 0.0
    %4131 = vmatpush1.msra.mxu0 0.0
    %4132 = vmatprep.subr.mxu0 0.0
    %4133 = vmatpush1.msra.mxu0 0.0
    %4134 = vmatprep.subr.mxu0 0.0
    %4135 = vmatpush1.msra.mxu0 0.0
    %4136 = vmatprep.subr.mxu0 0.0
    %4137 = vmatpush1.msra.mxu0 0.0
    %4138 = vmatprep.subr.mxu0 0.0
    %4139 = vmatpush1.msra.mxu0 0.0
    %4140 = vmatprep.subr.mxu0 0.0
    %4141 = vmatpush1.msra.mxu0 0.0
    %4142 = vmatprep.subr.mxu0 0.0
    %4143 = vmatpush1.msra.mxu0 0.0
    %4144 = vmatprep.subr.mxu0 0.0
    %4145 = vmatpush1.msra.mxu0 0.0
    %4146 = vmatprep.subr.mxu0 0.0
    %4147 = vmatpush1.msra.mxu0 0.0
    %4148 = vmatprep.subr.mxu0 0.0
    %4149 = vmatpush1.msra.mxu0 0.0
    %4150 = vmatprep.subr.mxu0 0.0
    %4151 = vmatpush1.msra.mxu0 0.0
    %4152 = vmatprep.mubr.f32.mxu0 0.0
    %4153 = vmatmul.mubr.f32.gmra.mrb[0].mxu0 %v4083
    %v4154 = vpop.f32.mrb[0].mxu0
    %v4155 = vadd.f32 0.0, %v4154
    %v4156 = vpop.f32.mrb[0].mxu0
    %4157 = vmatprep.mubr.f32.mxu0 0.0
    %4158 = vmatmul.mubr.f32.gmra.mrb[0].mxu0 %v4086
    %v4159 = vpop.f32.mrb[0].mxu0
    %v4160 = vadd.f32 0.0, %v4159
    %v4161 = vpop.f32.mrb[0].mxu0
    %4162 = vdwg.mxu0
    %4163 = vrot.lane.b32.xlu0 %v2648, 40
    %v4164 = vpop.permute.xlu0 %4163
    %4165 = vrot.lane.b32.xlu0 %v2651, 40
    %v4166 = vpop.permute.xlu0 %4165
    %v4170 = vsel %vm490, %v4074, 0
    %v4173 = vsel %vm490, %v4075, 0
    %4175 = vmatprep.subr.mxu0 0.0
    %4176 = vmatpush1.msra.mxu0 %v4164
    %4177 = vmatprep.subr.mxu0 0.0
    %4178 = vmatpush1.msra.mxu0 %v4166
    %4179 = vmatprep.subr.mxu0 0.0
    %4180 = vmatpush1.msra.mxu0 0.0
    %4181 = vmatprep.subr.mxu0 0.0
    %4182 = vmatpush1.msra.mxu0 0.0
    %4183 = vmatprep.subr.mxu0 0.0
    %4184 = vmatpush1.msra.mxu0 0.0
    %4185 = vmatprep.subr.mxu0 0.0
    %4186 = vmatpush1.msra.mxu0 0.0
    %4187 = vmatprep.subr.mxu0 0.0
    %4188 = vmatpush1.msra.mxu0 0.0
    %4189 = vmatprep.subr.mxu0 0.0
    %4190 = vmatpush1.msra.mxu0 0.0
    %4191 = vmatprep.subr.mxu0 0.0
    %4192 = vmatpush1.msra.mxu0 0.0
    %4193 = vmatprep.subr.mxu0 0.0
    %4194 = vmatpush1.msra.mxu0 0.0
    %4195 = vmatprep.subr.mxu0 0.0
    %4196 = vmatpush1.msra.mxu0 0.0
    %4197 = vmatprep.subr.mxu0 0.0
    %4198 = vmatpush1.msra.mxu0 0.0
    %4199 = vmatprep.subr.mxu0 0.0
    %4200 = vmatpush1.msra.mxu0 0.0
    %4201 = vmatprep.subr.mxu0 0.0
    %4202 = vmatpush1.msra.mxu0 0.0
    %4203 = vmatprep.subr.mxu0 0.0
    %4204 = vmatpush1.msra.mxu0 0.0
    %4205 = vmatprep.subr.mxu0 0.0
    %4206 = vmatpush1.msra.mxu0 0.0
    %4207 = vmatprep.subr.mxu0 0.0
    %4208 = vmatpush1.msra.mxu0 0.0
    %4209 = vmatprep.subr.mxu0 0.0
    %4210 = vmatpush1.msra.mxu0 0.0
    %4211 = vmatprep.subr.mxu0 0.0
    %4212 = vmatpush1.msra.mxu0 0.0
    %4213 = vmatprep.subr.mxu0 0.0
    %4214 = vmatpush1.msra.mxu0 0.0
    %4215 = vmatprep.subr.mxu0 0.0
    %4216 = vmatpush1.msra.mxu0 0.0
    %4217 = vmatprep.subr.mxu0 0.0
    %4218 = vmatpush1.msra.mxu0 0.0
    %4219 = vmatprep.subr.mxu0 0.0
    %4220 = vmatpush1.msra.mxu0 0.0
    %4221 = vmatprep.subr.mxu0 0.0
    %4222 = vmatpush1.msra.mxu0 0.0
    %4223 = vmatprep.subr.mxu0 0.0
    %4224 = vmatpush1.msra.mxu0 0.0
    %4225 = vmatprep.subr.mxu0 0.0
    %4226 = vmatpush1.msra.mxu0 0.0
    %4227 = vmatprep.subr.mxu0 0.0
    %4228 = vmatpush1.msra.mxu0 0.0
    %4229 = vmatprep.subr.mxu0 0.0
    %4230 = vmatpush1.msra.mxu0 0.0
    %4231 = vmatprep.subr.mxu0 0.0
    %4232 = vmatpush1.msra.mxu0 0.0
    %4233 = vmatprep.subr.mxu0 0.0
    %4234 = vmatpush1.msra.mxu0 0.0
    %4235 = vmatprep.subr.mxu0 0.0
    %4236 = vmatpush1.msra.mxu0 0.0
    %4237 = vmatprep.subr.mxu0 0.0
    %4238 = vmatpush1.msra.mxu0 0.0
    %4239 = vmatprep.mubr.f32.mxu0 0.0
    %4240 = vmatmul.mubr.f32.gmra.mrb[0].mxu0 %v4170
    %v4241 = vpop.f32.mrb[0].mxu0
    %v4242 = vadd.f32 0.0, %v4241
    %v4243 = vpop.f32.mrb[0].mxu0
    %4244 = vmatprep.mubr.f32.mxu0 0.0
    %4245 = vmatmul.mubr.f32.gmra.mrb[0].mxu0 %v4173
    %v4246 = vpop.f32.mrb[0].mxu0
    %v4247 = vadd.f32 0.0, %v4246
    %v4248 = vpop.f32.mrb[0].mxu0
    %4249 = vdwg.mxu0
    %4254 = vrot.lane.b32.xlu0 %v3355, 8
    %v4255 = vpop.permute.xlu0 %4254
    %4256 = vrot.lane.b32.xlu0 %v3360, 8
    %v4257 = vpop.permute.xlu0 %4256
    %4258 = vrot.lane.b32.xlu0 %v3442, 8
    %v4259 = vpop.permute.xlu0 %4258
    %4260 = vrot.lane.b32.xlu0 %v3447, 8
    %v4261 = vpop.permute.xlu0 %4260
    %4270 = vrot.lane.b32.xlu0 %v3755, 16
    %v4271 = vpop.permute.xlu0 %4270
    %4272 = vrot.lane.b32.xlu0 %v3760, 16
    %v4273 = vpop.permute.xlu0 %4272
    %4274 = vrot.lane.b32.xlu0 %v3842, 16
    %v4275 = vpop.permute.xlu0 %4274
    %4276 = vrot.lane.b32.xlu0 %v3847, 16
    %v4277 = vpop.permute.xlu0 %4276
    %4286 = vrot.lane.b32.xlu0 %v4155, 24
    %v4287 = vpop.permute.xlu0 %4286
    %4288 = vrot.lane.b32.xlu0 %v4160, 24
    %v4289 = vpop.permute.xlu0 %4288
    %4290 = vrot.lane.b32.xlu0 %v4242, 24
    %v4291 = vpop.permute.xlu0 %4290
    %4292 = vrot.lane.b32.xlu0 %v4247, 24
    %v4293 = vpop.permute.xlu0 %4292
    %v4298 = vsel %vm317, %v2955, %v4255
    %v4299 = vsel %vm317, %v2960, %v4257
    %v4300 = vsel %vm317, %v3042, %v4259
    %v4301 = vsel %vm317, %v3047, %v4261
    %v4302 = vsel %vm490, %v4298, %v4271
    %v4303 = vsel %vm490, %v4299, %v4273
    %v4304 = vsel %vm490, %v4300, %v4275
    %v4305 = vsel %vm490, %v4301, %v4277
    %v4306 = vsel %vm1965, %v4302, %v4287
    %v4307 = vsel %vm1965, %v4303, %v4289
    %v4308 = vsel %vm1965, %v4304, %v4291
    %v4309 = vsel %vm1965, %v4305, %v4293
    %v4310 = vpack.c.bf16 %v4307, %v4306
    %v4311 = vpack.c.bf16 %v4309, %v4308
    %s4312 = scalar_lea.vmem [#allocation10], 16
    %v4313 = vld [vmem:[%s4312] sm:$0xf]
    %v4314 = vld [vmem:[%s4312 + $0x4] sm:$0xf]
    %v4315 = vld [vmem:[%s4312 + $0x8] sm:$0xf]
    %v4316 = vld [vmem:[%s4312 + $0xc] sm:$0xf]
    %v4317 = vlaneseq
    %v4318 = vshrl.u32 %v4317, 7
    %v4319 = vsub.s32 0, %v4318
    %v4320 = vrot.slane %v122, %v4319
    %v4325 = vunpack.c.l.b16 %v4313
    %v4326 = vunpack.c.l.b16 %v4314
    %v4327 = vunpack.c.l.b16 %v4315
    %v4328 = vunpack.c.l.b16 %v4316
    %v4329 = vpack.c.b16 %v4326, %v4325
    %v4330 = vpack.c.b16 %v4328, %v4327
    %v4334 = vsel %vm1992, %v4310, 0
    %v4337 = vsel %vm1992, %v4311, 0
    %4339 = vmatprep.subr.bf16.mxu0 0
    %4340 = vmatpush1.bf16.msra.mxu0 %v4329
    %4341 = vmatprep.subr.bf16.mxu0 0
    %4342 = vmatpush1.bf16.msra.mxu0 %v4330
    %4343 = vmatprep.subr.bf16.mxu0 0
    %4344 = vmatpush1.bf16.msra.mxu0 0
    %4345 = vmatprep.subr.bf16.mxu0 0
    %4346 = vmatpush1.bf16.msra.mxu0 0
    %4347 = vmatprep.subr.bf16.mxu0 0
    %4348 = vmatpush1.bf16.msra.mxu0 0
    %4349 = vmatprep.subr.bf16.mxu0 0
    %4350 = vmatpush1.bf16.msra.mxu0 0
    %4351 = vmatprep.subr.bf16.mxu0 0
    %4352 = vmatpush1.bf16.msra.mxu0 0
    %4353 = vmatprep.subr.bf16.mxu0 0
    %4354 = vmatpush1.bf16.msra.mxu0 0
    %4355 = vmatprep.subr.bf16.mxu0 0
    %4356 = vmatpush1.bf16.msra.mxu0 0
    %4357 = vmatprep.subr.bf16.mxu0 0
    %4358 = vmatpush1.bf16.msra.mxu0 0
    %4359 = vmatprep.subr.bf16.mxu0 0
    %4360 = vmatpush1.bf16.msra.mxu0 0
    %4361 = vmatprep.subr.bf16.mxu0 0
    %4362 = vmatpush1.bf16.msra.mxu0 0
    %4363 = vmatprep.subr.bf16.mxu0 0
    %4364 = vmatpush1.bf16.msra.mxu0 0
    %4365 = vmatprep.subr.bf16.mxu0 0
    %4366 = vmatpush1.bf16.msra.mxu0 0
    %4367 = vmatprep.subr.bf16.mxu0 0
    %4368 = vmatpush1.bf16.msra.mxu0 0
    %4369 = vmatprep.subr.bf16.mxu0 0
    %4370 = vmatpush1.bf16.msra.mxu0 0
    %4371 = vmatprep.mubr.bf16.mxu0 0
    %4372 = vmatmul.mubr.bf16.gmra.mrb[0].mxu0 %v4334
    %v4373 = vpop.f32.mrb[0].mxu0
    %v4374 = vadd.f32 %v4320, %v4373
    %v4375 = vpop.f32.mrb[0].mxu0
    %v4376 = vpop.f32.mrb[0].mxu0
    %v4377 = vadd.f32 %v4320, %v4376
    %v4378 = vpop.f32.mrb[0].mxu0
    %4379 = vmatprep.mubr.bf16.mxu0 0
    %4380 = vmatmul.mubr.bf16.gmra.mrb[0].mxu0 %v4337
    %v4381 = vpop.f32.mrb[0].mxu0
    %v4382 = vadd.f32 %v4320, %v4381
    %v4383 = vpop.f32.mrb[0].mxu0
    %v4384 = vpop.f32.mrb[0].mxu0
    %v4385 = vadd.f32 %v4320, %v4384
    %v4386 = vpop.f32.mrb[0].mxu0
    %4387 = vdwg.mxu0
    %v4388 = vadd.f32 %v2466, %v4374
    %v4389 = vadd.f32 %v2467, %v4377
    %v4390 = vadd.f32 %v2468, %v4382
    %v4391 = vadd.f32 %v2469, %v4385
    %4392 = vadd.xlane.f32.xlu0 %v4388
    %v4393 = vpop.xlane.xlu0 %4392
    %4394 = vadd.xlane.f32.xlu0 %v4389
    %v4395 = vpop.xlane.xlu0 %4394
    %4396 = vadd.xlane.f32.xlu0 %v4390
    %v4397 = vpop.xlane.xlu0 %4396
    %4398 = vadd.xlane.f32.xlu0 %v4391
    %v4399 = vpop.xlane.xlu0 %4398
    %v4400 = vmul.f32 %v4393, 0.03125
    %v4401 = vmul.f32 %v4395, 0.03125
    %v4402 = vmul.f32 %v4397, 0.03125
    %v4403 = vmul.f32 %v4399, 0.03125
    %v4404 = vmul.f32 %v4388, %v4388
    %v4405 = vmul.f32 %v4389, %v4389
    %v4406 = vmul.f32 %v4390, %v4390
    %v4407 = vmul.f32 %v4391, %v4391
    %4408 = vadd.xlane.f32.xlu0 %v4404
    %v4409 = vpop.xlane.xlu0 %4408
    %4410 = vadd.xlane.f32.xlu0 %v4405
    %v4411 = vpop.xlane.xlu0 %4410
    %4412 = vadd.xlane.f32.xlu0 %v4406
    %v4413 = vpop.xlane.xlu0 %4412
    %4414 = vadd.xlane.f32.xlu0 %v4407
    %v4415 = vpop.xlane.xlu0 %4414
    %v4416 = vmul.f32 %v4409, 0.03125
    %v4417 = vmul.f32 %v4411, 0.03125
    %v4418 = vmul.f32 %v4413, 0.03125
    %v4419 = vmul.f32 %v4415, 0.03125
    %v4420 = vmul.f32 %v4400, %v4400
    %v4421 = vmul.f32 %v4401, %v4401
    %v4422 = vmul.f32 %v4402, %v4402
    %v4423 = vmul.f32 %v4403, %v4403
    %v4424 = vsub.f32 %v4416, %v4420
    %v4425 = vsub.f32 %v4417, %v4421
    %v4426 = vsub.f32 %v4418, %v4422
    %v4427 = vsub.f32 %v4419, %v4423
    %v4428 = vsub.f32 %v4388, %v4400
    %v4429 = vsub.f32 %v4389, %v4401
    %v4430 = vsub.f32 %v4390, %v4402
    %v4431 = vsub.f32 %v4391, %v4403
    %v4432 = vadd.f32 %v4424, 1e-05
    %v4433 = vadd.f32 %v4425, 1e-05
    %v4434 = vadd.f32 %v4426, 1e-05
    %v4435 = vadd.f32 %v4427, 1e-05
    %v4436 = vrsqrt.pop %v4432
    %v4437 = vrsqrt.pop %v4433
    %v4438 = vrsqrt.pop %v4434
    %v4439 = vrsqrt.pop %v4435
    %v4440 = vmul.f32 %v4428, %v4436
    %v4441 = vmul.f32 %v4429, %v4437
    %v4442 = vmul.f32 %v4430, %v4438
    %v4443 = vmul.f32 %v4431, %v4439
    %v4444 = vlaneseq
    %v4445 = vshrl.u32 %v4444, 7
    %v4446 = vsub.s32 1, %v4445
    %v4447 = vrot.slane %v122, %v4446
    %v4448 = vmul.f32 %v4440, %v4447
    %v4449 = vmul.f32 %v4441, %v4447
    %v4450 = vmul.f32 %v4442, %v4447
    %v4451 = vmul.f32 %v4443, %v4447
    %v4452 = vlaneseq
    %v4453 = vshrl.u32 %v4452, 7
    %v4454 = vsub.s32 2, %v4453
    %v4455 = vrot.slane %v122, %v4454
    %v4456 = vadd.f32 %v4448, %v4455
    %v4457 = vadd.f32 %v4449, %v4455
    %v4458 = vadd.f32 %v4450, %v4455
    %v4459 = vadd.f32 %v4451, %v4455
    %v4460 = vpack.c.bf16 %v4457, %v4456
    %v4461 = vpack.c.bf16 %v4459, %v4458
    %s4462 = scalar_lea.vmem [#allocation11], 64
    %v4463 = vld [vmem:[%s4462] sm:$0xf]
    %v4464 = vld [vmem:[%s4462 + $0x4] sm:$0xf]
    %v4465 = vld [vmem:[%s4462 + $0x8] sm:$0xf]
    %v4466 = vld [vmem:[%s4462 + $0xc] sm:$0xf]
    %v4467 = vld [vmem:[%s4462 + $0x10] sm:$0xf]
    %v4468 = vld [vmem:[%s4462 + $0x14] sm:$0xf]
    %v4469 = vld [vmem:[%s4462 + $0x18] sm:$0xf]
    %v4470 = vld [vmem:[%s4462 + $0x1c] sm:$0xf]
    %v4471 = vld [vmem:[%s4462 + $0x20] sm:$0xf]
    %v4472 = vld [vmem:[%s4462 + $0x24] sm:$0xf]
    %v4473 = vld [vmem:[%s4462 + $0x28] sm:$0xf]
    %v4474 = vld [vmem:[%s4462 + $0x2c] sm:$0xf]
    %v4475 = vld [vmem:[%s4462 + $0x30] sm:$0xf]
    %v4476 = vld [vmem:[%s4462 + $0x34] sm:$0xf]
    %v4477 = vld [vmem:[%s4462 + $0x38] sm:$0xf]
    %v4478 = vld [vmem:[%s4462 + $0x3c] sm:$0xf]
    %v4479 = vlaneseq
    %v4480 = vshrl.u32 %v4479, 7
    %v4481 = vsub.s32 1, %v4480
    %v4482 = vrot.slane %v123, %v4481
    %v4499 = vunpack.c.l.b16 %v4463
    %v4500 = vunpack.c.l.b16 %v4464
    %v4501 = vunpack.c.l.b16 %v4465
    %v4502 = vunpack.c.l.b16 %v4466
    %v4503 = vunpack.c.l.b16 %v4467
    %v4504 = vunpack.c.l.b16 %v4468
    %v4505 = vunpack.c.l.b16 %v4469
    %v4506 = vunpack.c.l.b16 %v4470
    %v4507 = vunpack.c.l.b16 %v4471
    %v4508 = vunpack.c.l.b16 %v4472
    %v4509 = vunpack.c.l.b16 %v4473
    %v4510 = vunpack.c.l.b16 %v4474
    %v4511 = vunpack.c.l.b16 %v4475
    %v4512 = vunpack.c.l.b16 %v4476
    %v4513 = vunpack.c.l.b16 %v4477
    %v4514 = vunpack.c.l.b16 %v4478
    %v4515 = vpack.c.b16 %v4500, %v4499
    %v4516 = vpack.c.b16 %v4502, %v4501
    %v4517 = vpack.c.b16 %v4504, %v4503
    %v4518 = vpack.c.b16 %v4506, %v4505
    %v4519 = vpack.c.b16 %v4508, %v4507
    %v4520 = vpack.c.b16 %v4510, %v4509
    %v4521 = vpack.c.b16 %v4512, %v4511
    %v4522 = vpack.c.b16 %v4514, %v4513
    %4531 = vmatprep.subr.bf16.mxu0 0
    %4532 = vmatpush1.bf16.msra.mxu0 %v4515
    %4533 = vmatprep.subr.bf16.mxu0 0
    %4534 = vmatpush1.bf16.msra.mxu0 %v4516
    %4535 = vmatprep.subr.bf16.mxu0 0
    %4536 = vmatpush1.bf16.msra.mxu0 %v4517
    %4537 = vmatprep.subr.bf16.mxu0 0
    %4538 = vmatpush1.bf16.msra.mxu0 %v4518
    %4539 = vmatprep.subr.bf16.mxu0 0
    %4540 = vmatpush1.bf16.msra.mxu0 %v4519
    %4541 = vmatprep.subr.bf16.mxu0 0
    %4542 = vmatpush1.bf16.msra.mxu0 %v4520
    %4543 = vmatprep.subr.bf16.mxu0 0
    %4544 = vmatpush1.bf16.msra.mxu0 %v4521
    %4545 = vmatprep.subr.bf16.mxu0 0
    %4546 = vmatpush1.bf16.msra.mxu0 %v4522
    %4547 = vmatprep.subr.bf16.mxu0 0
    %4548 = vmatpush1.bf16.msra.mxu0 0
    %4549 = vmatprep.subr.bf16.mxu0 0
    %4550 = vmatpush1.bf16.msra.mxu0 0
    %4551 = vmatprep.subr.bf16.mxu0 0
    %4552 = vmatpush1.bf16.msra.mxu0 0
    %4553 = vmatprep.subr.bf16.mxu0 0
    %4554 = vmatpush1.bf16.msra.mxu0 0
    %4555 = vmatprep.subr.bf16.mxu0 0
    %4556 = vmatpush1.bf16.msra.mxu0 0
    %4557 = vmatprep.subr.bf16.mxu0 0
    %4558 = vmatpush1.bf16.msra.mxu0 0
    %4559 = vmatprep.subr.bf16.mxu0 0
    %4560 = vmatpush1.bf16.msra.mxu0 0
    %4561 = vmatprep.subr.bf16.mxu0 0
    %4562 = vmatpush1.bf16.msra.mxu0 0
    %4563 = vmatprep.mubr.bf16.mxu0 0
    %4564 = vmatmul.mubr.bf16.gmra.mrb[0].mxu0 %v4460
    %v4565 = vpop.f32.mrb[0].mxu0
    %v4566 = vadd.f32 %v4482, %v4565
    %v4567 = vpop.f32.mrb[0].mxu0
    %v4568 = vpop.f32.mrb[0].mxu0
    %v4569 = vadd.f32 %v4482, %v4568
    %v4570 = vpop.f32.mrb[0].mxu0
    %4571 = vmatprep.mubr.bf16.mxu0 0
    %4572 = vmatmul.mubr.bf16.gmra.mrb[0].mxu0 %v4461
    %v4573 = vpop.f32.mrb[0].mxu0
    %v4574 = vadd.f32 %v4482, %v4573
    %v4575 = vpop.f32.mrb[0].mxu0
    %v4576 = vpop.f32.mrb[0].mxu0
    %v4577 = vadd.f32 %v4482, %v4576
    %v4578 = vpop.f32.mrb[0].mxu0
    %4579 = vdwg.mxu0
    %v4580 = vmul.f32 %v4566, 0.70710677
    %v4581 = vmul.f32 %v4569, 0.70710677
    %v4582 = vmul.f32 %v4574, 0.70710677
    %v4583 = vmul.f32 %v4577, 0.70710677
    %v4584 = vand.u32 2147483647, %v4580
    %v4585 = vand.u32 2147483647, %v4581
    %v4586 = vand.u32 2147483647, %v4582
    %v4587 = vand.u32 2147483647, %v4583
    %v4588 = vmul.f32 %v4584, 0.3275911
    %v4589 = vmul.f32 %v4585, 0.3275911
    %v4590 = vmul.f32 %v4586, 0.3275911
    %v4591 = vmul.f32 %v4587, 0.3275911
    %v4592 = vadd.f32 %v4588, 1.0
    %v4593 = vadd.f32 %v4589, 1.0
    %v4594 = vadd.f32 %v4590, 1.0
    %v4595 = vadd.f32 %v4591, 1.0
    %v4596 = vrcp.pop %v4592
    %v4597 = vmul.f32 1.0, %v4596
    %v4598 = vrcp.pop %v4593
    %v4599 = vmul.f32 1.0, %v4598
    %v4600 = vrcp.pop %v4594
    %v4601 = vmul.f32 1.0, %v4600
    %v4602 = vrcp.pop %v4595
    %v4603 = vmul.f32 1.0, %v4602
    %v4604 = vmul.f32 %v4597, 1.0614054
    %v4605 = vmul.f32 %v4599, 1.0614054
    %v4606 = vmul.f32 %v4601, 1.0614054
    %v4607 = vmul.f32 %v4603, 1.0614054
    %v4608 = vsub.f32 %v4604, 1.4531521
    %v4609 = vsub.f32 %v4605, 1.4531521
    %v4610 = vsub.f32 %v4606, 1.4531521
    %v4611 = vsub.f32 %v4607, 1.4531521
    %v4612 = vmul.f32 %v4608, %v4597
    %v4613 = vmul.f32 %v4609, %v4599
    %v4614 = vmul.f32 %v4610, %v4601
    %v4615 = vmul.f32 %v4611, %v4603
    %v4616 = vadd.f32 %v4612, 1.4214138
    %v4617 = vadd.f32 %v4613, 1.4214138
    %v4618 = vadd.f32 %v4614, 1.4214138
    %v4619 = vadd.f32 %v4615, 1.4214138
    %v4620 = vmul.f32 %v4616, %v4597
    %v4621 = vmul.f32 %v4617, %v4599
    %v4622 = vmul.f32 %v4618, %v4601
    %v4623 = vmul.f32 %v4619, %v4603
    %v4624 = vsub.f32 %v4620, 0.28449672
    %v4625 = vsub.f32 %v4621, 0.28449672
    %v4626 = vsub.f32 %v4622, 0.28449672
    %v4627 = vsub.f32 %v4623, 0.28449672
    %v4628 = vmul.f32 %v4624, %v4597
    %v4629 = vmul.f32 %v4625, %v4599
    %v4630 = vmul.f32 %v4626, %v4601
    %v4631 = vmul.f32 %v4627, %v4603
    %v4632 = vadd.f32 %v4628, 0.2548296
    %v4633 = vadd.f32 %v4629, 0.2548296
    %v4634 = vadd.f32 %v4630, 0.2548296
    %v4635 = vadd.f32 %v4631, 0.2548296
    %v4636 = vmul.f32 %v4632, %v4597
    %v4637 = vmul.f32 %v4633, %v4599
    %v4638 = vmul.f32 %v4634, %v4601
    %v4639 = vmul.f32 %v4635, %v4603
    %v4640 = vsub.f32 0.0, %v4584
    %v4641 = vsub.f32 0.0, %v4585
    %v4642 = vsub.f32 0.0, %v4586
    %v4643 = vsub.f32 0.0, %v4587
    %v4644 = vmul.f32 %v4640, %v4584
    %v4645 = vmul.f32 %v4641, %v4585
    %v4646 = vmul.f32 %v4642, %v4586
    %v4647 = vmul.f32 %v4643, %v4587
    %v4648 = vmul.f32 %v4644, 1.442695
    %v4649 = vpow.pop %v4648
    %v4650 = vmul.f32 %v4645, 1.442695
    %v4651 = vpow.pop %v4650
    %v4652 = vmul.f32 %v4646, 1.442695
    %v4653 = vpow.pop %v4652
    %v4654 = vmul.f32 %v4647, 1.442695
    %v4655 = vpow.pop %v4654
    %v4656 = vmul.f32 %v4636, %v4649
    %v4657 = vmul.f32 %v4637, %v4651
    %v4658 = vmul.f32 %v4638, %v4653
    %v4659 = vmul.f32 %v4639, %v4655
    %v4660 = vsub.f32 1.0, %v4656
    %v4661 = vsub.f32 1.0, %v4657
    %v4662 = vsub.f32 1.0, %v4658
    %v4663 = vsub.f32 1.0, %v4659
    %vm4664 = vcmp.ge.f32.partialorder %v4580, 0.0
    %vm4665 = vcmp.ge.f32.partialorder %v4581, 0.0
    %vm4666 = vcmp.ge.f32.partialorder %v4582, 0.0
    %vm4667 = vcmp.ge.f32.partialorder %v4583, 0.0
    %v4668 = vsub.f32 0.0, %v4660
    %v4669 = vsub.f32 0.0, %v4661
    %v4670 = vsub.f32 0.0, %v4662
    %v4671 = vsub.f32 0.0, %v4663
    %v4672 = vsel %vm4664, %v4660, %v4668
    %v4673 = vsel %vm4665, %v4661, %v4669
    %v4674 = vsel %vm4666, %v4662, %v4670
    %v4675 = vsel %vm4667, %v4663, %v4671
    %v4676 = vmul.f32 %v4566, 0.5
    %v4677 = vmul.f32 %v4569, 0.5
    %v4678 = vmul.f32 %v4574, 0.5
    %v4679 = vmul.f32 %v4577, 0.5
    %v4680 = vadd.f32 %v4672, 1.0
    %v4681 = vadd.f32 %v4673, 1.0
    %v4682 = vadd.f32 %v4674, 1.0
    %v4683 = vadd.f32 %v4675, 1.0
    %v4684 = vmul.f32 %v4676, %v4680
    %v4685 = vmul.f32 %v4677, %v4681
    %v4686 = vmul.f32 %v4678, %v4682
    %v4687 = vmul.f32 %v4679, %v4683
    %v4688 = vpack.c.bf16 %v4685, %v4684
    %v4689 = vpack.c.bf16 %v4687, %v4686
    %s4690 = scalar_lea.vmem [#allocation13], 64
    %v4691 = vld [vmem:[%s4690] sm:$0xf]
    %v4692 = vld [vmem:[%s4690 + $0x4] sm:$0xf]
    %v4693 = vld [vmem:[%s4690 + $0x8] sm:$0xf]
    %v4694 = vld [vmem:[%s4690 + $0xc] sm:$0xf]
    %v4695 = vld [vmem:[%s4690 + $0x10] sm:$0xf]
    %v4696 = vld [vmem:[%s4690 + $0x14] sm:$0xf]
    %v4697 = vld [vmem:[%s4690 + $0x18] sm:$0xf]
    %v4698 = vld [vmem:[%s4690 + $0x1c] sm:$0xf]
    %v4699 = vld [vmem:[%s4690 + $0x20] sm:$0xf]
    %v4700 = vld [vmem:[%s4690 + $0x24] sm:$0xf]
    %v4701 = vld [vmem:[%s4690 + $0x28] sm:$0xf]
    %v4702 = vld [vmem:[%s4690 + $0x2c] sm:$0xf]
    %v4703 = vld [vmem:[%s4690 + $0x30] sm:$0xf]
    %v4704 = vld [vmem:[%s4690 + $0x34] sm:$0xf]
    %v4705 = vld [vmem:[%s4690 + $0x38] sm:$0xf]
    %v4706 = vld [vmem:[%s4690 + $0x3c] sm:$0xf]
    %v4707 = vlaneseq
    %v4708 = vshrl.u32 %v4707, 7
    %v4709 = vsub.s32 3, %v4708
    %v4710 = vrot.slane %v122, %v4709
    %v4727 = vunpack.c.l.b16 %v4691
    %v4728 = vunpack.c.l.b16 %v4692
    %v4729 = vunpack.c.l.b16 %v4693
    %v4730 = vunpack.c.l.b16 %v4694
    %v4731 = vunpack.c.l.b16 %v4695
    %v4732 = vunpack.c.l.b16 %v4696
    %v4733 = vunpack.c.l.b16 %v4697
    %v4734 = vunpack.c.l.b16 %v4698
    %v4735 = vunpack.c.l.b16 %v4699
    %v4736 = vunpack.c.l.b16 %v4700
    %v4737 = vunpack.c.l.b16 %v4701
    %v4738 = vunpack.c.l.b16 %v4702
    %v4739 = vunpack.c.l.b16 %v4703
    %v4740 = vunpack.c.l.b16 %v4704
    %v4741 = vunpack.c.l.b16 %v4705
    %v4742 = vunpack.c.l.b16 %v4706
    %v4743 = vpack.c.b16 %v4728, %v4727
    %v4744 = vpack.c.b16 %v4730, %v4729
    %v4745 = vpack.c.b16 %v4732, %v4731
    %v4746 = vpack.c.b16 %v4734, %v4733
    %v4747 = vpack.c.b16 %v4736, %v4735
    %v4748 = vpack.c.b16 %v4738, %v4737
    %v4749 = vpack.c.b16 %v4740, %v4739
    %v4750 = vpack.c.b16 %v4742, %v4741
    %4759 = vmatprep.subr.bf16.mxu0 0
    %4760 = vmatpush1.bf16.msra.mxu0 %v4743
    %4761 = vmatprep.subr.bf16.mxu0 0
    %4762 = vmatpush1.bf16.msra.mxu0 %v4744
    %4763 = vmatprep.subr.bf16.mxu0 0
    %4764 = vmatpush1.bf16.msra.mxu0 %v4745
    %4765 = vmatprep.subr.bf16.mxu0 0
    %4766 = vmatpush1.bf16.msra.mxu0 %v4746
    %4767 = vmatprep.subr.bf16.mxu0 0
    %4768 = vmatpush1.bf16.msra.mxu0 %v4747
    %4769 = vmatprep.subr.bf16.mxu0 0
    %4770 = vmatpush1.bf16.msra.mxu0 %v4748
    %4771 = vmatprep.subr.bf16.mxu0 0
    %4772 = vmatpush1.bf16.msra.mxu0 %v4749
    %4773 = vmatprep.subr.bf16.mxu0 0
    %4774 = vmatpush1.bf16.msra.mxu0 %v4750
    %4775 = vmatprep.subr.bf16.mxu0 0
    %4776 = vmatpush1.bf16.msra.mxu0 0
    %4777 = vmatprep.subr.bf16.mxu0 0
    %4778 = vmatpush1.bf16.msra.mxu0 0
    %4779 = vmatprep.subr.bf16.mxu0 0
    %4780 = vmatpush1.bf16.msra.mxu0 0
    %4781 = vmatprep.subr.bf16.mxu0 0
    %4782 = vmatpush1.bf16.msra.mxu0 0
    %4783 = vmatprep.subr.bf16.mxu0 0
    %4784 = vmatpush1.bf16.msra.mxu0 0
    %4785 = vmatprep.subr.bf16.mxu0 0
    %4786 = vmatpush1.bf16.msra.mxu0 0
    %4787 = vmatprep.subr.bf16.mxu0 0
    %4788 = vmatpush1.bf16.msra.mxu0 0
    %4789 = vmatprep.subr.bf16.mxu0 0
    %4790 = vmatpush1.bf16.msra.mxu0 0
    %4791 = vmatprep.mubr.bf16.mxu0 0
    %4792 = vmatmul.mubr.bf16.gmra.mrb[0].mxu0 %v4688
    %v4793 = vpop.f32.mrb[0].mxu0
    %v4794 = vadd.f32 %v4710, %v4793
    %v4795 = vpop.f32.mrb[0].mxu0
    %v4796 = vpop.f32.mrb[0].mxu0
    %v4797 = vadd.f32 %v4710, %v4796
    %v4798 = vpop.f32.mrb[0].mxu0
    %4799 = vmatprep.mubr.bf16.mxu0 0
    %4800 = vmatmul.mubr.bf16.gmra.mrb[0].mxu0 %v4689
    %v4801 = vpop.f32.mrb[0].mxu0
    %v4802 = vadd.f32 %v4710, %v4801
    %v4803 = vpop.f32.mrb[0].mxu0
    %v4804 = vpop.f32.mrb[0].mxu0
    %v4805 = vadd.f32 %v4710, %v4804
    %v4806 = vpop.f32.mrb[0].mxu0
    %4807 = vdwg.mxu0
    %v4808 = vadd.f32 %v4388, %v4794
    %v4809 = vadd.f32 %v4389, %v4797
    %v4810 = vadd.f32 %v4390, %v4802
    %v4811 = vadd.f32 %v4391, %v4805
    %4812 = vadd.xlane.f32.xlu0 %v4808
    %v4813 = vpop.xlane.xlu0 %4812
    %4814 = vadd.xlane.f32.xlu0 %v4809
    %v4815 = vpop.xlane.xlu0 %4814
    %4816 = vadd.xlane.f32.xlu0 %v4810
    %v4817 = vpop.xlane.xlu0 %4816
    %4818 = vadd.xlane.f32.xlu0 %v4811
    %v4819 = vpop.xlane.xlu0 %4818
    %v4820 = vmul.f32 %v4813, 0.03125
    %v4821 = vmul.f32 %v4815, 0.03125
    %v4822 = vmul.f32 %v4817, 0.03125
    %v4823 = vmul.f32 %v4819, 0.03125
    %v4824 = vmul.f32 %v4808, %v4808
    %v4825 = vmul.f32 %v4809, %v4809
    %v4826 = vmul.f32 %v4810, %v4810
    %v4827 = vmul.f32 %v4811, %v4811
    %4828 = vadd.xlane.f32.xlu0 %v4824
    %v4829 = vpop.xlane.xlu0 %4828
    %4830 = vadd.xlane.f32.xlu0 %v4825
    %v4831 = vpop.xlane.xlu0 %4830
    %4832 = vadd.xlane.f32.xlu0 %v4826
    %v4833 = vpop.xlane.xlu0 %4832
    %4834 = vadd.xlane.f32.xlu0 %v4827
    %v4835 = vpop.xlane.xlu0 %4834
    %v4836 = vmul.f32 %v4829, 0.03125
    %v4837 = vmul.f32 %v4831, 0.03125
    %v4838 = vmul.f32 %v4833, 0.03125
    %v4839 = vmul.f32 %v4835, 0.03125
    %v4840 = vmul.f32 %v4820, %v4820
    %v4841 = vmul.f32 %v4821, %v4821
    %v4842 = vmul.f32 %v4822, %v4822
    %v4843 = vmul.f32 %v4823, %v4823
    %v4844 = vsub.f32 %v4836, %v4840
    %v4845 = vsub.f32 %v4837, %v4841
    %v4846 = vsub.f32 %v4838, %v4842
    %v4847 = vsub.f32 %v4839, %v4843
    %v4848 = vsub.f32 %v4808, %v4820
    %v4849 = vsub.f32 %v4809, %v4821
    %v4850 = vsub.f32 %v4810, %v4822
    %v4851 = vsub.f32 %v4811, %v4823
    %v4852 = vadd.f32 %v4844, 1e-05
    %v4853 = vadd.f32 %v4845, 1e-05
    %v4854 = vadd.f32 %v4846, 1e-05
    %v4855 = vadd.f32 %v4847, 1e-05
    %v4856 = vrsqrt.pop %v4852
    %v4857 = vrsqrt.pop %v4853
    %v4858 = vrsqrt.pop %v4854
    %v4859 = vrsqrt.pop %v4855
    %v4860 = vmul.f32 %v4848, %v4856
    %v4861 = vmul.f32 %v4849, %v4857
    %v4862 = vmul.f32 %v4850, %v4858
    %v4863 = vmul.f32 %v4851, %v4859
    %v4864 = vlaneseq
    %v4865 = vshrl.u32 %v4864, 7
    %v4866 = vsub.s32 4, %v4865
    %v4867 = vrot.slane %v122, %v4866
    %v4868 = vmul.f32 %v4860, %v4867
    %v4869 = vmul.f32 %v4861, %v4867
    %v4870 = vmul.f32 %v4862, %v4867
    %v4871 = vmul.f32 %v4863, %v4867
    %v4872 = vlaneseq
    %v4873 = vshrl.u32 %v4872, 7
    %v4874 = vsub.s32 5, %v4873
    %v4875 = vrot.slane %v122, %v4874
    %v4876 = vadd.f32 %v4868, %v4875
    %v4877 = vadd.f32 %v4869, %v4875
    %v4878 = vadd.f32 %v4870, %v4875
    %v4879 = vadd.f32 %v4871, %v4875
    %4880 = vst [vmem:[#allocation14] sm:$0xff] %v4876
    %4881 = vst [vmem:[#allocation14 + $0x8] sm:$0xff] %v4877
    %4882 = vst [vmem:[#allocation14 + $0x10] sm:$0xff] %v4878
    %4883 = vst [vmem:[#allocation14 + $0x18] sm:$0xff] %v4879
    // Predicated region
    $region58: #{spa_transformer_block.1} parent=1 // pred_check
      _
    $region59: #{spa_transformer_block.1} parent=1 // pred_check_branch
      %4885 = sbr.rel (0) target = $region61
    $region60: #{spa_transformer_block.1} parent=1 // pred_region
      %s4887 = ssub.s32 512, 512
      %4888 = vsyncadd [#allocation4], %s4887
      %s4889 = sshll.u32 [#allocation14], 4
      %s4890 = int_to_ptr.vmem [resolvable:$true] %s4889
      %4895 = dma.vmem_to_hbm [thread:$0]  %s4890, 512, %s7, [#allocation4], 128, 128, 8
    $region61: #{spa_transformer_block.1} parent=1 // pred_fallthru
      _
    // Predicated region
    $region62: #{spa_transformer_block.1} parent=1 // pred_check
      _
    $region63: #{spa_transformer_block.1} parent=1 // pred_check_branch
      %4897 = sbr.rel (0) target = $region65
    $region64: #{spa_transformer_block.1} parent=1 // pred_region
      %4898 = dma.done [#allocation4], 512
    $region65: #{spa_transformer_block.1} parent=1 // pred_fallthru
      _
    %4899 = vsyncpa [#allocation3], 1
    %4900 = vsyncpa [#allocation6], 1
    %4901 = vsyncpa [#allocation9], 1
    %4902 = vsyncpa [#allocation12], 1
    %4903 = vsyncpa [#allocation4], 1

</llo_original>
